<compile_context>
chip_gen: v7x
topology: tpu7x:2x2x1
jax: 0.10.0
libtpu: 0.0.40
codegen_flags: <defaults>
</compile_context>

<pallas_src>
import jax
import jax.numpy as jnp
from jax import lax
from jax.experimental import pallas as pl
from jax.experimental.pallas import tpu as pltpu


# ----------------------------------------------------------------------------
# Pallas kernel
# ----------------------------------------------------------------------------
def comm_kernel(x_ref, mask_ref, w_proj_ref, b_proj_ref,
                w_r_ref, w_z_ref, w_n_ref, bhn_ref,
                out_ref, gr_ref, gz_ref, gn_ref):
    Bb, N, D = x_ref.shape            # Bb = batch elements in this grid block
    H2 = w_r_ref.shape[0]             # 2H (== D for this module)
    H = H2 // 2
    BE = Bb * N                       # flattened per-agent sequences in this block

    x = x_ref[...]                    # (Bb, N, D)
    mask = mask_ref[...]              # (Bb, N, N)

    # xm[k, j, :] = x[b, j, :] * mask[b, i, j]   with k = b*N + i  (expand + mul)
    xm = (x[:, None, :, :] * mask[:, :, :, None]).reshape(BE, N, D)

    # Doubled time-major input: row block t holds [fwd input @ time t || bwd input
    # @ time N-1-t]  ->  (N*BE, 2D).  Built once in the prologue with static slices.
    x2 = jnp.concatenate(
        [jnp.concatenate([xm[:, t, :], xm[:, N - 1 - t, :]], axis=-1)
         for t in range(N)],
        axis=0)

    # Single fused projection matmul for both directions and all three gates.
    # b_ih (all gates) and b_hh (r/z gates) are folded into b_proj.
    g = jnp.dot(x2, w_proj_ref[...],
                preferred_element_type=jnp.float32) + b_proj_ref[...]
    g = g.reshape(N, BE, 3 * H2)

    # Split per gate ONCE so the serial loop only does leading-axis scratch reads.
    gr_ref[...] = g[:, :, 0:H2]
    gz_ref[...] = g[:, :, H2:2 * H2]
    gn_ref[...] = g[:, :, 2 * H2:3 * H2]

    # aid selection target per (row, lane): fwd lanes (0:H) select at t == agent,
    # bwd lanes (H:2H) at t == N-1-agent.
    agent = lax.broadcasted_iota(jnp.int32, (BE, H2), 0) % N
    lane = lax.broadcasted_iota(jnp.int32, (BE, H2), 1)
    tgt = jnp.where(lane < H, agent, (N - 1) - agent)

    w_r = w_r_ref[...]
    w_z = w_z_ref[...]
    w_n = w_n_ref[...]
    bhn = jnp.broadcast_to(bhn_ref[...], (BE, H2))   # hoisted (1,2H)->(BE,2H) bcast

    def step(t, carry):
        h, sel = carry                                 # h = [h_fwd || h_bwd], (BE, 2H)
        gh_r = jnp.dot(h, w_r, preferred_element_type=jnp.float32)
        gh_z = jnp.dot(h, w_z, preferred_element_type=jnp.float32)
        gh_n = jnp.dot(h, w_n, preferred_element_type=jnp.float32) + bhn
        r = jax.nn.sigmoid(gr_ref[t] + gh_r)
        z = jax.nn.sigmoid(gz_ref[t] + gh_z)
        n = jnp.tanh(gn_ref[t] + r * gh_n)
        h_new = (1.0 - z) * n + z * h
        sel = jnp.where(tgt == t, h_new, sel)          # aid selection, both directions
        return h_new, sel

    h0 = jnp.zeros((BE, H2), jnp.float32)
    _, sel = lax.fori_loop(0, N, step, (h0, h0), unroll=True)

    out_ref[...] = sel                                  # (BE, D), lanes = [fwd || bwd]


# ----------------------------------------------------------------------------
# Weight preparation (layout-only: fuse directions/gates, fold biases)
# ----------------------------------------------------------------------------
def _prep_params(params, D, H):
    f32 = jnp.float32
    z_dh = jnp.zeros((D, H), f32)
    z_hh = jnp.zeros((H, H), f32)

    def gcol(w, g):                     # columns of gate g (gate order r, z, n)
        return w[:, g * H:(g + 1) * H]

    wf, wb = params["wih_f"], params["wih_b"]
    uf, ub = params["whh_f"], params["whh_b"]
    bif, bib = params["bih_f"], params["bih_b"]
    bhf, bhb = params["bhh_f"], params["bhh_b"]

    # Input-projection weight (2D, 6H); columns [r_f|r_b|z_f|z_b|n_f|n_b],
    # rows 0:D act on the fwd-time input, rows D:2D on the (reversed) bwd-time input.
    w_proj = jnp.concatenate([
        jnp.concatenate([gcol(wf, 0), z_dh, gcol(wf, 1), z_dh, gcol(wf, 2), z_dh], axis=1),
        jnp.concatenate([z_dh, gcol(wb, 0), z_dh, gcol(wb, 1), z_dh, gcol(wb, 2)], axis=1),
    ], axis=0)
    # Folded bias: b_ih for all gates + b_hh for r/z (b_hh_n stays inside r*(.)).
    b_proj = jnp.concatenate([
        gcol(bif, 0) + gcol(bhf, 0), gcol(bib, 0) + gcol(bhb, 0),
        gcol(bif, 1) + gcol(bhf, 1), gcol(bib, 1) + gcol(bhb, 1),
        gcol(bif, 2),                gcol(bib, 2),
    ], axis=1)

    def blockdiag(g):                   # (2H, 2H) fused fwd/bwd recurrent weight
        return jnp.concatenate([
            jnp.concatenate([gcol(uf, g), z_hh], axis=1),
            jnp.concatenate([z_hh, gcol(ub, g)], axis=1),
        ], axis=0)

    w_r, w_z, w_n = blockdiag(0), blockdiag(1), blockdiag(2)
    bhh_n = jnp.concatenate([gcol(bhf, 2), gcol(bhb, 2)], axis=1)   # (1, 2H)
    return w_proj, b_proj, w_r, w_z, w_n, bhh_n


# ----------------------------------------------------------------------------
# Wrapper
# ----------------------------------------------------------------------------
def comm_model_forward(x, mask, params):
    B, N, D = x.shape
    H = D // 2
    H2 = 2 * H
    w_proj, b_proj, w_r, w_z, w_n, bhh_n = _prep_params(params, D, H)

    y_flat = pl.pallas_call(
        comm_kernel,
        out_shape=jax.ShapeDtypeStruct((B * N, D), jnp.float32),
        grid=(B,),
        in_specs=[
            pl.BlockSpec((1, N, D), lambda b: (b, 0, 0)),        # x
            pl.BlockSpec((1, N, N), lambda b: (b, 0, 0)),        # mask
            pl.BlockSpec((2 * D, 3 * H2), lambda b: (0, 0)),     # fused proj weight
            pl.BlockSpec((1, 3 * H2), lambda b: (0, 0)),         # fused proj bias
            pl.BlockSpec((H2, H2), lambda b: (0, 0)),            # recurrent W (r)
            pl.BlockSpec((H2, H2), lambda b: (0, 0)),            # recurrent W (z)
            pl.BlockSpec((H2, H2), lambda b: (0, 0)),            # recurrent W (n)
            pl.BlockSpec((1, H2), lambda b: (0, 0)),             # b_hh (n gate)
        ],
        out_specs=pl.BlockSpec((N, D), lambda b: (b, 0)),
        scratch_shapes=[
            pltpu.VMEM((N, N, H2), jnp.float32),   # r-gate x-projection (fwd||bwd)
            pltpu.VMEM((N, N, H2), jnp.float32),   # z-gate x-projection
            pltpu.VMEM((N, N, H2), jnp.float32),   # n-gate x-projection
        ],
        compiler_params=pltpu.CompilerParams(
            dimension_semantics=("parallel",)),
    )(x, mask, w_proj, b_proj, w_r, w_z, w_n, bhh_n)
    return y_flat.reshape(B, N, D)


# ----------------------------------------------------------------------------
# Pure-JAX reference (same math, lax.scan) for validation
# ----------------------------------------------------------------------------
def _gru_ref_dir(xm, wih, whh, bih, bhh, reverse):
    BE, T, _ = xm.shape
    H = whh.shape[0]
    xs = xm[:, ::-1, :] if reverse else xm

    def step(h, xt):
        gi = xt @ wih + bih[0]
        gh = h @ whh + bhh[0]
        r = jax.nn.sigmoid(gi[:, :H] + gh[:, :H])
        z = jax.nn.sigmoid(gi[:, H:2 * H] + gh[:, H:2 * H])
        n = jnp.tanh(gi[:, 2 * H:] + r * gh[:, 2 * H:])
        h = (1.0 - z) * n + z * h
        return h, h

    h0 = jnp.zeros((BE, H), xm.dtype)
    _, hs = lax.scan(step, h0, jnp.swapaxes(xs, 0, 1))
    hs = jnp.swapaxes(hs, 0, 1)
    return hs[:, ::-1, :] if reverse else hs


def comm_model_reference(x, mask, params):
    B, N, D = x.shape
    xm = (x[:, None, :, :] * mask[:, :, :, None]).reshape(B * N, N, D)
    of = _gru_ref_dir(xm, params["wih_f"], params["whh_f"], params["bih_f"], params["bhh_f"], False)
    ob = _gru_ref_dir(xm, params["wih_b"], params["whh_b"], params["bih_b"], params["bhh_b"], True)
    out = jnp.concatenate([of, ob], axis=-1)                 # (B*N, N, D)
    k = jnp.arange(B * N)
    y = out[k, k % N]                                        # the aid-bmm row selection
    return y.reshape(B, N, D)


# ----------------------------------------------------------------------------
# Main
# ----------------------------------------------------------------------------
if __name__ == "__main__":
    # Module config: n_node=8, din=32, hidden_dim=32 (GRU hidden per direction = 16)
    B, N, D = 2, 8, 32
    H = D // 2

    key = jax.random.PRNGKey(0)
    ks = jax.random.split(key, 10)
    bound = 1.0 / (H ** 0.5)

    def u(kk, shape):
        return jax.random.uniform(kk, shape, jnp.float32, -bound, bound)

    # Weights stored pre-transposed: W_ih^T -> (D, 3H), W_hh^T -> (H, 3H); gate order r,z,n.
    params = {
        "wih_f": u(ks[0], (D, 3 * H)), "whh_f": u(ks[1], (H, 3 * H)),
        "bih_f": u(ks[2], (1, 3 * H)), "bhh_f": u(ks[3], (1, 3 * H)),
        "wih_b": u(ks[4], (D, 3 * H)), "whh_b": u(ks[5], (H, 3 * H)),
        "bih_b": u(ks[6], (1, 3 * H)), "bhh_b": u(ks[7], (1, 3 * H)),
    }

    x = jax.random.normal(ks[8], (B, N, D), jnp.float32)
    mask = (jax.random.uniform(ks[9], (B, N, N)) > 0.3).astype(jnp.float32)

    y = comm_model_forward(x, mask, params)
    y = jax.block_until_ready(y)

    y_ref = comm_model_reference(x, mask, params)
    assert y.shape == (B, N, D)
    assert jnp.allclose(y, y_ref, atol=2e-3, rtol=2e-3), float(jnp.max(jnp.abs(y - y_ref)))

    print("KERNEL_OK")
</pallas_src>

<mosaic_0001>
module attributes {stable_mosaic.version = 11 : i64} {
  func.func @comm_kernel(%arg0: i32, %arg1: memref<1x8x32xf32, #tpu.memory_space<vmem>>, %arg2: memref<1x8x8xf32, #tpu.memory_space<vmem>>, %arg3: memref<64x96xf32, #tpu.memory_space<vmem>>, %arg4: memref<1x96xf32, #tpu.memory_space<vmem>>, %arg5: memref<32x32xf32, #tpu.memory_space<vmem>>, %arg6: memref<32x32xf32, #tpu.memory_space<vmem>>, %arg7: memref<32x32xf32, #tpu.memory_space<vmem>>, %arg8: memref<1x32xf32, #tpu.memory_space<vmem>>, %arg9: memref<8x32xf32, #tpu.memory_space<vmem>>, %arg10: memref<8x8x32xf32, #tpu.memory_space<vmem>>, %arg11: memref<8x8x32xf32, #tpu.memory_space<vmem>>, %arg12: memref<8x8x32xf32, #tpu.memory_space<vmem>>) attributes {dimension_semantics = [#tpu.dimension_semantics<parallel>], iteration_bounds = array<i64: 2>, scalar_prefetch = 0 : i64, scratch_operands = 3 : i64, tpu.core_type = #tpu.core_type<tc>, window_params = [{transform_indices = @transform_0, window_bounds = array<i64: 1, 8, 32>}, {transform_indices = @transform_1, window_bounds = array<i64: 1, 8, 8>}, {pipeline_mode = #tpu.pipeline_mode<synchronous>, transform_indices = @transform_2, window_bounds = array<i64: 64, 96>}, {pipeline_mode = #tpu.pipeline_mode<synchronous>, transform_indices = @transform_3, window_bounds = array<i64: 1, 96>}, {pipeline_mode = #tpu.pipeline_mode<synchronous>, transform_indices = @transform_4, window_bounds = array<i64: 32, 32>}, {pipeline_mode = #tpu.pipeline_mode<synchronous>, transform_indices = @transform_5, window_bounds = array<i64: 32, 32>}, {pipeline_mode = #tpu.pipeline_mode<synchronous>, transform_indices = @transform_6, window_bounds = array<i64: 32, 32>}, {pipeline_mode = #tpu.pipeline_mode<synchronous>, transform_indices = @transform_7, window_bounds = array<i64: 1, 32>}, {transform_indices = @transform_8, window_bounds = array<i64: 8, 32>}]} {
    %c0 = arith.constant 0 : index
    %c0_0 = arith.constant 0 : index
    %c0_1 = arith.constant 0 : index
    %0 = vector.load %arg1[%c0, %c0_0, %c0_1] : memref<1x8x32xf32, #tpu.memory_space<vmem>>, vector<1x8x32xf32>
    %c0_2 = arith.constant 0 : index
    %c0_3 = arith.constant 0 : index
    %c0_4 = arith.constant 0 : index
    %1 = vector.load %arg2[%c0_2, %c0_3, %c0_4] : memref<1x8x8xf32, #tpu.memory_space<vmem>>, vector<1x8x8xf32>
    %2 = vector.shape_cast %0 : vector<1x8x32xf32> to vector<1x1x8x32xf32>
    %3 = vector.shape_cast %1 : vector<1x8x8xf32> to vector<1x8x8x1xf32>
    %4 = vector.broadcast %2 : vector<1x1x8x32xf32> to vector<1x8x8x32xf32>
    %5 = vector.broadcast %3 : vector<1x8x8x1xf32> to vector<1x8x8x32xf32>
    %6 = arith.mulf %4, %5 : vector<1x8x8x32xf32>
    %7 = vector.shape_cast %6 : vector<1x8x8x32xf32> to vector<8x8x32xf32>
    %8 = vector.extract_strided_slice %7 {offsets = [0, 0, 0], sizes = [8, 1, 32], strides = [1, 1, 1]} : vector<8x8x32xf32> to vector<8x1x32xf32>
    %9 = vector.shape_cast %8 : vector<8x1x32xf32> to vector<8x32xf32>
    %10 = vector.extract_strided_slice %7 {offsets = [0, 7, 0], sizes = [8, 1, 32], strides = [1, 1, 1]} : vector<8x8x32xf32> to vector<8x1x32xf32>
    %11 = vector.shape_cast %10 : vector<8x1x32xf32> to vector<8x32xf32>
    %12 = tpu.concatenate %9, %11 in 1 : vector<8x32xf32>, vector<8x32xf32> -> vector<8x64xf32>
    %13 = vector.extract_strided_slice %7 {offsets = [0, 1, 0], sizes = [8, 1, 32], strides = [1, 1, 1]} : vector<8x8x32xf32> to vector<8x1x32xf32>
    %14 = vector.shape_cast %13 : vector<8x1x32xf32> to vector<8x32xf32>
    %15 = vector.extract_strided_slice %7 {offsets = [0, 6, 0], sizes = [8, 1, 32], strides = [1, 1, 1]} : vector<8x8x32xf32> to vector<8x1x32xf32>
    %16 = vector.shape_cast %15 : vector<8x1x32xf32> to vector<8x32xf32>
    %17 = tpu.concatenate %14, %16 in 1 : vector<8x32xf32>, vector<8x32xf32> -> vector<8x64xf32>
    %18 = vector.extract_strided_slice %7 {offsets = [0, 2, 0], sizes = [8, 1, 32], strides = [1, 1, 1]} : vector<8x8x32xf32> to vector<8x1x32xf32>
    %19 = vector.shape_cast %18 : vector<8x1x32xf32> to vector<8x32xf32>
    %20 = vector.extract_strided_slice %7 {offsets = [0, 5, 0], sizes = [8, 1, 32], strides = [1, 1, 1]} : vector<8x8x32xf32> to vector<8x1x32xf32>
    %21 = vector.shape_cast %20 : vector<8x1x32xf32> to vector<8x32xf32>
    %22 = tpu.concatenate %19, %21 in 1 : vector<8x32xf32>, vector<8x32xf32> -> vector<8x64xf32>
    %23 = vector.extract_strided_slice %7 {offsets = [0, 3, 0], sizes = [8, 1, 32], strides = [1, 1, 1]} : vector<8x8x32xf32> to vector<8x1x32xf32>
    %24 = vector.shape_cast %23 : vector<8x1x32xf32> to vector<8x32xf32>
    %25 = vector.extract_strided_slice %7 {offsets = [0, 4, 0], sizes = [8, 1, 32], strides = [1, 1, 1]} : vector<8x8x32xf32> to vector<8x1x32xf32>
    %26 = vector.shape_cast %25 : vector<8x1x32xf32> to vector<8x32xf32>
    %27 = tpu.concatenate %24, %26 in 1 : vector<8x32xf32>, vector<8x32xf32> -> vector<8x64xf32>
    %28 = vector.extract_strided_slice %7 {offsets = [0, 4, 0], sizes = [8, 1, 32], strides = [1, 1, 1]} : vector<8x8x32xf32> to vector<8x1x32xf32>
    %29 = vector.shape_cast %28 : vector<8x1x32xf32> to vector<8x32xf32>
    %30 = vector.extract_strided_slice %7 {offsets = [0, 3, 0], sizes = [8, 1, 32], strides = [1, 1, 1]} : vector<8x8x32xf32> to vector<8x1x32xf32>
    %31 = vector.shape_cast %30 : vector<8x1x32xf32> to vector<8x32xf32>
    %32 = tpu.concatenate %29, %31 in 1 : vector<8x32xf32>, vector<8x32xf32> -> vector<8x64xf32>
    %33 = vector.extract_strided_slice %7 {offsets = [0, 5, 0], sizes = [8, 1, 32], strides = [1, 1, 1]} : vector<8x8x32xf32> to vector<8x1x32xf32>
    %34 = vector.shape_cast %33 : vector<8x1x32xf32> to vector<8x32xf32>
    %35 = vector.extract_strided_slice %7 {offsets = [0, 2, 0], sizes = [8, 1, 32], strides = [1, 1, 1]} : vector<8x8x32xf32> to vector<8x1x32xf32>
    %36 = vector.shape_cast %35 : vector<8x1x32xf32> to vector<8x32xf32>
    %37 = tpu.concatenate %34, %36 in 1 : vector<8x32xf32>, vector<8x32xf32> -> vector<8x64xf32>
    %38 = vector.extract_strided_slice %7 {offsets = [0, 6, 0], sizes = [8, 1, 32], strides = [1, 1, 1]} : vector<8x8x32xf32> to vector<8x1x32xf32>
    %39 = vector.shape_cast %38 : vector<8x1x32xf32> to vector<8x32xf32>
    %40 = vector.extract_strided_slice %7 {offsets = [0, 1, 0], sizes = [8, 1, 32], strides = [1, 1, 1]} : vector<8x8x32xf32> to vector<8x1x32xf32>
    %41 = vector.shape_cast %40 : vector<8x1x32xf32> to vector<8x32xf32>
    %42 = tpu.concatenate %39, %41 in 1 : vector<8x32xf32>, vector<8x32xf32> -> vector<8x64xf32>
    %43 = vector.extract_strided_slice %7 {offsets = [0, 7, 0], sizes = [8, 1, 32], strides = [1, 1, 1]} : vector<8x8x32xf32> to vector<8x1x32xf32>
    %44 = vector.shape_cast %43 : vector<8x1x32xf32> to vector<8x32xf32>
    %45 = vector.extract_strided_slice %7 {offsets = [0, 0, 0], sizes = [8, 1, 32], strides = [1, 1, 1]} : vector<8x8x32xf32> to vector<8x1x32xf32>
    %46 = vector.shape_cast %45 : vector<8x1x32xf32> to vector<8x32xf32>
    %47 = tpu.concatenate %44, %46 in 1 : vector<8x32xf32>, vector<8x32xf32> -> vector<8x64xf32>
    %48 = tpu.concatenate %12, %17, %22, %27, %32, %37, %42, %47 in 0 : vector<8x64xf32>, vector<8x64xf32>, vector<8x64xf32>, vector<8x64xf32>, vector<8x64xf32>, vector<8x64xf32>, vector<8x64xf32>, vector<8x64xf32> -> vector<64x64xf32>
    %c0_5 = arith.constant 0 : index
    %c0_6 = arith.constant 0 : index
    %49 = vector.load %arg3[%c0_5, %c0_6] : memref<64x96xf32, #tpu.memory_space<vmem>>, vector<64x96xf32>
    %cst = arith.constant dense<0.000000e+00> : vector<64x96xf32>
    %50 = tpu.matmul %48, %49, %cst {dimension_numbers = #tpu.dot_dimension_numbers<[1], [0], [0], [1], [0, 0, 1, 1], [], []>} : vector<64x64xf32>, vector<64x96xf32>, vector<64x96xf32> -> vector<64x96xf32>
    %c0_7 = arith.constant 0 : index
    %c0_8 = arith.constant 0 : index
    %51 = vector.load %arg4[%c0_7, %c0_8] : memref<1x96xf32, #tpu.memory_space<vmem>>, vector<1x96xf32>
    %52 = vector.broadcast %51 : vector<1x96xf32> to vector<64x96xf32>
    %53 = arith.addf %50, %52 : vector<64x96xf32>
    %54 = vector.shape_cast %53 : vector<64x96xf32> to vector<8x8x96xf32>
    %55 = vector.extract_strided_slice %54 {offsets = [0, 0, 0], sizes = [8, 8, 32], strides = [1, 1, 1]} : vector<8x8x96xf32> to vector<8x8x32xf32>
    %c0_9 = arith.constant 0 : index
    %c0_10 = arith.constant 0 : index
    %c0_11 = arith.constant 0 : index
    %56 = vector.load %arg10[%c0_9, %c0_10, %c0_11] : memref<8x8x32xf32, #tpu.memory_space<vmem>>, vector<8x8x32xf32>
    tpu.vector_store %arg10[%c0_9, %c0_10, %c0_11], %55 {strides = array<i32>} : memref<8x8x32xf32, #tpu.memory_space<vmem>>, vector<8x8x32xf32>,
    %57 = vector.extract_strided_slice %54 {offsets = [0, 0, 32], sizes = [8, 8, 32], strides = [1, 1, 1]} : vector<8x8x96xf32> to vector<8x8x32xf32>
    %c0_12 = arith.constant 0 : index
    %c0_13 = arith.constant 0 : index
    %c0_14 = arith.constant 0 : index
    %58 = vector.load %arg11[%c0_12, %c0_13, %c0_14] : memref<8x8x32xf32, #tpu.memory_space<vmem>>, vector<8x8x32xf32>
    tpu.vector_store %arg11[%c0_12, %c0_13, %c0_14], %57 {strides = array<i32>} : memref<8x8x32xf32, #tpu.memory_space<vmem>>, vector<8x8x32xf32>,
    %59 = vector.extract_strided_slice %54 {offsets = [0, 0, 64], sizes = [8, 8, 32], strides = [1, 1, 1]} : vector<8x8x96xf32> to vector<8x8x32xf32>
    %c0_15 = arith.constant 0 : index
    %c0_16 = arith.constant 0 : index
    %c0_17 = arith.constant 0 : index
    %60 = vector.load %arg12[%c0_15, %c0_16, %c0_17] : memref<8x8x32xf32, #tpu.memory_space<vmem>>, vector<8x8x32xf32>
    tpu.vector_store %arg12[%c0_15, %c0_16, %c0_17], %59 {strides = array<i32>} : memref<8x8x32xf32, #tpu.memory_space<vmem>>, vector<8x8x32xf32>,
    %61 = tpu.iota {dimensions = array<i32: 0>} : vector<8x32xi32>
    %c8_i32 = arith.constant 8 : i32
    %c0_i32 = arith.constant 0 : i32
    %62 = arith.cmpi eq, %c8_i32, %c0_i32 : i32
    %c1_i32 = arith.constant 1 : i32
    %63 = arith.select %62, %c1_i32, %c8_i32 : i32
    %64 = vector.broadcast %63 : i32 to vector<8x32xi32>
    %65 = arith.remsi %61, %64 : vector<8x32xi32>
    %c0_i32_18 = arith.constant 0 : i32
    %66 = vector.broadcast %c0_i32_18 : i32 to vector<8x32xi32>
    %67 = arith.cmpi ne, %65, %66 : vector<8x32xi32>
    %c0_i32_19 = arith.constant 0 : i32
    %68 = vector.broadcast %c0_i32_19 : i32 to vector<8x32xi32>
    %69 = arith.cmpi slt, %65, %68 : vector<8x32xi32>
    %c0_i32_20 = arith.constant 0 : i32
    %70 = arith.cmpi slt, %63, %c0_i32_20 : i32
    %71 = vector.broadcast %70 : i1 to vector<8x32xi1>
    %72 = vector.broadcast %71 : vector<8x32xi1> to vector<8x32xi1>
    %73 = arith.xori %69, %72 : vector<8x32xi1>
    %74 = arith.andi %73, %67 : vector<8x32xi1>
    %75 = vector.broadcast %63 : i32 to vector<8x32xi32>
    %76 = arith.addi %65, %75 : vector<8x32xi32>
    %77 = arith.select %74, %76, %65 : vector<8x32xi1>, vector<8x32xi32>
    %78 = tpu.iota {dimensions = array<i32: 1>} : vector<8x32xi32>
    %c16_i32 = arith.constant 16 : i32
    %79 = vector.broadcast %c16_i32 : i32 to vector<8x32xi32>
    %80 = arith.cmpi slt, %78, %79 : vector<8x32xi32>
    %c7_i32 = arith.constant 7 : i32
    %81 = vector.broadcast %c7_i32 : i32 to vector<8x32xi32>
    %82 = arith.subi %81, %77 : vector<8x32xi32>
    %83 = arith.select %80, %77, %82 : vector<8x32xi1>, vector<8x32xi32>
    %c0_21 = arith.constant 0 : index
    %c0_22 = arith.constant 0 : index
    %84 = vector.load %arg5[%c0_21, %c0_22] : memref<32x32xf32, #tpu.memory_space<vmem>>, vector<32x32xf32>
    %c0_23 = arith.constant 0 : index
    %c0_24 = arith.constant 0 : index
    %85 = vector.load %arg6[%c0_23, %c0_24] : memref<32x32xf32, #tpu.memory_space<vmem>>, vector<32x32xf32>
    %c0_25 = arith.constant 0 : index
    %c0_26 = arith.constant 0 : index
    %86 = vector.load %arg7[%c0_25, %c0_26] : memref<32x32xf32, #tpu.memory_space<vmem>>, vector<32x32xf32>
    %c0_27 = arith.constant 0 : index
    %c0_28 = arith.constant 0 : index
    %87 = vector.load %arg8[%c0_27, %c0_28] : memref<1x32xf32, #tpu.memory_space<vmem>>, vector<1x32xf32>
    %88 = vector.shape_cast %87 : vector<1x32xf32> to vector<1x32xf32>
    %89 = vector.broadcast %88 : vector<1x32xf32> to vector<8x32xf32>
    %cst_29 = arith.constant 0.000000e+00 : f32
    %90 = vector.broadcast %cst_29 : f32 to vector<8x32xf32>
    %c0_i32_30 = arith.constant 0 : i32
    %cst_31 = arith.constant dense<0.000000e+00> : vector<8x32xf32>
    %91 = tpu.matmul %90, %84, %cst_31 {dimension_numbers = #tpu.dot_dimension_numbers<[1], [0], [0], [1], [0, 0, 1, 1], [], []>} : vector<8x32xf32>, vector<32x32xf32>, vector<8x32xf32> -> vector<8x32xf32>
    %cst_32 = arith.constant dense<0.000000e+00> : vector<8x32xf32>
    %92 = tpu.matmul %90, %85, %cst_32 {dimension_numbers = #tpu.dot_dimension_numbers<[1], [0], [0], [1], [0, 0, 1, 1], [], []>} : vector<8x32xf32>, vector<32x32xf32>, vector<8x32xf32> -> vector<8x32xf32>
    %cst_33 = arith.constant dense<0.000000e+00> : vector<8x32xf32>
    %93 = tpu.matmul %90, %86, %cst_33 {dimension_numbers = #tpu.dot_dimension_numbers<[1], [0], [0], [1], [0, 0, 1, 1], [], []>} : vector<8x32xf32>, vector<32x32xf32>, vector<8x32xf32> -> vector<8x32xf32>
    %94 = arith.addf %93, %89 : vector<8x32xf32>
    %95 = arith.index_cast %c0_i32_30 : i32 to index
    %c0_34 = arith.constant 0 : index
    %c0_35 = arith.constant 0 : index
    %96 = vector.load %arg10[%95, %c0_34, %c0_35] : memref<8x8x32xf32, #tpu.memory_space<vmem>>, vector<1x8x32xf32>
    %97 = vector.shape_cast %96 : vector<1x8x32xf32> to vector<8x32xf32>
    %98 = arith.addf %97, %91 : vector<8x32xf32>
    %99 = arith.negf %98 : vector<8x32xf32>
    %100 = math.exp %99 : vector<8x32xf32>
    %cst_36 = arith.constant 1.000000e+00 : f32
    %101 = vector.broadcast %cst_36 : f32 to vector<8x32xf32>
    %102 = arith.addf %101, %100 : vector<8x32xf32>
    %103 = arith.divf %101, %102 : vector<8x32xf32>
    %104 = arith.index_cast %c0_i32_30 : i32 to index
    %c0_37 = arith.constant 0 : index
    %c0_38 = arith.constant 0 : index
    %105 = vector.load %arg11[%104, %c0_37, %c0_38] : memref<8x8x32xf32, #tpu.memory_space<vmem>>, vector<1x8x32xf32>
    %106 = vector.shape_cast %105 : vector<1x8x32xf32> to vector<8x32xf32>
    %107 = arith.addf %106, %92 : vector<8x32xf32>
    %108 = arith.negf %107 : vector<8x32xf32>
    %109 = math.exp %108 : vector<8x32xf32>
    %cst_39 = arith.constant 1.000000e+00 : f32
    %110 = vector.broadcast %cst_39 : f32 to vector<8x32xf32>
    %111 = arith.addf %110, %109 : vector<8x32xf32>
    %112 = arith.divf %110, %111 : vector<8x32xf32>
    %113 = arith.index_cast %c0_i32_30 : i32 to index
    %c0_40 = arith.constant 0 : index
    %c0_41 = arith.constant 0 : index
    %114 = vector.load %arg12[%113, %c0_40, %c0_41] : memref<8x8x32xf32, #tpu.memory_space<vmem>>, vector<1x8x32xf32>
    %115 = vector.shape_cast %114 : vector<1x8x32xf32> to vector<8x32xf32>
    %116 = arith.mulf %103, %94 : vector<8x32xf32>
    %117 = arith.addf %115, %116 : vector<8x32xf32>
    %118 = math.tanh %117 : vector<8x32xf32>
    %cst_42 = arith.constant 1.000000e+00 : f32
    %119 = vector.broadcast %cst_42 : f32 to vector<8x32xf32>
    %120 = arith.subf %119, %112 : vector<8x32xf32>
    %121 = arith.mulf %120, %118 : vector<8x32xf32>
    %122 = arith.mulf %112, %90 : vector<8x32xf32>
    %123 = arith.addf %121, %122 : vector<8x32xf32>
    %124 = vector.broadcast %c0_i32_30 : i32 to vector<8x32xi32>
    %125 = arith.cmpi eq, %83, %124 : vector<8x32xi32>
    %126 = arith.select %125, %123, %90 : vector<8x32xi1>, vector<8x32xf32>
    %c1_i32_43 = arith.constant 1 : i32
    %cst_44 = arith.constant dense<0.000000e+00> : vector<8x32xf32>
    %127 = tpu.matmul %123, %84, %cst_44 {dimension_numbers = #tpu.dot_dimension_numbers<[1], [0], [0], [1], [0, 0, 1, 1], [], []>} : vector<8x32xf32>, vector<32x32xf32>, vector<8x32xf32> -> vector<8x32xf32>
    %cst_45 = arith.constant dense<0.000000e+00> : vector<8x32xf32>
    %128 = tpu.matmul %123, %85, %cst_45 {dimension_numbers = #tpu.dot_dimension_numbers<[1], [0], [0], [1], [0, 0, 1, 1], [], []>} : vector<8x32xf32>, vector<32x32xf32>, vector<8x32xf32> -> vector<8x32xf32>
    %cst_46 = arith.constant dense<0.000000e+00> : vector<8x32xf32>
    %129 = tpu.matmul %123, %86, %cst_46 {dimension_numbers = #tpu.dot_dimension_numbers<[1], [0], [0], [1], [0, 0, 1, 1], [], []>} : vector<8x32xf32>, vector<32x32xf32>, vector<8x32xf32> -> vector<8x32xf32>
    %130 = arith.addf %129, %89 : vector<8x32xf32>
    %131 = arith.index_cast %c1_i32_43 : i32 to index
    %c0_47 = arith.constant 0 : index
    %c0_48 = arith.constant 0 : index
    %132 = vector.load %arg10[%131, %c0_47, %c0_48] : memref<8x8x32xf32, #tpu.memory_space<vmem>>, vector<1x8x32xf32>
    %133 = vector.shape_cast %132 : vector<1x8x32xf32> to vector<8x32xf32>
    %134 = arith.addf %133, %127 : vector<8x32xf32>
    %135 = arith.negf %134 : vector<8x32xf32>
    %136 = math.exp %135 : vector<8x32xf32>
    %cst_49 = arith.constant 1.000000e+00 : f32
    %137 = vector.broadcast %cst_49 : f32 to vector<8x32xf32>
    %138 = arith.addf %137, %136 : vector<8x32xf32>
    %139 = arith.divf %137, %138 : vector<8x32xf32>
    %140 = arith.index_cast %c1_i32_43 : i32 to index
    %c0_50 = arith.constant 0 : index
    %c0_51 = arith.constant 0 : index
    %141 = vector.load %arg11[%140, %c0_50, %c0_51] : memref<8x8x32xf32, #tpu.memory_space<vmem>>, vector<1x8x32xf32>
    %142 = vector.shape_cast %141 : vector<1x8x32xf32> to vector<8x32xf32>
    %143 = arith.addf %142, %128 : vector<8x32xf32>
    %144 = arith.negf %143 : vector<8x32xf32>
    %145 = math.exp %144 : vector<8x32xf32>
    %cst_52 = arith.constant 1.000000e+00 : f32
    %146 = vector.broadcast %cst_52 : f32 to vector<8x32xf32>
    %147 = arith.addf %146, %145 : vector<8x32xf32>
    %148 = arith.divf %146, %147 : vector<8x32xf32>
    %149 = arith.index_cast %c1_i32_43 : i32 to index
    %c0_53 = arith.constant 0 : index
    %c0_54 = arith.constant 0 : index
    %150 = vector.load %arg12[%149, %c0_53, %c0_54] : memref<8x8x32xf32, #tpu.memory_space<vmem>>, vector<1x8x32xf32>
    %151 = vector.shape_cast %150 : vector<1x8x32xf32> to vector<8x32xf32>
    %152 = arith.mulf %139, %130 : vector<8x32xf32>
    %153 = arith.addf %151, %152 : vector<8x32xf32>
    %154 = math.tanh %153 : vector<8x32xf32>
    %cst_55 = arith.constant 1.000000e+00 : f32
    %155 = vector.broadcast %cst_55 : f32 to vector<8x32xf32>
    %156 = arith.subf %155, %148 : vector<8x32xf32>
    %157 = arith.mulf %156, %154 : vector<8x32xf32>
    %158 = arith.mulf %148, %123 : vector<8x32xf32>
    %159 = arith.addf %157, %158 : vector<8x32xf32>
    %160 = vector.broadcast %c1_i32_43 : i32 to vector<8x32xi32>
    %161 = arith.cmpi eq, %83, %160 : vector<8x32xi32>
    %162 = arith.select %161, %159, %126 : vector<8x32xi1>, vector<8x32xf32>
    %c2_i32 = arith.constant 2 : i32
    %cst_56 = arith.constant dense<0.000000e+00> : vector<8x32xf32>
    %163 = tpu.matmul %159, %84, %cst_56 {dimension_numbers = #tpu.dot_dimension_numbers<[1], [0], [0], [1], [0, 0, 1, 1], [], []>} : vector<8x32xf32>, vector<32x32xf32>, vector<8x32xf32> -> vector<8x32xf32>
    %cst_57 = arith.constant dense<0.000000e+00> : vector<8x32xf32>
    %164 = tpu.matmul %159, %85, %cst_57 {dimension_numbers = #tpu.dot_dimension_numbers<[1], [0], [0], [1], [0, 0, 1, 1], [], []>} : vector<8x32xf32>, vector<32x32xf32>, vector<8x32xf32> -> vector<8x32xf32>
    %cst_58 = arith.constant dense<0.000000e+00> : vector<8x32xf32>
    %165 = tpu.matmul %159, %86, %cst_58 {dimension_numbers = #tpu.dot_dimension_numbers<[1], [0], [0], [1], [0, 0, 1, 1], [], []>} : vector<8x32xf32>, vector<32x32xf32>, vector<8x32xf32> -> vector<8x32xf32>
    %166 = arith.addf %165, %89 : vector<8x32xf32>
    %167 = arith.index_cast %c2_i32 : i32 to index
    %c0_59 = arith.constant 0 : index
    %c0_60 = arith.constant 0 : index
    %168 = vector.load %arg10[%167, %c0_59, %c0_60] : memref<8x8x32xf32, #tpu.memory_space<vmem>>, vector<1x8x32xf32>
    %169 = vector.shape_cast %168 : vector<1x8x32xf32> to vector<8x32xf32>
    %170 = arith.addf %169, %163 : vector<8x32xf32>
    %171 = arith.negf %170 : vector<8x32xf32>
    %172 = math.exp %171 : vector<8x32xf32>
    %cst_61 = arith.constant 1.000000e+00 : f32
    %173 = vector.broadcast %cst_61 : f32 to vector<8x32xf32>
    %174 = arith.addf %173, %172 : vector<8x32xf32>
    %175 = arith.divf %173, %174 : vector<8x32xf32>
    %176 = arith.index_cast %c2_i32 : i32 to index
    %c0_62 = arith.constant 0 : index
    %c0_63 = arith.constant 0 : index
    %177 = vector.load %arg11[%176, %c0_62, %c0_63] : memref<8x8x32xf32, #tpu.memory_space<vmem>>, vector<1x8x32xf32>
    %178 = vector.shape_cast %177 : vector<1x8x32xf32> to vector<8x32xf32>
    %179 = arith.addf %178, %164 : vector<8x32xf32>
    %180 = arith.negf %179 : vector<8x32xf32>
    %181 = math.exp %180 : vector<8x32xf32>
    %cst_64 = arith.constant 1.000000e+00 : f32
    %182 = vector.broadcast %cst_64 : f32 to vector<8x32xf32>
    %183 = arith.addf %182, %181 : vector<8x32xf32>
    %184 = arith.divf %182, %183 : vector<8x32xf32>
    %185 = arith.index_cast %c2_i32 : i32 to index
    %c0_65 = arith.constant 0 : index
    %c0_66 = arith.constant 0 : index
    %186 = vector.load %arg12[%185, %c0_65, %c0_66] : memref<8x8x32xf32, #tpu.memory_space<vmem>>, vector<1x8x32xf32>
    %187 = vector.shape_cast %186 : vector<1x8x32xf32> to vector<8x32xf32>
    %188 = arith.mulf %175, %166 : vector<8x32xf32>
    %189 = arith.addf %187, %188 : vector<8x32xf32>
    %190 = math.tanh %189 : vector<8x32xf32>
    %cst_67 = arith.constant 1.000000e+00 : f32
    %191 = vector.broadcast %cst_67 : f32 to vector<8x32xf32>
    %192 = arith.subf %191, %184 : vector<8x32xf32>
    %193 = arith.mulf %192, %190 : vector<8x32xf32>
    %194 = arith.mulf %184, %159 : vector<8x32xf32>
    %195 = arith.addf %193, %194 : vector<8x32xf32>
    %196 = vector.broadcast %c2_i32 : i32 to vector<8x32xi32>
    %197 = arith.cmpi eq, %83, %196 : vector<8x32xi32>
    %198 = arith.select %197, %195, %162 : vector<8x32xi1>, vector<8x32xf32>
    %c3_i32 = arith.constant 3 : i32
    %cst_68 = arith.constant dense<0.000000e+00> : vector<8x32xf32>
    %199 = tpu.matmul %195, %84, %cst_68 {dimension_numbers = #tpu.dot_dimension_numbers<[1], [0], [0], [1], [0, 0, 1, 1], [], []>} : vector<8x32xf32>, vector<32x32xf32>, vector<8x32xf32> -> vector<8x32xf32>
    %cst_69 = arith.constant dense<0.000000e+00> : vector<8x32xf32>
    %200 = tpu.matmul %195, %85, %cst_69 {dimension_numbers = #tpu.dot_dimension_numbers<[1], [0], [0], [1], [0, 0, 1, 1], [], []>} : vector<8x32xf32>, vector<32x32xf32>, vector<8x32xf32> -> vector<8x32xf32>
    %cst_70 = arith.constant dense<0.000000e+00> : vector<8x32xf32>
    %201 = tpu.matmul %195, %86, %cst_70 {dimension_numbers = #tpu.dot_dimension_numbers<[1], [0], [0], [1], [0, 0, 1, 1], [], []>} : vector<8x32xf32>, vector<32x32xf32>, vector<8x32xf32> -> vector<8x32xf32>
    %202 = arith.addf %201, %89 : vector<8x32xf32>
    %203 = arith.index_cast %c3_i32 : i32 to index
    %c0_71 = arith.constant 0 : index
    %c0_72 = arith.constant 0 : index
    %204 = vector.load %arg10[%203, %c0_71, %c0_72] : memref<8x8x32xf32, #tpu.memory_space<vmem>>, vector<1x8x32xf32>
    %205 = vector.shape_cast %204 : vector<1x8x32xf32> to vector<8x32xf32>
    %206 = arith.addf %205, %199 : vector<8x32xf32>
    %207 = arith.negf %206 : vector<8x32xf32>
    %208 = math.exp %207 : vector<8x32xf32>
    %cst_73 = arith.constant 1.000000e+00 : f32
    %209 = vector.broadcast %cst_73 : f32 to vector<8x32xf32>
    %210 = arith.addf %209, %208 : vector<8x32xf32>
    %211 = arith.divf %209, %210 : vector<8x32xf32>
    %212 = arith.index_cast %c3_i32 : i32 to index
    %c0_74 = arith.constant 0 : index
    %c0_75 = arith.constant 0 : index
    %213 = vector.load %arg11[%212, %c0_74, %c0_75] : memref<8x8x32xf32, #tpu.memory_space<vmem>>, vector<1x8x32xf32>
    %214 = vector.shape_cast %213 : vector<1x8x32xf32> to vector<8x32xf32>
    %215 = arith.addf %214, %200 : vector<8x32xf32>
    %216 = arith.negf %215 : vector<8x32xf32>
    %217 = math.exp %216 : vector<8x32xf32>
    %cst_76 = arith.constant 1.000000e+00 : f32
    %218 = vector.broadcast %cst_76 : f32 to vector<8x32xf32>
    %219 = arith.addf %218, %217 : vector<8x32xf32>
    %220 = arith.divf %218, %219 : vector<8x32xf32>
    %221 = arith.index_cast %c3_i32 : i32 to index
    %c0_77 = arith.constant 0 : index
    %c0_78 = arith.constant 0 : index
    %222 = vector.load %arg12[%221, %c0_77, %c0_78] : memref<8x8x32xf32, #tpu.memory_space<vmem>>, vector<1x8x32xf32>
    %223 = vector.shape_cast %222 : vector<1x8x32xf32> to vector<8x32xf32>
    %224 = arith.mulf %211, %202 : vector<8x32xf32>
    %225 = arith.addf %223, %224 : vector<8x32xf32>
    %226 = math.tanh %225 : vector<8x32xf32>
    %cst_79 = arith.constant 1.000000e+00 : f32
    %227 = vector.broadcast %cst_79 : f32 to vector<8x32xf32>
    %228 = arith.subf %227, %220 : vector<8x32xf32>
    %229 = arith.mulf %228, %226 : vector<8x32xf32>
    %230 = arith.mulf %220, %195 : vector<8x32xf32>
    %231 = arith.addf %229, %230 : vector<8x32xf32>
    %232 = vector.broadcast %c3_i32 : i32 to vector<8x32xi32>
    %233 = arith.cmpi eq, %83, %232 : vector<8x32xi32>
    %234 = arith.select %233, %231, %198 : vector<8x32xi1>, vector<8x32xf32>
    %c4_i32 = arith.constant 4 : i32
    %cst_80 = arith.constant dense<0.000000e+00> : vector<8x32xf32>
    %235 = tpu.matmul %231, %84, %cst_80 {dimension_numbers = #tpu.dot_dimension_numbers<[1], [0], [0], [1], [0, 0, 1, 1], [], []>} : vector<8x32xf32>, vector<32x32xf32>, vector<8x32xf32> -> vector<8x32xf32>
    %cst_81 = arith.constant dense<0.000000e+00> : vector<8x32xf32>
    %236 = tpu.matmul %231, %85, %cst_81 {dimension_numbers = #tpu.dot_dimension_numbers<[1], [0], [0], [1], [0, 0, 1, 1], [], []>} : vector<8x32xf32>, vector<32x32xf32>, vector<8x32xf32> -> vector<8x32xf32>
    %cst_82 = arith.constant dense<0.000000e+00> : vector<8x32xf32>
    %237 = tpu.matmul %231, %86, %cst_82 {dimension_numbers = #tpu.dot_dimension_numbers<[1], [0], [0], [1], [0, 0, 1, 1], [], []>} : vector<8x32xf32>, vector<32x32xf32>, vector<8x32xf32> -> vector<8x32xf32>
    %238 = arith.addf %237, %89 : vector<8x32xf32>
    %239 = arith.index_cast %c4_i32 : i32 to index
    %c0_83 = arith.constant 0 : index
    %c0_84 = arith.constant 0 : index
    %240 = vector.load %arg10[%239, %c0_83, %c0_84] : memref<8x8x32xf32, #tpu.memory_space<vmem>>, vector<1x8x32xf32>
    %241 = vector.shape_cast %240 : vector<1x8x32xf32> to vector<8x32xf32>
    %242 = arith.addf %241, %235 : vector<8x32xf32>
    %243 = arith.negf %242 : vector<8x32xf32>
    %244 = math.exp %243 : vector<8x32xf32>
    %cst_85 = arith.constant 1.000000e+00 : f32
    %245 = vector.broadcast %cst_85 : f32 to vector<8x32xf32>
    %246 = arith.addf %245, %244 : vector<8x32xf32>
    %247 = arith.divf %245, %246 : vector<8x32xf32>
    %248 = arith.index_cast %c4_i32 : i32 to index
    %c0_86 = arith.constant 0 : index
    %c0_87 = arith.constant 0 : index
    %249 = vector.load %arg11[%248, %c0_86, %c0_87] : memref<8x8x32xf32, #tpu.memory_space<vmem>>, vector<1x8x32xf32>
    %250 = vector.shape_cast %249 : vector<1x8x32xf32> to vector<8x32xf32>
    %251 = arith.addf %250, %236 : vector<8x32xf32>
    %252 = arith.negf %251 : vector<8x32xf32>
    %253 = math.exp %252 : vector<8x32xf32>
    %cst_88 = arith.constant 1.000000e+00 : f32
    %254 = vector.broadcast %cst_88 : f32 to vector<8x32xf32>
    %255 = arith.addf %254, %253 : vector<8x32xf32>
    %256 = arith.divf %254, %255 : vector<8x32xf32>
    %257 = arith.index_cast %c4_i32 : i32 to index
    %c0_89 = arith.constant 0 : index
    %c0_90 = arith.constant 0 : index
    %258 = vector.load %arg12[%257, %c0_89, %c0_90] : memref<8x8x32xf32, #tpu.memory_space<vmem>>, vector<1x8x32xf32>
    %259 = vector.shape_cast %258 : vector<1x8x32xf32> to vector<8x32xf32>
    %260 = arith.mulf %247, %238 : vector<8x32xf32>
    %261 = arith.addf %259, %260 : vector<8x32xf32>
    %262 = math.tanh %261 : vector<8x32xf32>
    %cst_91 = arith.constant 1.000000e+00 : f32
    %263 = vector.broadcast %cst_91 : f32 to vector<8x32xf32>
    %264 = arith.subf %263, %256 : vector<8x32xf32>
    %265 = arith.mulf %264, %262 : vector<8x32xf32>
    %266 = arith.mulf %256, %231 : vector<8x32xf32>
    %267 = arith.addf %265, %266 : vector<8x32xf32>
    %268 = vector.broadcast %c4_i32 : i32 to vector<8x32xi32>
    %269 = arith.cmpi eq, %83, %268 : vector<8x32xi32>
    %270 = arith.select %269, %267, %234 : vector<8x32xi1>, vector<8x32xf32>
    %c5_i32 = arith.constant 5 : i32
    %cst_92 = arith.constant dense<0.000000e+00> : vector<8x32xf32>
    %271 = tpu.matmul %267, %84, %cst_92 {dimension_numbers = #tpu.dot_dimension_numbers<[1], [0], [0], [1], [0, 0, 1, 1], [], []>} : vector<8x32xf32>, vector<32x32xf32>, vector<8x32xf32> -> vector<8x32xf32>
    %cst_93 = arith.constant dense<0.000000e+00> : vector<8x32xf32>
    %272 = tpu.matmul %267, %85, %cst_93 {dimension_numbers = #tpu.dot_dimension_numbers<[1], [0], [0], [1], [0, 0, 1, 1], [], []>} : vector<8x32xf32>, vector<32x32xf32>, vector<8x32xf32> -> vector<8x32xf32>
    %cst_94 = arith.constant dense<0.000000e+00> : vector<8x32xf32>
    %273 = tpu.matmul %267, %86, %cst_94 {dimension_numbers = #tpu.dot_dimension_numbers<[1], [0], [0], [1], [0, 0, 1, 1], [], []>} : vector<8x32xf32>, vector<32x32xf32>, vector<8x32xf32> -> vector<8x32xf32>
    %274 = arith.addf %273, %89 : vector<8x32xf32>
    %275 = arith.index_cast %c5_i32 : i32 to index
    %c0_95 = arith.constant 0 : index
    %c0_96 = arith.constant 0 : index
    %276 = vector.load %arg10[%275, %c0_95, %c0_96] : memref<8x8x32xf32, #tpu.memory_space<vmem>>, vector<1x8x32xf32>
    %277 = vector.shape_cast %276 : vector<1x8x32xf32> to vector<8x32xf32>
    %278 = arith.addf %277, %271 : vector<8x32xf32>
    %279 = arith.negf %278 : vector<8x32xf32>
    %280 = math.exp %279 : vector<8x32xf32>
    %cst_97 = arith.constant 1.000000e+00 : f32
    %281 = vector.broadcast %cst_97 : f32 to vector<8x32xf32>
    %282 = arith.addf %281, %280 : vector<8x32xf32>
    %283 = arith.divf %281, %282 : vector<8x32xf32>
    %284 = arith.index_cast %c5_i32 : i32 to index
    %c0_98 = arith.constant 0 : index
    %c0_99 = arith.constant 0 : index
    %285 = vector.load %arg11[%284, %c0_98, %c0_99] : memref<8x8x32xf32, #tpu.memory_space<vmem>>, vector<1x8x32xf32>
    %286 = vector.shape_cast %285 : vector<1x8x32xf32> to vector<8x32xf32>
    %287 = arith.addf %286, %272 : vector<8x32xf32>
    %288 = arith.negf %287 : vector<8x32xf32>
    %289 = math.exp %288 : vector<8x32xf32>
    %cst_100 = arith.constant 1.000000e+00 : f32
    %290 = vector.broadcast %cst_100 : f32 to vector<8x32xf32>
    %291 = arith.addf %290, %289 : vector<8x32xf32>
    %292 = arith.divf %290, %291 : vector<8x32xf32>
    %293 = arith.index_cast %c5_i32 : i32 to index
    %c0_101 = arith.constant 0 : index
    %c0_102 = arith.constant 0 : index
    %294 = vector.load %arg12[%293, %c0_101, %c0_102] : memref<8x8x32xf32, #tpu.memory_space<vmem>>, vector<1x8x32xf32>
    %295 = vector.shape_cast %294 : vector<1x8x32xf32> to vector<8x32xf32>
    %296 = arith.mulf %283, %274 : vector<8x32xf32>
    %297 = arith.addf %295, %296 : vector<8x32xf32>
    %298 = math.tanh %297 : vector<8x32xf32>
    %cst_103 = arith.constant 1.000000e+00 : f32
    %299 = vector.broadcast %cst_103 : f32 to vector<8x32xf32>
    %300 = arith.subf %299, %292 : vector<8x32xf32>
    %301 = arith.mulf %300, %298 : vector<8x32xf32>
    %302 = arith.mulf %292, %267 : vector<8x32xf32>
    %303 = arith.addf %301, %302 : vector<8x32xf32>
    %304 = vector.broadcast %c5_i32 : i32 to vector<8x32xi32>
    %305 = arith.cmpi eq, %83, %304 : vector<8x32xi32>
    %306 = arith.select %305, %303, %270 : vector<8x32xi1>, vector<8x32xf32>
    %c6_i32 = arith.constant 6 : i32
    %cst_104 = arith.constant dense<0.000000e+00> : vector<8x32xf32>
    %307 = tpu.matmul %303, %84, %cst_104 {dimension_numbers = #tpu.dot_dimension_numbers<[1], [0], [0], [1], [0, 0, 1, 1], [], []>} : vector<8x32xf32>, vector<32x32xf32>, vector<8x32xf32> -> vector<8x32xf32>
    %cst_105 = arith.constant dense<0.000000e+00> : vector<8x32xf32>
    %308 = tpu.matmul %303, %85, %cst_105 {dimension_numbers = #tpu.dot_dimension_numbers<[1], [0], [0], [1], [0, 0, 1, 1], [], []>} : vector<8x32xf32>, vector<32x32xf32>, vector<8x32xf32> -> vector<8x32xf32>
    %cst_106 = arith.constant dense<0.000000e+00> : vector<8x32xf32>
    %309 = tpu.matmul %303, %86, %cst_106 {dimension_numbers = #tpu.dot_dimension_numbers<[1], [0], [0], [1], [0, 0, 1, 1], [], []>} : vector<8x32xf32>, vector<32x32xf32>, vector<8x32xf32> -> vector<8x32xf32>
    %310 = arith.addf %309, %89 : vector<8x32xf32>
    %311 = arith.index_cast %c6_i32 : i32 to index
    %c0_107 = arith.constant 0 : index
    %c0_108 = arith.constant 0 : index
    %312 = vector.load %arg10[%311, %c0_107, %c0_108] : memref<8x8x32xf32, #tpu.memory_space<vmem>>, vector<1x8x32xf32>
    %313 = vector.shape_cast %312 : vector<1x8x32xf32> to vector<8x32xf32>
    %314 = arith.addf %313, %307 : vector<8x32xf32>
    %315 = arith.negf %314 : vector<8x32xf32>
    %316 = math.exp %315 : vector<8x32xf32>
    %cst_109 = arith.constant 1.000000e+00 : f32
    %317 = vector.broadcast %cst_109 : f32 to vector<8x32xf32>
    %318 = arith.addf %317, %316 : vector<8x32xf32>
    %319 = arith.divf %317, %318 : vector<8x32xf32>
    %320 = arith.index_cast %c6_i32 : i32 to index
    %c0_110 = arith.constant 0 : index
    %c0_111 = arith.constant 0 : index
    %321 = vector.load %arg11[%320, %c0_110, %c0_111] : memref<8x8x32xf32, #tpu.memory_space<vmem>>, vector<1x8x32xf32>
    %322 = vector.shape_cast %321 : vector<1x8x32xf32> to vector<8x32xf32>
    %323 = arith.addf %322, %308 : vector<8x32xf32>
    %324 = arith.negf %323 : vector<8x32xf32>
    %325 = math.exp %324 : vector<8x32xf32>
    %cst_112 = arith.constant 1.000000e+00 : f32
    %326 = vector.broadcast %cst_112 : f32 to vector<8x32xf32>
    %327 = arith.addf %326, %325 : vector<8x32xf32>
    %328 = arith.divf %326, %327 : vector<8x32xf32>
    %329 = arith.index_cast %c6_i32 : i32 to index
    %c0_113 = arith.constant 0 : index
    %c0_114 = arith.constant 0 : index
    %330 = vector.load %arg12[%329, %c0_113, %c0_114] : memref<8x8x32xf32, #tpu.memory_space<vmem>>, vector<1x8x32xf32>
    %331 = vector.shape_cast %330 : vector<1x8x32xf32> to vector<8x32xf32>
    %332 = arith.mulf %319, %310 : vector<8x32xf32>
    %333 = arith.addf %331, %332 : vector<8x32xf32>
    %334 = math.tanh %333 : vector<8x32xf32>
    %cst_115 = arith.constant 1.000000e+00 : f32
    %335 = vector.broadcast %cst_115 : f32 to vector<8x32xf32>
    %336 = arith.subf %335, %328 : vector<8x32xf32>
    %337 = arith.mulf %336, %334 : vector<8x32xf32>
    %338 = arith.mulf %328, %303 : vector<8x32xf32>
    %339 = arith.addf %337, %338 : vector<8x32xf32>
    %340 = vector.broadcast %c6_i32 : i32 to vector<8x32xi32>
    %341 = arith.cmpi eq, %83, %340 : vector<8x32xi32>
    %342 = arith.select %341, %339, %306 : vector<8x32xi1>, vector<8x32xf32>
    %c7_i32_116 = arith.constant 7 : i32
    %cst_117 = arith.constant dense<0.000000e+00> : vector<8x32xf32>
    %343 = tpu.matmul %339, %84, %cst_117 {dimension_numbers = #tpu.dot_dimension_numbers<[1], [0], [0], [1], [0, 0, 1, 1], [], []>} : vector<8x32xf32>, vector<32x32xf32>, vector<8x32xf32> -> vector<8x32xf32>
    %cst_118 = arith.constant dense<0.000000e+00> : vector<8x32xf32>
    %344 = tpu.matmul %339, %85, %cst_118 {dimension_numbers = #tpu.dot_dimension_numbers<[1], [0], [0], [1], [0, 0, 1, 1], [], []>} : vector<8x32xf32>, vector<32x32xf32>, vector<8x32xf32> -> vector<8x32xf32>
    %cst_119 = arith.constant dense<0.000000e+00> : vector<8x32xf32>
    %345 = tpu.matmul %339, %86, %cst_119 {dimension_numbers = #tpu.dot_dimension_numbers<[1], [0], [0], [1], [0, 0, 1, 1], [], []>} : vector<8x32xf32>, vector<32x32xf32>, vector<8x32xf32> -> vector<8x32xf32>
    %346 = arith.addf %345, %89 : vector<8x32xf32>
    %347 = arith.index_cast %c7_i32_116 : i32 to index
    %c0_120 = arith.constant 0 : index
    %c0_121 = arith.constant 0 : index
    %348 = vector.load %arg10[%347, %c0_120, %c0_121] : memref<8x8x32xf32, #tpu.memory_space<vmem>>, vector<1x8x32xf32>
    %349 = vector.shape_cast %348 : vector<1x8x32xf32> to vector<8x32xf32>
    %350 = arith.addf %349, %343 : vector<8x32xf32>
    %351 = arith.negf %350 : vector<8x32xf32>
    %352 = math.exp %351 : vector<8x32xf32>
    %cst_122 = arith.constant 1.000000e+00 : f32
    %353 = vector.broadcast %cst_122 : f32 to vector<8x32xf32>
    %354 = arith.addf %353, %352 : vector<8x32xf32>
    %355 = arith.divf %353, %354 : vector<8x32xf32>
    %356 = arith.index_cast %c7_i32_116 : i32 to index
    %c0_123 = arith.constant 0 : index
    %c0_124 = arith.constant 0 : index
    %357 = vector.load %arg11[%356, %c0_123, %c0_124] : memref<8x8x32xf32, #tpu.memory_space<vmem>>, vector<1x8x32xf32>
    %358 = vector.shape_cast %357 : vector<1x8x32xf32> to vector<8x32xf32>
    %359 = arith.addf %358, %344 : vector<8x32xf32>
    %360 = arith.negf %359 : vector<8x32xf32>
    %361 = math.exp %360 : vector<8x32xf32>
    %cst_125 = arith.constant 1.000000e+00 : f32
    %362 = vector.broadcast %cst_125 : f32 to vector<8x32xf32>
    %363 = arith.addf %362, %361 : vector<8x32xf32>
    %364 = arith.divf %362, %363 : vector<8x32xf32>
    %365 = arith.index_cast %c7_i32_116 : i32 to index
    %c0_126 = arith.constant 0 : index
    %c0_127 = arith.constant 0 : index
    %366 = vector.load %arg12[%365, %c0_126, %c0_127] : memref<8x8x32xf32, #tpu.memory_space<vmem>>, vector<1x8x32xf32>
    %367 = vector.shape_cast %366 : vector<1x8x32xf32> to vector<8x32xf32>
    %368 = arith.mulf %355, %346 : vector<8x32xf32>
    %369 = arith.addf %367, %368 : vector<8x32xf32>
    %370 = math.tanh %369 : vector<8x32xf32>
    %cst_128 = arith.constant 1.000000e+00 : f32
    %371 = vector.broadcast %cst_128 : f32 to vector<8x32xf32>
    %372 = arith.subf %371, %364 : vector<8x32xf32>
    %373 = arith.mulf %372, %370 : vector<8x32xf32>
    %374 = arith.mulf %364, %339 : vector<8x32xf32>
    %375 = arith.addf %373, %374 : vector<8x32xf32>
    %376 = vector.broadcast %c7_i32_116 : i32 to vector<8x32xi32>
    %377 = arith.cmpi eq, %83, %376 : vector<8x32xi32>
    %378 = arith.select %377, %375, %342 : vector<8x32xi1>, vector<8x32xf32>
    %c8_i32_129 = arith.constant 8 : i32
    %c0_130 = arith.constant 0 : index
    %c0_131 = arith.constant 0 : index
    %379 = vector.load %arg9[%c0_130, %c0_131] : memref<8x32xf32, #tpu.memory_space<vmem>>, vector<8x32xf32>
    tpu.vector_store %arg9[%c0_130, %c0_131], %378 {strides = array<i32>} : memref<8x32xf32, #tpu.memory_space<vmem>>, vector<8x32xf32>,
    return
  }
  func.func @transform_0(%arg0: i32) -> (i32, i32, i32) {
    %c0_i32 = arith.constant 0 : i32
    %c0_i32_0 = arith.constant 0 : i32
    %c0_i32_1 = arith.constant 0 : i32
    return %arg0, %c0_i32, %c0_i32_0 : i32, i32, i32
  }
  func.func @transform_1(%arg0: i32) -> (i32, i32, i32) {
    %c0_i32 = arith.constant 0 : i32
    %c0_i32_0 = arith.constant 0 : i32
    %c0_i32_1 = arith.constant 0 : i32
    return %arg0, %c0_i32, %c0_i32_0 : i32, i32, i32
  }
  func.func @transform_2(%arg0: i32) -> (i32, i32) {
    %c0_i32 = arith.constant 0 : i32
    %c0_i32_0 = arith.constant 0 : i32
    %c0_i32_1 = arith.constant 0 : i32
    return %c0_i32, %c0_i32_0 : i32, i32
  }
  func.func @transform_3(%arg0: i32) -> (i32, i32) {
    %c0_i32 = arith.constant 0 : i32
    %c0_i32_0 = arith.constant 0 : i32
    %c0_i32_1 = arith.constant 0 : i32
    return %c0_i32, %c0_i32_0 : i32, i32
  }
  func.func @transform_4(%arg0: i32) -> (i32, i32) {
    %c0_i32 = arith.constant 0 : i32
    %c0_i32_0 = arith.constant 0 : i32
    %c0_i32_1 = arith.constant 0 : i32
    return %c0_i32, %c0_i32_0 : i32, i32
  }
  func.func @transform_5(%arg0: i32) -> (i32, i32) {
    %c0_i32 = arith.constant 0 : i32
    %c0_i32_0 = arith.constant 0 : i32
    %c0_i32_1 = arith.constant 0 : i32
    return %c0_i32, %c0_i32_0 : i32, i32
  }
  func.func @transform_6(%arg0: i32) -> (i32, i32) {
    %c0_i32 = arith.constant 0 : i32
    %c0_i32_0 = arith.constant 0 : i32
    %c0_i32_1 = arith.constant 0 : i32
    return %c0_i32, %c0_i32_0 : i32, i32
  }
  func.func @transform_7(%arg0: i32) -> (i32, i32) {
    %c0_i32 = arith.constant 0 : i32
    %c0_i32_0 = arith.constant 0 : i32
    %c0_i32_1 = arith.constant 0 : i32
    return %c0_i32, %c0_i32_0 : i32, i32
  }
  func.func @transform_8(%arg0: i32) -> (i32, i32) {
    %c0_i32 = arith.constant 0 : i32
    %c0_i32_0 = arith.constant 0 : i32
    return %arg0, %c0_i32 : i32, i32
  }
}

</mosaic_0001>

<llo_original>
// kernel: tpu_custom_call.1
$region0: #{tpu_custom_call.1}
  #allocation0 [shape = 'u32[]', space=smem, size = 0x4, offset = 0x4, fixed_abs, tag = 'smem constant byte address 0x4 - core index']
  #allocation1 [shape = 'u32[144,128]{1,0:T(1,128)}', space=vmem, size = 0x12000, scoped, tag = 'internal scratch']
  #allocation2 [shape = 'f32[8,8,32]{2,1,0:T(8,128)}', space=vmem, size = 0x8000, scoped, tag = 'scratch operand']
  #allocation3 [shape = 'f32[8,8,32]{2,1,0:T(8,128)}', space=vmem, size = 0x8000, scoped, tag = 'scratch operand']
  #allocation4 [shape = 'f32[8,8,32]{2,1,0:T(8,128)}', space=vmem, size = 0x8000, scoped, tag = 'scratch operand']
  %s0 = inlined_call_operand.hbm [shape: f32[2,8,32], index: 0, kind: input, shape index: {}]
  %s1 = inlined_call_operand.hbm [shape: f32[2,8,8], index: 1, kind: input, shape index: {}]
  %s2 = inlined_call_operand.hbm [shape: f32[64,96], index: 2, kind: input, shape index: {}]
  %s3 = inlined_call_operand.vmem [shape: f32[1,96], index: 3, kind: input, shape index: {}]
  %s4 = inlined_call_operand.hbm [shape: f32[32,32], index: 4, kind: input, shape index: {}]
  %s5 = inlined_call_operand.hbm [shape: f32[32,32], index: 5, kind: input, shape index: {}]
  %s6 = inlined_call_operand.hbm [shape: f32[32,32], index: 6, kind: input, shape index: {}]
  %s7 = inlined_call_operand.vmem [shape: f32[1,32], index: 7, kind: input, shape index: {}]
  %s8 = inlined_call_operand.hbm [shape: f32[16,32], index: 8, kind: output, shape index: {}]
  %s9 = sld [smem:[#allocation0]]
  $region89: #{tpu_custom_call.1} parent=0
    _
  %s11 = ssub.s32 1, %s9
  %s12 = scalar_select 0, %s11, %s9
  $region1: #{tpu_custom_call.1} parent=0
    #allocation5 [shape = 'u8[8192]{0}', space=vmem, size = 0x2000, scoped, tag = 'input window, operand 0']
    #allocation6 [shape = 's32[2]{0}', space=sflag, size = 0x8, scoped, tag = 'scoped memory for tpu_custom_call.1']
    #allocation7 [shape = 's32[2]{0}', space=sflag, size = 0x8, scoped, tag = 'scoped memory for tpu_custom_call.1']
    #allocation8 [shape = 'u8[8192]{0}', space=vmem, size = 0x2000, scoped, tag = 'input window, operand 1']
    #allocation9 [shape = 's32[2]{0}', space=sflag, size = 0x8, scoped, tag = 'scoped memory for tpu_custom_call.1']
    #allocation10 [shape = 'u8[32768]{0}', space=vmem, size = 0x8000, scoped, tag = 'input window, operand 2, single buffered']
    #allocation11 [shape = 'u8[16384]{0}', space=vmem, size = 0x4000, scoped, tag = 'input window, operand 4, single buffered']
    #allocation12 [shape = 's32[1]{0}', space=sflag, size = 0x4, scoped, tag = 'scoped memory for tpu_custom_call.1']
    #allocation13 [shape = 'u8[16384]{0}', space=vmem, size = 0x4000, scoped, tag = 'input window, operand 5, single buffered']
    #allocation14 [shape = 'u8[16384]{0}', space=vmem, size = 0x4000, scoped, tag = 'input window, operand 6, single buffered']
    #allocation15 [shape = 's32[1]{0}', space=sflag, size = 0x4, scoped, tag = 'scoped memory for tpu_custom_call.1']
    #allocation16 [shape = 'u8[8192]{0}', space=vmem, size = 0x2000, scoped, tag = 'output window, operand 0']
    %13 = vsyncpa [#allocation6], 0
    %s14 = scalar_lea.sflag [#allocation6], 1
    %15 = vsyncpa %s14, 0
    %16 = vsyncpa [#allocation9], 0
    %s17 = scalar_lea.sflag [#allocation9], 1
    %18 = vsyncpa %s17, 0
    %19 = vsyncpa [#allocation12], 0
    %20 = vsyncpa [#allocation15], 0
    %21 = vsyncpa [#allocation7], 0
    %s22 = scalar_lea.sflag [#allocation7], 1
    %23 = vsyncpa %s22, 0
    loop: start=0, step=1, limit=4
    $region2: #{tpu_custom_call.1} parent=1 // loop_pre_header
      _
    $region3: #{tpu_custom_call.1} parent=1 // loop_header
      %s25 = sphi 0, %s29
      %p26 = scmp.ge.s32.totalorder %s25, 4
      %s35 = sphi 0, %s37
      %s38 = sphi 0, %s35
      %s39 = sphi 0, %s38
      %s55 = sphi 0, %s39
      %s61 = sphi 0, %s63
      %s64 = sphi 0, %s61
      %s65 = sphi 0, %s64
      %s81 = sphi 0, %s65
      %s85 = sphi 0, %s85
      %s87 = sphi 0, %s85
      %s88 = sphi 0, %s87
      %s102 = sphi 0, %s88
      %s106 = sphi 0, %s106
      %s108 = sphi 0, %s106
      %s109 = sphi 0, %s108
      %s123 = sphi 0, %s109
      %s127 = sphi 0, %s127
      %s129 = sphi 0, %s127
      %s130 = sphi 0, %s129
      %s144 = sphi 0, %s130
      %s148 = sphi 0, %s148
      %s150 = sphi 0, %s148
      %s151 = sphi 0, %s150
      %s165 = sphi 0, %s151
      %s169 = sphi 0, %s169
      %s171 = sphi 0, %s169
      %s172 = sphi 0, %s171
      %s186 = sphi 0, %s172
      %s190 = sphi 0, %s190
      %s192 = sphi 0, %s190
      %s193 = sphi 0, %s192
      %s207 = sphi 0, %s193
      %s213 = sphi 0, %s215
      %s216 = sphi 0, %s213
      %s217 = sphi 0, %s216
      %s233 = sphi 0, %s217
    $region4: #{tpu_custom_call.1} parent=1 // loop_header_branch
      %28 = sbr.rel (%p26) target = $region8
    $region5: #{tpu_custom_call.1} parent=1 // loop_body
      %s30 = ssub.s32 %s25, 1
      %s31 = ssub.s32 %s25, 2
      %s32 = sadd.s32 %s25, 1
      %s33 = ssub.s32 %s25, %s32
      %p34 = scmp.eq.s32.totalorder %s33, 0
      %s36 = sadd.s32 %s35, 1
      %s37 = scalar_select %p34, %s35, %s36
      %p40 = pneg %p34
      %p41 = scmp.eq.s32.totalorder %s25, 1
      %p42 = por %p40, %p41
      %p43 = scmp.ne.s32.totalorder %s35, %s38
      %p44 = scmp.eq.s32.totalorder %s25, 0
      %p45 = por %p43, %p44
      %p46 = scmp.ne.s32.totalorder %s35, %s38
      %p47 = scmp.eq.s32.totalorder %s30, 1
      %p48 = por %p46, %p47
      %p49 = scmp.ne.s32.totalorder %s38, %s39
      %p50 = scmp.eq.s32.totalorder %s30, 0
      %p51 = por %p49, %p50
      %p52 = scmp.ne.s32.totalorder %s38, %s39
      %p53 = scmp.eq.s32.totalorder %s31, 1
      %p54 = por %p52, %p53
      %p56 = scmp.ne.s32.totalorder %s39, %s55
      %p57 = scmp.eq.s32.totalorder %s31, 0
      %p58 = por %p56, %p57
      %s59 = ssub.s32 %s25, %s32
      %p60 = scmp.eq.s32.totalorder %s59, 0
      %s62 = sadd.s32 %s61, 1
      %s63 = scalar_select %p60, %s61, %s62
      %p66 = pneg %p60
      %p67 = scmp.eq.s32.totalorder %s25, 1
      %p68 = por %p66, %p67
      %p69 = scmp.ne.s32.totalorder %s61, %s64
      %p70 = scmp.eq.s32.totalorder %s25, 0
      %p71 = por %p69, %p70
      %p72 = scmp.ne.s32.totalorder %s61, %s64
      %p73 = scmp.eq.s32.totalorder %s30, 1
      %p74 = por %p72, %p73
      %p75 = scmp.ne.s32.totalorder %s64, %s65
      %p76 = scmp.eq.s32.totalorder %s30, 0
      %p77 = por %p75, %p76
      %p78 = scmp.ne.s32.totalorder %s64, %s65
      %p79 = scmp.eq.s32.totalorder %s31, 1
      %p80 = por %p78, %p79
      %p82 = scmp.ne.s32.totalorder %s65, %s81
      %p83 = scmp.eq.s32.totalorder %s31, 0
      %p84 = por %p82, %p83
      %s86 = sadd.s32 %s85, 1
      %p89 = scmp.eq.s32.totalorder %s25, 1
      %p90 = scmp.ne.s32.totalorder %s85, %s87
      %p91 = scmp.eq.s32.totalorder %s25, 0
      %p92 = por %p90, %p91
      %p93 = scmp.ne.s32.totalorder %s85, %s87
      %p94 = scmp.eq.s32.totalorder %s30, 1
      %p95 = por %p93, %p94
      %p96 = scmp.ne.s32.totalorder %s87, %s88
      %p97 = scmp.eq.s32.totalorder %s30, 0
      %p98 = por %p96, %p97
      %p99 = scmp.ne.s32.totalorder %s87, %s88
      %p100 = scmp.eq.s32.totalorder %s31, 1
      %p101 = por %p99, %p100
      %p103 = scmp.ne.s32.totalorder %s88, %s102
      %p104 = scmp.eq.s32.totalorder %s31, 0
      %p105 = por %p103, %p104
      %s107 = sadd.s32 %s106, 1
      %p110 = scmp.eq.s32.totalorder %s25, 1
      %p111 = scmp.ne.s32.totalorder %s106, %s108
      %p112 = scmp.eq.s32.totalorder %s25, 0
      %p113 = por %p111, %p112
      %p114 = scmp.ne.s32.totalorder %s106, %s108
      %p115 = scmp.eq.s32.totalorder %s30, 1
      %p116 = por %p114, %p115
      %p117 = scmp.ne.s32.totalorder %s108, %s109
      %p118 = scmp.eq.s32.totalorder %s30, 0
      %p119 = por %p117, %p118
      %p120 = scmp.ne.s32.totalorder %s108, %s109
      %p121 = scmp.eq.s32.totalorder %s31, 1
      %p122 = por %p120, %p121
      %p124 = scmp.ne.s32.totalorder %s109, %s123
      %p125 = scmp.eq.s32.totalorder %s31, 0
      %p126 = por %p124, %p125
      %s128 = sadd.s32 %s127, 1
      %p131 = scmp.eq.s32.totalorder %s25, 1
      %p132 = scmp.ne.s32.totalorder %s127, %s129
      %p133 = scmp.eq.s32.totalorder %s25, 0
      %p134 = por %p132, %p133
      %p135 = scmp.ne.s32.totalorder %s127, %s129
      %p136 = scmp.eq.s32.totalorder %s30, 1
      %p137 = por %p135, %p136
      %p138 = scmp.ne.s32.totalorder %s129, %s130
      %p139 = scmp.eq.s32.totalorder %s30, 0
      %p140 = por %p138, %p139
      %p141 = scmp.ne.s32.totalorder %s129, %s130
      %p142 = scmp.eq.s32.totalorder %s31, 1
      %p143 = por %p141, %p142
      %p145 = scmp.ne.s32.totalorder %s130, %s144
      %p146 = scmp.eq.s32.totalorder %s31, 0
      %p147 = por %p145, %p146
      %s149 = sadd.s32 %s148, 1
      %p152 = scmp.eq.s32.totalorder %s25, 1
      %p153 = scmp.ne.s32.totalorder %s148, %s150
      %p154 = scmp.eq.s32.totalorder %s25, 0
      %p155 = por %p153, %p154
      %p156 = scmp.ne.s32.totalorder %s148, %s150
      %p157 = scmp.eq.s32.totalorder %s30, 1
      %p158 = por %p156, %p157
      %p159 = scmp.ne.s32.totalorder %s150, %s151
      %p160 = scmp.eq.s32.totalorder %s30, 0
      %p161 = por %p159, %p160
      %p162 = scmp.ne.s32.totalorder %s150, %s151
      %p163 = scmp.eq.s32.totalorder %s31, 1
      %p164 = por %p162, %p163
      %p166 = scmp.ne.s32.totalorder %s151, %s165
      %p167 = scmp.eq.s32.totalorder %s31, 0
      %p168 = por %p166, %p167
      %s170 = sadd.s32 %s169, 1
      %p173 = scmp.eq.s32.totalorder %s25, 1
      %p174 = scmp.ne.s32.totalorder %s169, %s171
      %p175 = scmp.eq.s32.totalorder %s25, 0
      %p176 = por %p174, %p175
      %p177 = scmp.ne.s32.totalorder %s169, %s171
      %p178 = scmp.eq.s32.totalorder %s30, 1
      %p179 = por %p177, %p178
      %p180 = scmp.ne.s32.totalorder %s171, %s172
      %p181 = scmp.eq.s32.totalorder %s30, 0
      %p182 = por %p180, %p181
      %p183 = scmp.ne.s32.totalorder %s171, %s172
      %p184 = scmp.eq.s32.totalorder %s31, 1
      %p185 = por %p183, %p184
      %p187 = scmp.ne.s32.totalorder %s172, %s186
      %p188 = scmp.eq.s32.totalorder %s31, 0
      %p189 = por %p187, %p188
      %s191 = sadd.s32 %s190, 1
      %p194 = scmp.eq.s32.totalorder %s25, 1
      %p195 = scmp.ne.s32.totalorder %s190, %s192
      %p196 = scmp.eq.s32.totalorder %s25, 0
      %p197 = por %p195, %p196
      %p198 = scmp.ne.s32.totalorder %s190, %s192
      %p199 = scmp.eq.s32.totalorder %s30, 1
      %p200 = por %p198, %p199
      %p201 = scmp.ne.s32.totalorder %s192, %s193
      %p202 = scmp.eq.s32.totalorder %s30, 0
      %p203 = por %p201, %p202
      %p204 = scmp.ne.s32.totalorder %s192, %s193
      %p205 = scmp.eq.s32.totalorder %s31, 1
      %p206 = por %p204, %p205
      %p208 = scmp.ne.s32.totalorder %s193, %s207
      %p209 = scmp.eq.s32.totalorder %s31, 0
      %p210 = por %p208, %p209
      %s211 = ssub.s32 %s25, %s32
      %p212 = scmp.eq.s32.totalorder %s211, 0
      %s214 = sadd.s32 %s213, 1
      %s215 = scalar_select %p212, %s213, %s214
      %p218 = pneg %p212
      %p219 = scmp.eq.s32.totalorder %s25, 1
      %p220 = por %p218, %p219
      %p221 = scmp.ne.s32.totalorder %s213, %s216
      %p222 = scmp.eq.s32.totalorder %s25, 0
      %p223 = por %p221, %p222
      %p224 = scmp.ne.s32.totalorder %s213, %s216
      %p225 = scmp.eq.s32.totalorder %s30, 1
      %p226 = por %p224, %p225
      %p227 = scmp.ne.s32.totalorder %s216, %s217
      %p228 = scmp.eq.s32.totalorder %s30, 0
      %p229 = por %p227, %p228
      %p230 = scmp.ne.s32.totalorder %s216, %s217
      %p231 = scmp.eq.s32.totalorder %s31, 1
      %p232 = por %p230, %p231
      %p234 = scmp.ne.s32.totalorder %s217, %s233
      %p235 = scmp.eq.s32.totalorder %s31, 0
      %p236 = por %p234, %p235
      %p237 = scmp.le.s32.totalorder 1, %s25
      %p238 = scmp.lt.s32.totalorder %s25, 3
      %p239 = pnand %p237, %p238
      %p240 = pneg %p239
      // Predicated region
      $region9: #{tpu_custom_call.1} parent=5 // pred_check
        _
      $region10: #{tpu_custom_call.1} parent=5 // pred_check_branch
        %242 = sbr.rel (%p239) target = $region12
      $region11: #{tpu_custom_call.1} parent=5 // pred_region
        %s243 = ssub.s32 %s25, 1
        // Predicated region
        $region13: #{tpu_custom_call.1} parent=11 // pred_check
          %p244 = pneg %p98
        $region14: #{tpu_custom_call.1} parent=11 // pred_check_branch
          %246 = sbr.rel (%p244) target = $region16
        $region15: #{tpu_custom_call.1} parent=11 // pred_region
          %s248 = ssub.s32 1024, 1024
          %249 = vsyncadd [#allocation9], %s248
          %s250 = sshll.u32 [#allocation10], 4
          %s251 = int_to_ptr.vmem [resolvable:$true] %s250
          %256 = dma.hbm_to_vmem [thread:$0]  %s2, 1024, %s251, [#allocation9], 128, 128, 8
        $region16: #{tpu_custom_call.1} parent=11 // pred_fallthru
          _
        // Predicated region
        $region17: #{tpu_custom_call.1} parent=11 // pred_check
          %p257 = pneg %p119
        $region18: #{tpu_custom_call.1} parent=11 // pred_check_branch
          %259 = sbr.rel (%p257) target = $region20
        $region19: #{tpu_custom_call.1} parent=11 // pred_region
          _
        $region20: #{tpu_custom_call.1} parent=11 // pred_fallthru
          _
        // Predicated region
        $region21: #{tpu_custom_call.1} parent=11 // pred_check
          %p260 = pneg %p140
        $region22: #{tpu_custom_call.1} parent=11 // pred_check_branch
          %262 = sbr.rel (%p260) target = $region24
        $region23: #{tpu_custom_call.1} parent=11 // pred_region
          %s264 = ssub.s32 512, 512
          %265 = vsyncadd [#allocation12], %s264
          %s266 = sshll.u32 [#allocation11], 4
          %s267 = int_to_ptr.vmem [resolvable:$true] %s266
          %272 = dma.hbm_to_vmem [thread:$0]  %s4, 512, %s267, [#allocation12], 128, 128, 8
        $region24: #{tpu_custom_call.1} parent=11 // pred_fallthru
          _
        // Predicated region
        $region25: #{tpu_custom_call.1} parent=11 // pred_check
          %p273 = pneg %p161
        $region26: #{tpu_custom_call.1} parent=11 // pred_check_branch
          %275 = sbr.rel (%p273) target = $region28
        $region27: #{tpu_custom_call.1} parent=11 // pred_region
          %s277 = ssub.s32 512, 512
          %278 = vsyncadd [#allocation12], %s277
          %s279 = sshll.u32 [#allocation13], 4
          %s280 = int_to_ptr.vmem [resolvable:$true] %s279
          %285 = dma.hbm_to_vmem [thread:$0]  %s5, 512, %s280, [#allocation12], 128, 128, 8
        $region28: #{tpu_custom_call.1} parent=11 // pred_fallthru
          _
        // Predicated region
        $region29: #{tpu_custom_call.1} parent=11 // pred_check
          %p286 = pneg %p182
        $region30: #{tpu_custom_call.1} parent=11 // pred_check_branch
          %288 = sbr.rel (%p286) target = $region32
        $region31: #{tpu_custom_call.1} parent=11 // pred_region
          %s290 = ssub.s32 512, 512
          %291 = vsyncadd [#allocation15], %s290
          %s292 = sshll.u32 [#allocation14], 4
          %s293 = int_to_ptr.vmem [resolvable:$true] %s292
          %298 = dma.hbm_to_vmem [thread:$0]  %s6, 512, %s293, [#allocation15], 128, 128, 8
        $region32: #{tpu_custom_call.1} parent=11 // pred_fallthru
          _
        // Predicated region
        $region33: #{tpu_custom_call.1} parent=11 // pred_check
          %p299 = pneg %p203
        $region34: #{tpu_custom_call.1} parent=11 // pred_check_branch
          %301 = sbr.rel (%p299) target = $region36
        $region35: #{tpu_custom_call.1} parent=11 // pred_region
          _
        $region36: #{tpu_custom_call.1} parent=11 // pred_fallthru
          _
      $region12: #{tpu_custom_call.1} parent=5 // pred_fallthru
        _
      %p302 = scmp.lt.s32.totalorder %s25, 2
      // Predicated region
      $region37: #{tpu_custom_call.1} parent=5 // pred_check
        %p303 = pneg %p302
      $region38: #{tpu_custom_call.1} parent=5 // pred_check_branch
        %305 = sbr.rel (%p303) target = $region40
      $region39: #{tpu_custom_call.1} parent=5 // pred_region
        // Predicated region
        $region41: #{tpu_custom_call.1} parent=39 // pred_check
          %p306 = pneg %p45
        $region42: #{tpu_custom_call.1} parent=39 // pred_check_branch
          %308 = sbr.rel (%p306) target = $region44
        $region43: #{tpu_custom_call.1} parent=39 // pred_region
          %s309 = sand.u32 %s35, 1
          %s310 = scalar_lea.sflag [#allocation6], %s309
          %s311 = sand.u32 %s35, 1
          %s312 = smul.addr %s311, 8
          %s313 = scalar_lea.vmem [#allocation5], %s312
          %s315 = ssub.s32 128, 128
          %316 = vsyncadd %s310, %s315
          %s317 = smul.addr %s25, 128
          %s318 = scalar_lea.hbm %s0, %s317
          %s320 = sshll.u32 %s313, 4
          %s321 = int_to_ptr.vmem [resolvable:$true] %s320
          %323 = dma.hbm_to_vmem [thread:$0]  %s318, 128, %s321, %s310
        $region44: #{tpu_custom_call.1} parent=39 // pred_fallthru
          _
        // Predicated region
        $region45: #{tpu_custom_call.1} parent=39 // pred_check
          %p324 = pneg %p71
        $region46: #{tpu_custom_call.1} parent=39 // pred_check_branch
          %326 = sbr.rel (%p324) target = $region48
        $region47: #{tpu_custom_call.1} parent=39 // pred_region
          %s327 = sand.u32 %s25, 1
          %s328 = scalar_lea.sflag [#allocation9], %s327
          %s329 = sand.u32 %s61, 1
          %s330 = smul.addr %s329, 8
          %s331 = scalar_lea.vmem [#allocation8], %s330
          %s333 = ssub.s32 128, 128
          %334 = vsyncadd %s328, %s333
          %s335 = smul.addr %s25, 128
          %s336 = scalar_lea.hbm %s1, %s335
          %s338 = sshll.u32 %s331, 4
          %s339 = int_to_ptr.vmem [resolvable:$true] %s338
          %341 = dma.hbm_to_vmem [thread:$0]  %s336, 128, %s339, %s328
        $region48: #{tpu_custom_call.1} parent=39 // pred_fallthru
          _
      $region40: #{tpu_custom_call.1} parent=5 // pred_fallthru
        _
      %p342 = scmp.le.s32.totalorder 1, %s25
      %p343 = scmp.lt.s32.totalorder %s25, 3
      %p344 = pnand %p342, %p343
      %p345 = pneg %p344
      // Predicated region
      $region49: #{tpu_custom_call.1} parent=5 // pred_check
        _
      $region50: #{tpu_custom_call.1} parent=5 // pred_check_branch
        %347 = sbr.rel (%p344) target = $region52
      $region51: #{tpu_custom_call.1} parent=5 // pred_region
        %s348 = ssub.s32 %s25, 1
        %s349 = sand.u32 %s38, 1
        %s350 = scalar_lea.sflag [#allocation6], %s349
        %s351 = sand.u32 %s38, 1
        %s352 = smul.addr %s351, 8
        %s353 = scalar_lea.vmem [#allocation5], %s352
        // Predicated region
        $region53: #{tpu_custom_call.1} parent=51 // pred_check
          %p354 = pneg %p51
        $region54: #{tpu_custom_call.1} parent=51 // pred_check_branch
          %356 = sbr.rel (%p354) target = $region56
        $region55: #{tpu_custom_call.1} parent=51 // pred_region
          %357 = dma.done %s350, 128
        $region56: #{tpu_custom_call.1} parent=51 // pred_fallthru
          _
        %s358 = sand.u32 %s30, 1
        %s359 = scalar_lea.sflag [#allocation9], %s358
        %s360 = sand.u32 %s64, 1
        %s361 = smul.addr %s360, 8
        %s362 = scalar_lea.vmem [#allocation8], %s361
        // Predicated region
        $region57: #{tpu_custom_call.1} parent=51 // pred_check
          %p363 = pneg %p77
        $region58: #{tpu_custom_call.1} parent=51 // pred_check_branch
          %365 = sbr.rel (%p363) target = $region60
        $region59: #{tpu_custom_call.1} parent=51 // pred_region
          %366 = dma.done %s359, 128
        $region60: #{tpu_custom_call.1} parent=51 // pred_fallthru
          _
        // Predicated region
        $region61: #{tpu_custom_call.1} parent=51 // pred_check
          %p367 = pneg %p98
        $region62: #{tpu_custom_call.1} parent=51 // pred_check_branch
          %369 = sbr.rel (%p367) target = $region64
        $region63: #{tpu_custom_call.1} parent=51 // pred_region
          %370 = dma.done [#allocation9], 1024
        $region64: #{tpu_custom_call.1} parent=51 // pred_fallthru
          _
        // Predicated region
        $region65: #{tpu_custom_call.1} parent=51 // pred_check
          %p371 = pneg %p140
        $region66: #{tpu_custom_call.1} parent=51 // pred_check_branch
          %373 = sbr.rel (%p371) target = $region68
        $region67: #{tpu_custom_call.1} parent=51 // pred_region
          %374 = dma.done [#allocation12], 512
        $region68: #{tpu_custom_call.1} parent=51 // pred_fallthru
          _
        // Predicated region
        $region69: #{tpu_custom_call.1} parent=51 // pred_check
          %p375 = pneg %p161
        $region70: #{tpu_custom_call.1} parent=51 // pred_check_branch
          %377 = sbr.rel (%p375) target = $region72
        $region71: #{tpu_custom_call.1} parent=51 // pred_region
          %378 = dma.done [#allocation12], 512
        $region72: #{tpu_custom_call.1} parent=51 // pred_fallthru
          _
        // Predicated region
        $region73: #{tpu_custom_call.1} parent=51 // pred_check
          %p379 = pneg %p182
        $region74: #{tpu_custom_call.1} parent=51 // pred_check_branch
          %381 = sbr.rel (%p379) target = $region76
        $region75: #{tpu_custom_call.1} parent=51 // pred_region
          %382 = dma.done [#allocation15], 512
        $region76: #{tpu_custom_call.1} parent=51 // pred_fallthru
          _
        %s383 = sand.u32 %s38, 1
        %s384 = scalar_lea.sflag [#allocation6], %s383
        %s385 = sand.u32 %s38, 1
        %s386 = smul.addr %s385, 8
        %s387 = scalar_lea.vmem [#allocation5], %s386
        %p388 = pneg %p51
        %p389 = pneg %p48
        %s390 = sand.u32 %s30, 1
        %s391 = scalar_lea.sflag [#allocation9], %s390
        %s392 = sand.u32 %s64, 1
        %s393 = smul.addr %s392, 8
        %s394 = scalar_lea.vmem [#allocation8], %s393
        %p395 = pneg %p77
        %p396 = pneg %p74
        %p397 = pneg %p98
        %p398 = pneg %p95
        %p399 = pneg %p119
        %p400 = pneg %p116
        %p401 = pneg %p140
        %p402 = pneg %p137
        %p403 = pneg %p161
        %p404 = pneg %p158
        %p405 = pneg %p182
        %p406 = pneg %p179
        %p407 = pneg %p203
        %p408 = pneg %p200
        %p409 = pneg %p229
        %p410 = pneg %p226
        %s411 = sand.u32 %s216, 1
        %s412 = scalar_lea.sflag [#allocation7], %s411
        %s413 = sand.u32 %s216, 1
        %s414 = smul.addr %s413, 8
        %s415 = scalar_lea.vmem [#allocation16], %s414
        %v416 = vld [vmem:[%s353] sm:$0xff]
        %v417 = vld [vmem:[%s362] sm:$0xff]
        %v418 = vlaneseq
        %v419 = vshrl.u32 %v418, 7
        %v420 = vsub.s32 0, %v419
        %v421 = vrot.slane %v417, %v420
        %423 = vbcast.lane.b32.xlu0 %v421, 256
        %v424 = vpop.permute.xlu0 %423
        %v425 = vlaneseq
        %v426 = vshrl.u32 %v425, 7
        %v427 = vsub.s32 1, %v426
        %v428 = vrot.slane %v417, %v427
        %430 = vbcast.lane.b32.xlu0 %v428, 256
        %v431 = vpop.permute.xlu0 %430
        %v432 = vlaneseq
        %v433 = vshrl.u32 %v432, 7
        %v434 = vsub.s32 2, %v433
        %v435 = vrot.slane %v417, %v434
        %437 = vbcast.lane.b32.xlu0 %v435, 256
        %v438 = vpop.permute.xlu0 %437
        %v439 = vlaneseq
        %v440 = vshrl.u32 %v439, 7
        %v441 = vsub.s32 3, %v440
        %v442 = vrot.slane %v417, %v441
        %444 = vbcast.lane.b32.xlu0 %v442, 256
        %v445 = vpop.permute.xlu0 %444
        %v446 = vlaneseq
        %v447 = vshrl.u32 %v446, 7
        %v448 = vsub.s32 4, %v447
        %v449 = vrot.slane %v417, %v448
        %451 = vbcast.lane.b32.xlu0 %v449, 256
        %v452 = vpop.permute.xlu0 %451
        %v453 = vlaneseq
        %v454 = vshrl.u32 %v453, 7
        %v455 = vsub.s32 5, %v454
        %v456 = vrot.slane %v417, %v455
        %458 = vbcast.lane.b32.xlu0 %v456, 256
        %v459 = vpop.permute.xlu0 %458
        %v460 = vlaneseq
        %v461 = vshrl.u32 %v460, 7
        %v462 = vsub.s32 6, %v461
        %v463 = vrot.slane %v417, %v462
        %465 = vbcast.lane.b32.xlu0 %v463, 256
        %v466 = vpop.permute.xlu0 %465
        %v467 = vlaneseq
        %v468 = vshrl.u32 %v467, 7
        %v469 = vsub.s32 7, %v468
        %v470 = vrot.slane %v417, %v469
        %472 = vbcast.lane.b32.xlu0 %v470, 256
        %v473 = vpop.permute.xlu0 %472
        %v474 = vmul.f32 %v416, %v424
        %v475 = vmul.f32 %v416, %v431
        %v476 = vmul.f32 %v416, %v438
        %v477 = vmul.f32 %v416, %v445
        %v478 = vmul.f32 %v416, %v452
        %v479 = vmul.f32 %v416, %v459
        %v480 = vmul.f32 %v416, %v466
        %v481 = vmul.f32 %v416, %v473
        %v490 = vrot.slane %v475, 7
        %vm491 = vcmask 1041409
        %v492 = vsel %vm491, %v490, %v474
        %v493 = vrot.slane %v476, 6
        %vm494 = vcmask 1042434
        %v495 = vsel %vm494, %v493, %v492
        %v496 = vrot.slane %v477, 5
        %vm497 = vcmask 1043459
        %v498 = vsel %vm497, %v496, %v495
        %v499 = vrot.slane %v478, 4
        %vm500 = vcmask 1044484
        %v501 = vsel %vm500, %v499, %v498
        %v502 = vrot.slane %v479, 3
        %vm503 = vcmask 1045509
        %v504 = vsel %vm503, %v502, %v501
        %v505 = vrot.slane %v480, 2
        %vm506 = vcmask 1046534
        %v507 = vsel %vm506, %v505, %v504
        %v508 = vrot.slane %v481, 1
        %vm509 = vcmask 1047559
        %v510 = vsel %vm509, %v508, %v507
        %v512 = vrot.slane %v474, 7
        %v513 = vrot.slane %v475, 6
        %v514 = vsel %vm491, %v513, %v512
        %v515 = vrot.slane %v476, 5
        %v516 = vsel %vm494, %v515, %v514
        %v517 = vrot.slane %v477, 4
        %v518 = vsel %vm497, %v517, %v516
        %v519 = vrot.slane %v478, 3
        %v520 = vsel %vm500, %v519, %v518
        %v521 = vrot.slane %v479, 2
        %v522 = vsel %vm503, %v521, %v520
        %v523 = vrot.slane %v480, 1
        %v524 = vsel %vm506, %v523, %v522
        %v525 = vsel %vm509, %v481, %v524
        %526 = vrot.lane.b32.xlu0 %v525, 32
        %v527 = vpop.permute.xlu0 %526
        %vm529 = vcmask 261120
        %v530 = vsel %vm529, %v510, %v527
        %v531 = vsel %vm494, %v490, %v474
        %v532 = vsel %vm497, %v493, %v531
        %v533 = vsel %vm500, %v496, %v532
        %v534 = vsel %vm503, %v499, %v533
        %v535 = vsel %vm506, %v502, %v534
        %v536 = vsel %vm509, %v505, %v535
        %v539 = vrot.slane %v474, 5
        %v540 = vrot.slane %v475, 4
        %v541 = vsel %vm494, %v540, %v539
        %v542 = vrot.slane %v476, 3
        %v543 = vsel %vm497, %v542, %v541
        %v544 = vrot.slane %v477, 2
        %v545 = vsel %vm500, %v544, %v543
        %v546 = vrot.slane %v478, 1
        %v547 = vsel %vm503, %v546, %v545
        %v548 = vsel %vm506, %v479, %v547
        %v549 = vrot.slane %v480, 7
        %v550 = vsel %vm509, %v549, %v548
        %v551 = vrot.slane %v481, 6
        %552 = vrot.lane.b32.xlu0 %v550, 32
        %v553 = vpop.permute.xlu0 %552
        %554 = vrot.lane.b32.xlu0 %v551, 32
        %v555 = vpop.permute.xlu0 %554
        %v558 = vsel %vm529, %v536, %v553
        %v559 = vsel %vm529, %v508, %v555
        %v560 = vsel %vm497, %v490, %v474
        %v561 = vsel %vm500, %v493, %v560
        %v562 = vsel %vm503, %v496, %v561
        %v563 = vsel %vm506, %v499, %v562
        %v564 = vsel %vm509, %v502, %v563
        %v565 = vsel %vm491, %v508, %v505
        %v568 = vrot.slane %v474, 3
        %v569 = vrot.slane %v475, 2
        %v570 = vsel %vm497, %v569, %v568
        %v571 = vrot.slane %v476, 1
        %v572 = vsel %vm500, %v571, %v570
        %v573 = vsel %vm503, %v477, %v572
        %v574 = vrot.slane %v478, 7
        %v575 = vsel %vm506, %v574, %v573
        %v576 = vrot.slane %v479, 6
        %v577 = vsel %vm509, %v576, %v575
        %v578 = vrot.slane %v480, 5
        %v579 = vrot.slane %v481, 4
        %v580 = vsel %vm491, %v579, %v578
        %581 = vrot.lane.b32.xlu0 %v577, 32
        %v582 = vpop.permute.xlu0 %581
        %583 = vrot.lane.b32.xlu0 %v580, 32
        %v584 = vpop.permute.xlu0 %583
        %v587 = vsel %vm529, %v564, %v582
        %v588 = vsel %vm529, %v565, %v584
        %v589 = vsel %vm500, %v490, %v474
        %v590 = vsel %vm503, %v493, %v589
        %v591 = vsel %vm506, %v496, %v590
        %v592 = vsel %vm509, %v499, %v591
        %v593 = vsel %vm491, %v505, %v502
        %v594 = vsel %vm494, %v508, %v593
        %v597 = vrot.slane %v474, 1
        %v598 = vsel %vm500, %v475, %v597
        %v599 = vrot.slane %v476, 7
        %v600 = vsel %vm503, %v599, %v598
        %v601 = vrot.slane %v477, 6
        %v602 = vsel %vm506, %v601, %v600
        %v603 = vrot.slane %v478, 5
        %v604 = vsel %vm509, %v603, %v602
        %v605 = vrot.slane %v479, 4
        %v606 = vrot.slane %v480, 3
        %v607 = vsel %vm491, %v606, %v605
        %v608 = vrot.slane %v481, 2
        %v609 = vsel %vm494, %v608, %v607
        %610 = vrot.lane.b32.xlu0 %v604, 32
        %v611 = vpop.permute.xlu0 %610
        %612 = vrot.lane.b32.xlu0 %v609, 32
        %v613 = vpop.permute.xlu0 %612
        %v616 = vsel %vm529, %v592, %v611
        %v617 = vsel %vm529, %v594, %v613
        %v618 = vsel %vm503, %v490, %v474
        %v619 = vsel %vm506, %v493, %v618
        %v620 = vsel %vm509, %v496, %v619
        %v621 = vsel %vm491, %v502, %v499
        %v622 = vsel %vm494, %v505, %v621
        %v623 = vsel %vm497, %v508, %v622
        %v626 = vsel %vm503, %v513, %v512
        %v627 = vsel %vm506, %v515, %v626
        %v628 = vsel %vm509, %v517, %v627
        %v629 = vsel %vm491, %v521, %v519
        %v630 = vsel %vm494, %v523, %v629
        %v631 = vsel %vm497, %v481, %v630
        %632 = vrot.lane.b32.xlu0 %v628, 32
        %v633 = vpop.permute.xlu0 %632
        %634 = vrot.lane.b32.xlu0 %v631, 32
        %v635 = vpop.permute.xlu0 %634
        %v638 = vsel %vm529, %v620, %v633
        %v639 = vsel %vm529, %v623, %v635
        %v640 = vsel %vm506, %v490, %v474
        %v641 = vsel %vm509, %v493, %v640
        %v642 = vsel %vm491, %v499, %v496
        %v643 = vsel %vm494, %v502, %v642
        %v644 = vsel %vm497, %v505, %v643
        %v645 = vsel %vm500, %v508, %v644
        %v648 = vsel %vm506, %v540, %v539
        %v649 = vsel %vm509, %v542, %v648
        %v650 = vsel %vm491, %v546, %v544
        %v651 = vsel %vm494, %v479, %v650
        %v652 = vsel %vm497, %v549, %v651
        %v653 = vsel %vm500, %v551, %v652
        %654 = vrot.lane.b32.xlu0 %v649, 32
        %v655 = vpop.permute.xlu0 %654
        %656 = vrot.lane.b32.xlu0 %v653, 32
        %v657 = vpop.permute.xlu0 %656
        %v660 = vsel %vm529, %v641, %v655
        %v661 = vsel %vm529, %v645, %v657
        %v662 = vsel %vm509, %v490, %v474
        %v663 = vsel %vm491, %v496, %v493
        %v664 = vsel %vm494, %v499, %v663
        %v665 = vsel %vm497, %v502, %v664
        %v666 = vsel %vm500, %v505, %v665
        %v667 = vsel %vm503, %v508, %v666
        %v670 = vsel %vm509, %v569, %v568
        %v671 = vsel %vm491, %v477, %v571
        %v672 = vsel %vm494, %v574, %v671
        %v673 = vsel %vm497, %v576, %v672
        %v674 = vsel %vm500, %v578, %v673
        %v675 = vsel %vm503, %v579, %v674
        %676 = vrot.lane.b32.xlu0 %v670, 32
        %v677 = vpop.permute.xlu0 %676
        %678 = vrot.lane.b32.xlu0 %v675, 32
        %v679 = vpop.permute.xlu0 %678
        %v682 = vsel %vm529, %v662, %v677
        %v683 = vsel %vm529, %v667, %v679
        %v684 = vsel %vm491, %v493, %v490
        %v685 = vsel %vm494, %v496, %v684
        %v686 = vsel %vm497, %v499, %v685
        %v687 = vsel %vm500, %v502, %v686
        %v688 = vsel %vm503, %v505, %v687
        %v689 = vsel %vm506, %v508, %v688
        %v692 = vsel %vm491, %v599, %v475
        %v693 = vsel %vm494, %v601, %v692
        %v694 = vsel %vm497, %v603, %v693
        %v695 = vsel %vm500, %v605, %v694
        %v696 = vsel %vm503, %v606, %v695
        %v697 = vsel %vm506, %v608, %v696
        %698 = vrot.lane.b32.xlu0 %v597, 32
        %v699 = vpop.permute.xlu0 %698
        %700 = vrot.lane.b32.xlu0 %v697, 32
        %v701 = vpop.permute.xlu0 %700
        %v704 = vsel %vm529, %v474, %v699
        %v705 = vsel %vm529, %v689, %v701
        %vm708 = vcmask 1046528
        %v709 = vrot.slane %v558, 1
        %v710 = vrot.slane %v559, 1
        %v711 = vsel %vm708, %v709, %v710
        %vm714 = vcmask 1045504
        %v715 = vrot.slane %v587, 2
        %v716 = vrot.slane %v588, 2
        %v717 = vsel %vm714, %v715, %v716
        %vm720 = vcmask 1044480
        %v721 = vrot.slane %v616, 3
        %v722 = vrot.slane %v617, 3
        %v723 = vsel %vm720, %v721, %v722
        %vm726 = vcmask 1043456
        %v727 = vrot.slane %v638, 4
        %v728 = vrot.slane %v639, 4
        %v729 = vsel %vm726, %v727, %v728
        %vm732 = vcmask 1042432
        %v733 = vrot.slane %v660, 5
        %v734 = vrot.slane %v661, 5
        %v735 = vsel %vm732, %v733, %v734
        %vm738 = vcmask 1041408
        %v739 = vrot.slane %v682, 6
        %v740 = vrot.slane %v683, 6
        %v741 = vsel %vm738, %v739, %v740
        %vm744 = vcmask 1040384
        %v745 = vrot.slane %v704, 7
        %v746 = vrot.slane %v705, 7
        %v747 = vsel %vm744, %v745, %v746
        %v748 = vld [vmem:[#allocation10] sm:$0xff]
        %v749 = vld [vmem:[#allocation10 + $0x8] sm:$0xff]
        %v750 = vld [vmem:[#allocation10 + $0x10] sm:$0xff]
        %v751 = vld [vmem:[#allocation10 + $0x18] sm:$0xff]
        %v752 = vld [vmem:[#allocation10 + $0x20] sm:$0xff]
        %v753 = vld [vmem:[#allocation10 + $0x28] sm:$0xff]
        %v754 = vld [vmem:[#allocation10 + $0x30] sm:$0xff]
        %v755 = vld [vmem:[#allocation10 + $0x38] sm:$0xff]
        %v756 = vld [vmem:[%s3] sm:$0x1]
        %v758 = vlaneseq
        %v759 = vshrl.u32 %v758, 7
        %v760 = vsub.s32 0, %v759
        %v761 = vrot.slane %v756, %v760
        %vm763 = vcmask 523264
        %v765 = vsel %vm763, %v530, 0
        %v767 = vsel %vm763, %v711, 0
        %v769 = vsel %vm763, %v717, 0
        %v771 = vsel %vm763, %v723, 0
        %v773 = vsel %vm763, %v729, 0
        %v775 = vsel %vm763, %v735, 0
        %v777 = vsel %vm763, %v741, 0
        %v779 = vsel %vm763, %v747, 0
        %781 = vmatprep.subr.mxu0 0.0
        %782 = vmatpush1.msra.mxu0 %v748
        %783 = vmatprep.subr.mxu0 0.0
        %784 = vmatpush1.msra.mxu0 %v749
        %785 = vmatprep.subr.mxu0 0.0
        %786 = vmatpush1.msra.mxu0 %v750
        %787 = vmatprep.subr.mxu0 0.0
        %788 = vmatpush1.msra.mxu0 %v751
        %789 = vmatprep.subr.mxu0 0.0
        %790 = vmatpush1.msra.mxu0 %v752
        %791 = vmatprep.subr.mxu0 0.0
        %792 = vmatpush1.msra.mxu0 %v753
        %793 = vmatprep.subr.mxu0 0.0
        %794 = vmatpush1.msra.mxu0 %v754
        %795 = vmatprep.subr.mxu0 0.0
        %796 = vmatpush1.msra.mxu0 %v755
        %797 = vmatprep.subr.mxu0 0.0
        %798 = vmatpush1.msra.mxu0 0.0
        %799 = vmatprep.subr.mxu0 0.0
        %800 = vmatpush1.msra.mxu0 0.0
        %801 = vmatprep.subr.mxu0 0.0
        %802 = vmatpush1.msra.mxu0 0.0
        %803 = vmatprep.subr.mxu0 0.0
        %804 = vmatpush1.msra.mxu0 0.0
        %805 = vmatprep.subr.mxu0 0.0
        %806 = vmatpush1.msra.mxu0 0.0
        %807 = vmatprep.subr.mxu0 0.0
        %808 = vmatpush1.msra.mxu0 0.0
        %809 = vmatprep.subr.mxu0 0.0
        %810 = vmatpush1.msra.mxu0 0.0
        %811 = vmatprep.subr.mxu0 0.0
        %812 = vmatpush1.msra.mxu0 0.0
        %813 = vmatprep.subr.mxu0 0.0
        %814 = vmatpush1.msra.mxu0 0.0
        %815 = vmatprep.subr.mxu0 0.0
        %816 = vmatpush1.msra.mxu0 0.0
        %817 = vmatprep.subr.mxu0 0.0
        %818 = vmatpush1.msra.mxu0 0.0
        %819 = vmatprep.subr.mxu0 0.0
        %820 = vmatpush1.msra.mxu0 0.0
        %821 = vmatprep.subr.mxu0 0.0
        %822 = vmatpush1.msra.mxu0 0.0
        %823 = vmatprep.subr.mxu0 0.0
        %824 = vmatpush1.msra.mxu0 0.0
        %825 = vmatprep.subr.mxu0 0.0
        %826 = vmatpush1.msra.mxu0 0.0
        %827 = vmatprep.subr.mxu0 0.0
        %828 = vmatpush1.msra.mxu0 0.0
        %829 = vmatprep.subr.mxu0 0.0
        %830 = vmatpush1.msra.mxu0 0.0
        %831 = vmatprep.subr.mxu0 0.0
        %832 = vmatpush1.msra.mxu0 0.0
        %833 = vmatprep.subr.mxu0 0.0
        %834 = vmatpush1.msra.mxu0 0.0
        %835 = vmatprep.subr.mxu0 0.0
        %836 = vmatpush1.msra.mxu0 0.0
        %837 = vmatprep.subr.mxu0 0.0
        %838 = vmatpush1.msra.mxu0 0.0
        %839 = vmatprep.subr.mxu0 0.0
        %840 = vmatpush1.msra.mxu0 0.0
        %841 = vmatprep.subr.mxu0 0.0
        %842 = vmatpush1.msra.mxu0 0.0
        %843 = vmatprep.subr.mxu0 0.0
        %844 = vmatpush1.msra.mxu0 0.0
        %845 = vmatprep.mubr.f32.mxu0 0.0
        %846 = vmatmul.mubr.f32.gmra.mrb[0].mxu0 %v765
        %v847 = vpop.f32.mrb[0].mxu0
        %v848 = vadd.f32 %v761, %v847
        %v849 = vpop.f32.mrb[0].mxu0
        %850 = vmatprep.mubr.f32.mxu0 0.0
        %851 = vmatmul.mubr.f32.gmra.mrb[0].mxu0 %v767
        %v852 = vpop.f32.mrb[0].mxu0
        %v853 = vadd.f32 %v761, %v852
        %v854 = vpop.f32.mrb[0].mxu0
        %855 = vmatprep.mubr.f32.mxu0 0.0
        %856 = vmatmul.mubr.f32.gmra.mrb[0].mxu0 %v769
        %v857 = vpop.f32.mrb[0].mxu0
        %v858 = vadd.f32 %v761, %v857
        %v859 = vpop.f32.mrb[0].mxu0
        %860 = vmatprep.mubr.f32.mxu0 0.0
        %861 = vmatmul.mubr.f32.gmra.mrb[0].mxu0 %v771
        %v862 = vpop.f32.mrb[0].mxu0
        %v863 = vadd.f32 %v761, %v862
        %v864 = vpop.f32.mrb[0].mxu0
        %865 = vmatprep.mubr.f32.mxu0 0.0
        %866 = vmatmul.mubr.f32.gmra.mrb[0].mxu0 %v773
        %v867 = vpop.f32.mrb[0].mxu0
        %v868 = vadd.f32 %v761, %v867
        %v869 = vpop.f32.mrb[0].mxu0
        %870 = vmatprep.mubr.f32.mxu0 0.0
        %871 = vmatmul.mubr.f32.gmra.mrb[0].mxu0 %v775
        %v872 = vpop.f32.mrb[0].mxu0
        %v873 = vadd.f32 %v761, %v872
        %v874 = vpop.f32.mrb[0].mxu0
        %875 = vmatprep.mubr.f32.mxu0 0.0
        %876 = vmatmul.mubr.f32.gmra.mrb[0].mxu0 %v777
        %v877 = vpop.f32.mrb[0].mxu0
        %v878 = vadd.f32 %v761, %v877
        %v879 = vpop.f32.mrb[0].mxu0
        %880 = vmatprep.mubr.f32.mxu0 0.0
        %881 = vmatmul.mubr.f32.gmra.mrb[0].mxu0 %v779
        %v882 = vpop.f32.mrb[0].mxu0
        %v883 = vadd.f32 %v761, %v882
        %v884 = vpop.f32.mrb[0].mxu0
        %885 = vdwg.mxu0
        %886 = vst.msk [vmem:[#allocation2] sm:$0xff] %vm529, %v848
        %887 = vst.msk [vmem:[#allocation2 + $0x8] sm:$0xff] %vm529, %v853
        %888 = vst.msk [vmem:[#allocation2 + $0x10] sm:$0xff] %vm529, %v858
        %889 = vst.msk [vmem:[#allocation2 + $0x18] sm:$0xff] %vm529, %v863
        %890 = vst.msk [vmem:[#allocation2 + $0x20] sm:$0xff] %vm529, %v868
        %891 = vst.msk [vmem:[#allocation2 + $0x28] sm:$0xff] %vm529, %v873
        %892 = vst.msk [vmem:[#allocation2 + $0x30] sm:$0xff] %vm529, %v878
        %893 = vst.msk [vmem:[#allocation2 + $0x38] sm:$0xff] %vm529, %v883
        %902 = vrot.lane.b32.xlu0 %v848, 96
        %v903 = vpop.permute.xlu0 %902
        %904 = vrot.lane.b32.xlu0 %v853, 96
        %v905 = vpop.permute.xlu0 %904
        %906 = vrot.lane.b32.xlu0 %v858, 96
        %v907 = vpop.permute.xlu0 %906
        %908 = vrot.lane.b32.xlu0 %v863, 96
        %v909 = vpop.permute.xlu0 %908
        %910 = vrot.lane.b32.xlu0 %v868, 96
        %v911 = vpop.permute.xlu0 %910
        %912 = vrot.lane.b32.xlu0 %v873, 96
        %v913 = vpop.permute.xlu0 %912
        %914 = vrot.lane.b32.xlu0 %v878, 96
        %v915 = vpop.permute.xlu0 %914
        %916 = vrot.lane.b32.xlu0 %v883, 96
        %v917 = vpop.permute.xlu0 %916
        %926 = vst.msk [vmem:[#allocation3] sm:$0xff] %vm529, %v903
        %927 = vst.msk [vmem:[#allocation3 + $0x8] sm:$0xff] %vm529, %v905
        %928 = vst.msk [vmem:[#allocation3 + $0x10] sm:$0xff] %vm529, %v907
        %929 = vst.msk [vmem:[#allocation3 + $0x18] sm:$0xff] %vm529, %v909
        %930 = vst.msk [vmem:[#allocation3 + $0x20] sm:$0xff] %vm529, %v911
        %931 = vst.msk [vmem:[#allocation3 + $0x28] sm:$0xff] %vm529, %v913
        %932 = vst.msk [vmem:[#allocation3 + $0x30] sm:$0xff] %vm529, %v915
        %933 = vst.msk [vmem:[#allocation3 + $0x38] sm:$0xff] %vm529, %v917
        %934 = vrot.lane.b32.xlu0 %v848, 64
        %v935 = vpop.permute.xlu0 %934
        %936 = vrot.lane.b32.xlu0 %v853, 64
        %v937 = vpop.permute.xlu0 %936
        %938 = vrot.lane.b32.xlu0 %v858, 64
        %v939 = vpop.permute.xlu0 %938
        %940 = vrot.lane.b32.xlu0 %v863, 64
        %v941 = vpop.permute.xlu0 %940
        %942 = vrot.lane.b32.xlu0 %v868, 64
        %v943 = vpop.permute.xlu0 %942
        %944 = vrot.lane.b32.xlu0 %v873, 64
        %v945 = vpop.permute.xlu0 %944
        %946 = vrot.lane.b32.xlu0 %v878, 64
        %v947 = vpop.permute.xlu0 %946
        %948 = vrot.lane.b32.xlu0 %v883, 64
        %v949 = vpop.permute.xlu0 %948
        %958 = vst.msk [vmem:[#allocation4] sm:$0xff] %vm529, %v935
        %959 = vst.msk [vmem:[#allocation4 + $0x8] sm:$0xff] %vm529, %v937
        %960 = vst.msk [vmem:[#allocation4 + $0x10] sm:$0xff] %vm529, %v939
        %961 = vst.msk [vmem:[#allocation4 + $0x18] sm:$0xff] %vm529, %v941
        %962 = vst.msk [vmem:[#allocation4 + $0x20] sm:$0xff] %vm529, %v943
        %963 = vst.msk [vmem:[#allocation4 + $0x28] sm:$0xff] %vm529, %v945
        %964 = vst.msk [vmem:[#allocation4 + $0x30] sm:$0xff] %vm529, %v947
        %965 = vst.msk [vmem:[#allocation4 + $0x38] sm:$0xff] %vm529, %v949
        %v966 = vlaneseq
        %v967 = vshrl.u32 %v966, 7
        %vm968 = vcmp.lt.s32.totalorder %v967, 0
        %v969 = vsub.s32 0, %v967
        %v970 = vsel %vm968, %v969, %v967
        %v971 = vshrl.u32 %v970, 3
        %v972 = vand.u32 %v970, 7
        %v973 = vsub.s32 0, %v972
        %v974 = vsel %vm968, %v973, %v972
        %vm975 = vcmp.ne.s32.totalorder %v974, 0
        %vm976 = vcmp.lt.s32.totalorder %v974, 0
        %vm977 = vmand %vm976, %vm975
        %v978 = vadd.s32 %v974, 8
        %v979 = vsel %vm977, %v978, %v974
        %v980 = vlaneseq
        %v981 = vand.u32 %v980, 127
        %vm982 = vcmp.lt.s32.totalorder %v981, 16
        %v983 = vsub.s32 7, %v979
        %v984 = vsel %vm982, %v979, %v983
        %v985 = vld [vmem:[#allocation11] sm:$0xff]
        %v986 = vld [vmem:[#allocation11 + $0x8] sm:$0xff]
        %v987 = vld [vmem:[#allocation11 + $0x10] sm:$0xff]
        %v988 = vld [vmem:[#allocation11 + $0x18] sm:$0xff]
        %v989 = vld [vmem:[#allocation13] sm:$0xff]
        %v990 = vld [vmem:[#allocation13 + $0x8] sm:$0xff]
        %v991 = vld [vmem:[#allocation13 + $0x10] sm:$0xff]
        %v992 = vld [vmem:[#allocation13 + $0x18] sm:$0xff]
        %v993 = vld [vmem:[#allocation14] sm:$0xff]
        %v994 = vld [vmem:[#allocation14 + $0x8] sm:$0xff]
        %v995 = vld [vmem:[#allocation14 + $0x10] sm:$0xff]
        %v996 = vld [vmem:[#allocation14 + $0x18] sm:$0xff]
        %v997 = vld [vmem:[%s7] sm:$0x1]
        %v999 = vlaneseq
        %v1000 = vshrl.u32 %v999, 7
        %v1001 = vsub.s32 0, %v1000
        %v1002 = vrot.slane %v997, %v1001
        %v1005 = vsel %vm529, 0.0, 0
        %1007 = vmatprep.subr.mxu0 0.0
        %1008 = vmatpush1.msra.mxu0 %v985
        %1009 = vmatprep.subr.mxu0 0.0
        %1010 = vmatpush1.msra.mxu0 %v986
        %1011 = vmatprep.subr.mxu0 0.0
        %1012 = vmatpush1.msra.mxu0 %v987
        %1013 = vmatprep.subr.mxu0 0.0
        %1014 = vmatpush1.msra.mxu0 %v988
        %1015 = vmatprep.subr.mxu0 0.0
        %1016 = vmatpush1.msra.mxu0 0.0
        %1017 = vmatprep.subr.mxu0 0.0
        %1018 = vmatpush1.msra.mxu0 0.0
        %1019 = vmatprep.subr.mxu0 0.0
        %1020 = vmatpush1.msra.mxu0 0.0
        %1021 = vmatprep.subr.mxu0 0.0
        %1022 = vmatpush1.msra.mxu0 0.0
        %1023 = vmatprep.subr.mxu0 0.0
        %1024 = vmatpush1.msra.mxu0 0.0
        %1025 = vmatprep.subr.mxu0 0.0
        %1026 = vmatpush1.msra.mxu0 0.0
        %1027 = vmatprep.subr.mxu0 0.0
        %1028 = vmatpush1.msra.mxu0 0.0
        %1029 = vmatprep.subr.mxu0 0.0
        %1030 = vmatpush1.msra.mxu0 0.0
        %1031 = vmatprep.subr.mxu0 0.0
        %1032 = vmatpush1.msra.mxu0 0.0
        %1033 = vmatprep.subr.mxu0 0.0
        %1034 = vmatpush1.msra.mxu0 0.0
        %1035 = vmatprep.subr.mxu0 0.0
        %1036 = vmatpush1.msra.mxu0 0.0
        %1037 = vmatprep.subr.mxu0 0.0
        %1038 = vmatpush1.msra.mxu0 0.0
        %1039 = vmatprep.subr.mxu0 0.0
        %1040 = vmatpush1.msra.mxu0 0.0
        %1041 = vmatprep.subr.mxu0 0.0
        %1042 = vmatpush1.msra.mxu0 0.0
        %1043 = vmatprep.subr.mxu0 0.0
        %1044 = vmatpush1.msra.mxu0 0.0
        %1045 = vmatprep.subr.mxu0 0.0
        %1046 = vmatpush1.msra.mxu0 0.0
        %1047 = vmatprep.subr.mxu0 0.0
        %1048 = vmatpush1.msra.mxu0 0.0
        %1049 = vmatprep.subr.mxu0 0.0
        %1050 = vmatpush1.msra.mxu0 0.0
        %1051 = vmatprep.subr.mxu0 0.0
        %1052 = vmatpush1.msra.mxu0 0.0
        %1053 = vmatprep.subr.mxu0 0.0
        %1054 = vmatpush1.msra.mxu0 0.0
        %1055 = vmatprep.subr.mxu0 0.0
        %1056 = vmatpush1.msra.mxu0 0.0
        %1057 = vmatprep.subr.mxu0 0.0
        %1058 = vmatpush1.msra.mxu0 0.0
        %1059 = vmatprep.subr.mxu0 0.0
        %1060 = vmatpush1.msra.mxu0 0.0
        %1061 = vmatprep.subr.mxu0 0.0
        %1062 = vmatpush1.msra.mxu0 0.0
        %1063 = vmatprep.subr.mxu0 0.0
        %1064 = vmatpush1.msra.mxu0 0.0
        %1065 = vmatprep.subr.mxu0 0.0
        %1066 = vmatpush1.msra.mxu0 0.0
        %1067 = vmatprep.subr.mxu0 0.0
        %1068 = vmatpush1.msra.mxu0 0.0
        %1069 = vmatprep.subr.mxu0 0.0
        %1070 = vmatpush1.msra.mxu0 0.0
        %1071 = vmatprep.mubr.f32.mxu0 0.0
        %1072 = vmatmul.mubr.f32.gmra.mrb[0].mxu0 %v1005
        %v1073 = vpop.f32.mrb[0].mxu0
        %v1074 = vadd.f32 0.0, %v1073
        %v1075 = vpop.f32.mrb[0].mxu0
        %1076 = vdwg.mxu0
        %1077 = vmatprep.subr.mxu0 0.0
        %1078 = vmatpush1.msra.mxu0 %v989
        %1079 = vmatprep.subr.mxu0 0.0
        %1080 = vmatpush1.msra.mxu0 %v990
        %1081 = vmatprep.subr.mxu0 0.0
        %1082 = vmatpush1.msra.mxu0 %v991
        %1083 = vmatprep.subr.mxu0 0.0
        %1084 = vmatpush1.msra.mxu0 %v992
        %1085 = vmatprep.subr.mxu0 0.0
        %1086 = vmatpush1.msra.mxu0 0.0
        %1087 = vmatprep.subr.mxu0 0.0
        %1088 = vmatpush1.msra.mxu0 0.0
        %1089 = vmatprep.subr.mxu0 0.0
        %1090 = vmatpush1.msra.mxu0 0.0
        %1091 = vmatprep.subr.mxu0 0.0
        %1092 = vmatpush1.msra.mxu0 0.0
        %1093 = vmatprep.subr.mxu0 0.0
        %1094 = vmatpush1.msra.mxu0 0.0
        %1095 = vmatprep.subr.mxu0 0.0
        %1096 = vmatpush1.msra.mxu0 0.0
        %1097 = vmatprep.subr.mxu0 0.0
        %1098 = vmatpush1.msra.mxu0 0.0
        %1099 = vmatprep.subr.mxu0 0.0
        %1100 = vmatpush1.msra.mxu0 0.0
        %1101 = vmatprep.subr.mxu0 0.0
        %1102 = vmatpush1.msra.mxu0 0.0
        %1103 = vmatprep.subr.mxu0 0.0
        %1104 = vmatpush1.msra.mxu0 0.0
        %1105 = vmatprep.subr.mxu0 0.0
        %1106 = vmatpush1.msra.mxu0 0.0
        %1107 = vmatprep.subr.mxu0 0.0
        %1108 = vmatpush1.msra.mxu0 0.0
        %1109 = vmatprep.subr.mxu0 0.0
        %1110 = vmatpush1.msra.mxu0 0.0
        %1111 = vmatprep.subr.mxu0 0.0
        %1112 = vmatpush1.msra.mxu0 0.0
        %1113 = vmatprep.subr.mxu0 0.0
        %1114 = vmatpush1.msra.mxu0 0.0
        %1115 = vmatprep.subr.mxu0 0.0
        %1116 = vmatpush1.msra.mxu0 0.0
        %1117 = vmatprep.subr.mxu0 0.0
        %1118 = vmatpush1.msra.mxu0 0.0
        %1119 = vmatprep.subr.mxu0 0.0
        %1120 = vmatpush1.msra.mxu0 0.0
        %1121 = vmatprep.subr.mxu0 0.0
        %1122 = vmatpush1.msra.mxu0 0.0
        %1123 = vmatprep.subr.mxu0 0.0
        %1124 = vmatpush1.msra.mxu0 0.0
        %1125 = vmatprep.subr.mxu0 0.0
        %1126 = vmatpush1.msra.mxu0 0.0
        %1127 = vmatprep.subr.mxu0 0.0
        %1128 = vmatpush1.msra.mxu0 0.0
        %1129 = vmatprep.subr.mxu0 0.0
        %1130 = vmatpush1.msra.mxu0 0.0
        %1131 = vmatprep.subr.mxu0 0.0
        %1132 = vmatpush1.msra.mxu0 0.0
        %1133 = vmatprep.subr.mxu0 0.0
        %1134 = vmatpush1.msra.mxu0 0.0
        %1135 = vmatprep.subr.mxu0 0.0
        %1136 = vmatpush1.msra.mxu0 0.0
        %1137 = vmatprep.subr.mxu0 0.0
        %1138 = vmatpush1.msra.mxu0 0.0
        %1139 = vmatprep.subr.mxu0 0.0
        %1140 = vmatpush1.msra.mxu0 0.0
        %1141 = vmatprep.mubr.f32.mxu0 0.0
        %1142 = vmatmul.mubr.f32.gmra.mrb[0].mxu0 %v1005
        %v1143 = vpop.f32.mrb[0].mxu0
        %v1144 = vadd.f32 0.0, %v1143
        %v1145 = vpop.f32.mrb[0].mxu0
        %1146 = vdwg.mxu0
        %1147 = vmatprep.subr.mxu0 0.0
        %1148 = vmatpush1.msra.mxu0 %v993
        %1149 = vmatprep.subr.mxu0 0.0
        %1150 = vmatpush1.msra.mxu0 %v994
        %1151 = vmatprep.subr.mxu0 0.0
        %1152 = vmatpush1.msra.mxu0 %v995
        %1153 = vmatprep.subr.mxu0 0.0
        %1154 = vmatpush1.msra.mxu0 %v996
        %1155 = vmatprep.subr.mxu0 0.0
        %1156 = vmatpush1.msra.mxu0 0.0
        %1157 = vmatprep.subr.mxu0 0.0
        %1158 = vmatpush1.msra.mxu0 0.0
        %1159 = vmatprep.subr.mxu0 0.0
        %1160 = vmatpush1.msra.mxu0 0.0
        %1161 = vmatprep.subr.mxu0 0.0
        %1162 = vmatpush1.msra.mxu0 0.0
        %1163 = vmatprep.subr.mxu0 0.0
        %1164 = vmatpush1.msra.mxu0 0.0
        %1165 = vmatprep.subr.mxu0 0.0
        %1166 = vmatpush1.msra.mxu0 0.0
        %1167 = vmatprep.subr.mxu0 0.0
        %1168 = vmatpush1.msra.mxu0 0.0
        %1169 = vmatprep.subr.mxu0 0.0
        %1170 = vmatpush1.msra.mxu0 0.0
        %1171 = vmatprep.subr.mxu0 0.0
        %1172 = vmatpush1.msra.mxu0 0.0
        %1173 = vmatprep.subr.mxu0 0.0
        %1174 = vmatpush1.msra.mxu0 0.0
        %1175 = vmatprep.subr.mxu0 0.0
        %1176 = vmatpush1.msra.mxu0 0.0
        %1177 = vmatprep.subr.mxu0 0.0
        %1178 = vmatpush1.msra.mxu0 0.0
        %1179 = vmatprep.subr.mxu0 0.0
        %1180 = vmatpush1.msra.mxu0 0.0
        %1181 = vmatprep.subr.mxu0 0.0
        %1182 = vmatpush1.msra.mxu0 0.0
        %1183 = vmatprep.subr.mxu0 0.0
        %1184 = vmatpush1.msra.mxu0 0.0
        %1185 = vmatprep.subr.mxu0 0.0
        %1186 = vmatpush1.msra.mxu0 0.0
        %1187 = vmatprep.subr.mxu0 0.0
        %1188 = vmatpush1.msra.mxu0 0.0
        %1189 = vmatprep.subr.mxu0 0.0
        %1190 = vmatpush1.msra.mxu0 0.0
        %1191 = vmatprep.subr.mxu0 0.0
        %1192 = vmatpush1.msra.mxu0 0.0
        %1193 = vmatprep.subr.mxu0 0.0
        %1194 = vmatpush1.msra.mxu0 0.0
        %1195 = vmatprep.subr.mxu0 0.0
        %1196 = vmatpush1.msra.mxu0 0.0
        %1197 = vmatprep.subr.mxu0 0.0
        %1198 = vmatpush1.msra.mxu0 0.0
        %1199 = vmatprep.subr.mxu0 0.0
        %1200 = vmatpush1.msra.mxu0 0.0
        %1201 = vmatprep.subr.mxu0 0.0
        %1202 = vmatpush1.msra.mxu0 0.0
        %1203 = vmatprep.subr.mxu0 0.0
        %1204 = vmatpush1.msra.mxu0 0.0
        %1205 = vmatprep.subr.mxu0 0.0
        %1206 = vmatpush1.msra.mxu0 0.0
        %1207 = vmatprep.subr.mxu0 0.0
        %1208 = vmatpush1.msra.mxu0 0.0
        %1209 = vmatprep.subr.mxu0 0.0
        %1210 = vmatpush1.msra.mxu0 0.0
        %1211 = vmatprep.mubr.f32.mxu0 0.0
        %1212 = vmatmul.mubr.f32.gmra.mrb[0].mxu0 %v1005
        %v1213 = vpop.f32.mrb[0].mxu0
        %v1214 = vadd.f32 %v1002, %v1213
        %v1215 = vpop.f32.mrb[0].mxu0
        %1216 = vdwg.mxu0
        %v1217 = vld [vmem:[#allocation2] sm:$0xff]
        %v1218 = vadd.f32 %v1217, %v1074
        %v1219 = vxor.u32 %v1218, 2147483648
        %v1220 = vmul.f32 %v1219, 1.442695
        %v1221 = vpow.pop %v1220
        %v1222 = vadd.f32 %v1221, 1.0
        %v1223 = vrcp.pop %v1222
        %v1224 = vmul.f32 1.0, %v1223
        %v1225 = vld [vmem:[#allocation3] sm:$0xff]
        %v1226 = vadd.f32 %v1225, %v1144
        %v1227 = vxor.u32 %v1226, 2147483648
        %v1228 = vmul.f32 %v1227, 1.442695
        %v1229 = vpow.pop %v1228
        %v1230 = vadd.f32 %v1229, 1.0
        %v1231 = vrcp.pop %v1230
        %v1232 = vmul.f32 1.0, %v1231
        %v1233 = vld [vmem:[#allocation4] sm:$0xff]
        %v1234 = vmul.f32 %v1224, %v1214
        %v1235 = vadd.f32 %v1233, %v1234
        %v1236 = vtanh.pop %v1235
        %v1237 = vsub.f32 1.0, %v1232
        %v1238 = vmul.f32 %v1237, %v1236
        %v1239 = vmul.f32 %v1232, 0.0
        %v1240 = vadd.f32 %v1238, %v1239
        %vm1241 = vcmp.eq.s32.totalorder %v984, 0
        %v1242 = vsel %vm1241, %v1240, 0.0
        %v1244 = vsel %vm529, %v1240, 0
        %1246 = vmatprep.subr.mxu0 0.0
        %1247 = vmatpush1.msra.mxu0 %v985
        %1248 = vmatprep.subr.mxu0 0.0
        %1249 = vmatpush1.msra.mxu0 %v986
        %1250 = vmatprep.subr.mxu0 0.0
        %1251 = vmatpush1.msra.mxu0 %v987
        %1252 = vmatprep.subr.mxu0 0.0
        %1253 = vmatpush1.msra.mxu0 %v988
        %1254 = vmatprep.subr.mxu0 0.0
        %1255 = vmatpush1.msra.mxu0 0.0
        %1256 = vmatprep.subr.mxu0 0.0
        %1257 = vmatpush1.msra.mxu0 0.0
        %1258 = vmatprep.subr.mxu0 0.0
        %1259 = vmatpush1.msra.mxu0 0.0
        %1260 = vmatprep.subr.mxu0 0.0
        %1261 = vmatpush1.msra.mxu0 0.0
        %1262 = vmatprep.subr.mxu0 0.0
        %1263 = vmatpush1.msra.mxu0 0.0
        %1264 = vmatprep.subr.mxu0 0.0
        %1265 = vmatpush1.msra.mxu0 0.0
        %1266 = vmatprep.subr.mxu0 0.0
        %1267 = vmatpush1.msra.mxu0 0.0
        %1268 = vmatprep.subr.mxu0 0.0
        %1269 = vmatpush1.msra.mxu0 0.0
        %1270 = vmatprep.subr.mxu0 0.0
        %1271 = vmatpush1.msra.mxu0 0.0
        %1272 = vmatprep.subr.mxu0 0.0
        %1273 = vmatpush1.msra.mxu0 0.0
        %1274 = vmatprep.subr.mxu0 0.0
        %1275 = vmatpush1.msra.mxu0 0.0
        %1276 = vmatprep.subr.mxu0 0.0
        %1277 = vmatpush1.msra.mxu0 0.0
        %1278 = vmatprep.subr.mxu0 0.0
        %1279 = vmatpush1.msra.mxu0 0.0
        %1280 = vmatprep.subr.mxu0 0.0
        %1281 = vmatpush1.msra.mxu0 0.0
        %1282 = vmatprep.subr.mxu0 0.0
        %1283 = vmatpush1.msra.mxu0 0.0
        %1284 = vmatprep.subr.mxu0 0.0
        %1285 = vmatpush1.msra.mxu0 0.0
        %1286 = vmatprep.subr.mxu0 0.0
        %1287 = vmatpush1.msra.mxu0 0.0
        %1288 = vmatprep.subr.mxu0 0.0
        %1289 = vmatpush1.msra.mxu0 0.0
        %1290 = vmatprep.subr.mxu0 0.0
        %1291 = vmatpush1.msra.mxu0 0.0
        %1292 = vmatprep.subr.mxu0 0.0
        %1293 = vmatpush1.msra.mxu0 0.0
        %1294 = vmatprep.subr.mxu0 0.0
        %1295 = vmatpush1.msra.mxu0 0.0
        %1296 = vmatprep.subr.mxu0 0.0
        %1297 = vmatpush1.msra.mxu0 0.0
        %1298 = vmatprep.subr.mxu0 0.0
        %1299 = vmatpush1.msra.mxu0 0.0
        %1300 = vmatprep.subr.mxu0 0.0
        %1301 = vmatpush1.msra.mxu0 0.0
        %1302 = vmatprep.subr.mxu0 0.0
        %1303 = vmatpush1.msra.mxu0 0.0
        %1304 = vmatprep.subr.mxu0 0.0
        %1305 = vmatpush1.msra.mxu0 0.0
        %1306 = vmatprep.subr.mxu0 0.0
        %1307 = vmatpush1.msra.mxu0 0.0
        %1308 = vmatprep.subr.mxu0 0.0
        %1309 = vmatpush1.msra.mxu0 0.0
        %1310 = vmatprep.mubr.f32.mxu0 0.0
        %1311 = vmatmul.mubr.f32.gmra.mrb[0].mxu0 %v1244
        %v1312 = vpop.f32.mrb[0].mxu0
        %v1313 = vadd.f32 0.0, %v1312
        %v1314 = vpop.f32.mrb[0].mxu0
        %1315 = vdwg.mxu0
        %1316 = vmatprep.subr.mxu0 0.0
        %1317 = vmatpush1.msra.mxu0 %v989
        %1318 = vmatprep.subr.mxu0 0.0
        %1319 = vmatpush1.msra.mxu0 %v990
        %1320 = vmatprep.subr.mxu0 0.0
        %1321 = vmatpush1.msra.mxu0 %v991
        %1322 = vmatprep.subr.mxu0 0.0
        %1323 = vmatpush1.msra.mxu0 %v992
        %1324 = vmatprep.subr.mxu0 0.0
        %1325 = vmatpush1.msra.mxu0 0.0
        %1326 = vmatprep.subr.mxu0 0.0
        %1327 = vmatpush1.msra.mxu0 0.0
        %1328 = vmatprep.subr.mxu0 0.0
        %1329 = vmatpush1.msra.mxu0 0.0
        %1330 = vmatprep.subr.mxu0 0.0
        %1331 = vmatpush1.msra.mxu0 0.0
        %1332 = vmatprep.subr.mxu0 0.0
        %1333 = vmatpush1.msra.mxu0 0.0
        %1334 = vmatprep.subr.mxu0 0.0
        %1335 = vmatpush1.msra.mxu0 0.0
        %1336 = vmatprep.subr.mxu0 0.0
        %1337 = vmatpush1.msra.mxu0 0.0
        %1338 = vmatprep.subr.mxu0 0.0
        %1339 = vmatpush1.msra.mxu0 0.0
        %1340 = vmatprep.subr.mxu0 0.0
        %1341 = vmatpush1.msra.mxu0 0.0
        %1342 = vmatprep.subr.mxu0 0.0
        %1343 = vmatpush1.msra.mxu0 0.0
        %1344 = vmatprep.subr.mxu0 0.0
        %1345 = vmatpush1.msra.mxu0 0.0
        %1346 = vmatprep.subr.mxu0 0.0
        %1347 = vmatpush1.msra.mxu0 0.0
        %1348 = vmatprep.subr.mxu0 0.0
        %1349 = vmatpush1.msra.mxu0 0.0
        %1350 = vmatprep.subr.mxu0 0.0
        %1351 = vmatpush1.msra.mxu0 0.0
        %1352 = vmatprep.subr.mxu0 0.0
        %1353 = vmatpush1.msra.mxu0 0.0
        %1354 = vmatprep.subr.mxu0 0.0
        %1355 = vmatpush1.msra.mxu0 0.0
        %1356 = vmatprep.subr.mxu0 0.0
        %1357 = vmatpush1.msra.mxu0 0.0
        %1358 = vmatprep.subr.mxu0 0.0
        %1359 = vmatpush1.msra.mxu0 0.0
        %1360 = vmatprep.subr.mxu0 0.0
        %1361 = vmatpush1.msra.mxu0 0.0
        %1362 = vmatprep.subr.mxu0 0.0
        %1363 = vmatpush1.msra.mxu0 0.0
        %1364 = vmatprep.subr.mxu0 0.0
        %1365 = vmatpush1.msra.mxu0 0.0
        %1366 = vmatprep.subr.mxu0 0.0
        %1367 = vmatpush1.msra.mxu0 0.0
        %1368 = vmatprep.subr.mxu0 0.0
        %1369 = vmatpush1.msra.mxu0 0.0
        %1370 = vmatprep.subr.mxu0 0.0
        %1371 = vmatpush1.msra.mxu0 0.0
        %1372 = vmatprep.subr.mxu0 0.0
        %1373 = vmatpush1.msra.mxu0 0.0
        %1374 = vmatprep.subr.mxu0 0.0
        %1375 = vmatpush1.msra.mxu0 0.0
        %1376 = vmatprep.subr.mxu0 0.0
        %1377 = vmatpush1.msra.mxu0 0.0
        %1378 = vmatprep.subr.mxu0 0.0
        %1379 = vmatpush1.msra.mxu0 0.0
        %1380 = vmatprep.mubr.f32.mxu0 0.0
        %1381 = vmatmul.mubr.f32.gmra.mrb[0].mxu0 %v1244
        %v1382 = vpop.f32.mrb[0].mxu0
        %v1383 = vadd.f32 0.0, %v1382
        %v1384 = vpop.f32.mrb[0].mxu0
        %1385 = vdwg.mxu0
        %1386 = vmatprep.subr.mxu0 0.0
        %1387 = vmatpush1.msra.mxu0 %v993
        %1388 = vmatprep.subr.mxu0 0.0
        %1389 = vmatpush1.msra.mxu0 %v994
        %1390 = vmatprep.subr.mxu0 0.0
        %1391 = vmatpush1.msra.mxu0 %v995
        %1392 = vmatprep.subr.mxu0 0.0
        %1393 = vmatpush1.msra.mxu0 %v996
        %1394 = vmatprep.subr.mxu0 0.0
        %1395 = vmatpush1.msra.mxu0 0.0
        %1396 = vmatprep.subr.mxu0 0.0
        %1397 = vmatpush1.msra.mxu0 0.0
        %1398 = vmatprep.subr.mxu0 0.0
        %1399 = vmatpush1.msra.mxu0 0.0
        %1400 = vmatprep.subr.mxu0 0.0
        %1401 = vmatpush1.msra.mxu0 0.0
        %1402 = vmatprep.subr.mxu0 0.0
        %1403 = vmatpush1.msra.mxu0 0.0
        %1404 = vmatprep.subr.mxu0 0.0
        %1405 = vmatpush1.msra.mxu0 0.0
        %1406 = vmatprep.subr.mxu0 0.0
        %1407 = vmatpush1.msra.mxu0 0.0
        %1408 = vmatprep.subr.mxu0 0.0
        %1409 = vmatpush1.msra.mxu0 0.0
        %1410 = vmatprep.subr.mxu0 0.0
        %1411 = vmatpush1.msra.mxu0 0.0
        %1412 = vmatprep.subr.mxu0 0.0
        %1413 = vmatpush1.msra.mxu0 0.0
        %1414 = vmatprep.subr.mxu0 0.0
        %1415 = vmatpush1.msra.mxu0 0.0
        %1416 = vmatprep.subr.mxu0 0.0
        %1417 = vmatpush1.msra.mxu0 0.0
        %1418 = vmatprep.subr.mxu0 0.0
        %1419 = vmatpush1.msra.mxu0 0.0
        %1420 = vmatprep.subr.mxu0 0.0
        %1421 = vmatpush1.msra.mxu0 0.0
        %1422 = vmatprep.subr.mxu0 0.0
        %1423 = vmatpush1.msra.mxu0 0.0
        %1424 = vmatprep.subr.mxu0 0.0
        %1425 = vmatpush1.msra.mxu0 0.0
        %1426 = vmatprep.subr.mxu0 0.0
        %1427 = vmatpush1.msra.mxu0 0.0
        %1428 = vmatprep.subr.mxu0 0.0
        %1429 = vmatpush1.msra.mxu0 0.0
        %1430 = vmatprep.subr.mxu0 0.0
        %1431 = vmatpush1.msra.mxu0 0.0
        %1432 = vmatprep.subr.mxu0 0.0
        %1433 = vmatpush1.msra.mxu0 0.0
        %1434 = vmatprep.subr.mxu0 0.0
        %1435 = vmatpush1.msra.mxu0 0.0
        %1436 = vmatprep.subr.mxu0 0.0
        %1437 = vmatpush1.msra.mxu0 0.0
        %1438 = vmatprep.subr.mxu0 0.0
        %1439 = vmatpush1.msra.mxu0 0.0
        %1440 = vmatprep.subr.mxu0 0.0
        %1441 = vmatpush1.msra.mxu0 0.0
        %1442 = vmatprep.subr.mxu0 0.0
        %1443 = vmatpush1.msra.mxu0 0.0
        %1444 = vmatprep.subr.mxu0 0.0
        %1445 = vmatpush1.msra.mxu0 0.0
        %1446 = vmatprep.subr.mxu0 0.0
        %1447 = vmatpush1.msra.mxu0 0.0
        %1448 = vmatprep.subr.mxu0 0.0
        %1449 = vmatpush1.msra.mxu0 0.0
        %1450 = vmatprep.mubr.f32.mxu0 0.0
        %1451 = vmatmul.mubr.f32.gmra.mrb[0].mxu0 %v1244
        %v1452 = vpop.f32.mrb[0].mxu0
        %v1453 = vadd.f32 %v1002, %v1452
        %v1454 = vpop.f32.mrb[0].mxu0
        %1455 = vdwg.mxu0
        %s1456 = scalar_lea.vmem [#allocation2], 8
        %v1457 = vld [vmem:[%s1456] sm:$0xff]
        %v1458 = vadd.f32 %v1457, %v1313
        %v1459 = vxor.u32 %v1458, 2147483648
        %v1460 = vmul.f32 %v1459, 1.442695
        %v1461 = vpow.pop %v1460
        %v1462 = vadd.f32 %v1461, 1.0
        %v1463 = vrcp.pop %v1462
        %v1464 = vmul.f32 1.0, %v1463
        %s1465 = scalar_lea.vmem [#allocation3], 8
        %v1466 = vld [vmem:[%s1465] sm:$0xff]
        %v1467 = vadd.f32 %v1466, %v1383
        %v1468 = vxor.u32 %v1467, 2147483648
        %v1469 = vmul.f32 %v1468, 1.442695
        %v1470 = vpow.pop %v1469
        %v1471 = vadd.f32 %v1470, 1.0
        %v1472 = vrcp.pop %v1471
        %v1473 = vmul.f32 1.0, %v1472
        %s1474 = scalar_lea.vmem [#allocation4], 8
        %v1475 = vld [vmem:[%s1474] sm:$0xff]
        %v1476 = vmul.f32 %v1464, %v1453
        %v1477 = vadd.f32 %v1475, %v1476
        %v1478 = vtanh.pop %v1477
        %v1479 = vsub.f32 1.0, %v1473
        %v1480 = vmul.f32 %v1479, %v1478
        %v1481 = vmul.f32 %v1473, %v1240
        %v1482 = vadd.f32 %v1480, %v1481
        %vm1483 = vcmp.eq.s32.totalorder %v984, 1
        %v1484 = vsel %vm1483, %v1482, %v1242
        %v1486 = vsel %vm529, %v1482, 0
        %1488 = vmatprep.subr.mxu0 0.0
        %1489 = vmatpush1.msra.mxu0 %v985
        %1490 = vmatprep.subr.mxu0 0.0
        %1491 = vmatpush1.msra.mxu0 %v986
        %1492 = vmatprep.subr.mxu0 0.0
        %1493 = vmatpush1.msra.mxu0 %v987
        %1494 = vmatprep.subr.mxu0 0.0
        %1495 = vmatpush1.msra.mxu0 %v988
        %1496 = vmatprep.subr.mxu0 0.0
        %1497 = vmatpush1.msra.mxu0 0.0
        %1498 = vmatprep.subr.mxu0 0.0
        %1499 = vmatpush1.msra.mxu0 0.0
        %1500 = vmatprep.subr.mxu0 0.0
        %1501 = vmatpush1.msra.mxu0 0.0
        %1502 = vmatprep.subr.mxu0 0.0
        %1503 = vmatpush1.msra.mxu0 0.0
        %1504 = vmatprep.subr.mxu0 0.0
        %1505 = vmatpush1.msra.mxu0 0.0
        %1506 = vmatprep.subr.mxu0 0.0
        %1507 = vmatpush1.msra.mxu0 0.0
        %1508 = vmatprep.subr.mxu0 0.0
        %1509 = vmatpush1.msra.mxu0 0.0
        %1510 = vmatprep.subr.mxu0 0.0
        %1511 = vmatpush1.msra.mxu0 0.0
        %1512 = vmatprep.subr.mxu0 0.0
        %1513 = vmatpush1.msra.mxu0 0.0
        %1514 = vmatprep.subr.mxu0 0.0
        %1515 = vmatpush1.msra.mxu0 0.0
        %1516 = vmatprep.subr.mxu0 0.0
        %1517 = vmatpush1.msra.mxu0 0.0
        %1518 = vmatprep.subr.mxu0 0.0
        %1519 = vmatpush1.msra.mxu0 0.0
        %1520 = vmatprep.subr.mxu0 0.0
        %1521 = vmatpush1.msra.mxu0 0.0
        %1522 = vmatprep.subr.mxu0 0.0
        %1523 = vmatpush1.msra.mxu0 0.0
        %1524 = vmatprep.subr.mxu0 0.0
        %1525 = vmatpush1.msra.mxu0 0.0
        %1526 = vmatprep.subr.mxu0 0.0
        %1527 = vmatpush1.msra.mxu0 0.0
        %1528 = vmatprep.subr.mxu0 0.0
        %1529 = vmatpush1.msra.mxu0 0.0
        %1530 = vmatprep.subr.mxu0 0.0
        %1531 = vmatpush1.msra.mxu0 0.0
        %1532 = vmatprep.subr.mxu0 0.0
        %1533 = vmatpush1.msra.mxu0 0.0
        %1534 = vmatprep.subr.mxu0 0.0
        %1535 = vmatpush1.msra.mxu0 0.0
        %1536 = vmatprep.subr.mxu0 0.0
        %1537 = vmatpush1.msra.mxu0 0.0
        %1538 = vmatprep.subr.mxu0 0.0
        %1539 = vmatpush1.msra.mxu0 0.0
        %1540 = vmatprep.subr.mxu0 0.0
        %1541 = vmatpush1.msra.mxu0 0.0
        %1542 = vmatprep.subr.mxu0 0.0
        %1543 = vmatpush1.msra.mxu0 0.0
        %1544 = vmatprep.subr.mxu0 0.0
        %1545 = vmatpush1.msra.mxu0 0.0
        %1546 = vmatprep.subr.mxu0 0.0
        %1547 = vmatpush1.msra.mxu0 0.0
        %1548 = vmatprep.subr.mxu0 0.0
        %1549 = vmatpush1.msra.mxu0 0.0
        %1550 = vmatprep.subr.mxu0 0.0
        %1551 = vmatpush1.msra.mxu0 0.0
        %1552 = vmatprep.mubr.f32.mxu0 0.0
        %1553 = vmatmul.mubr.f32.gmra.mrb[0].mxu0 %v1486
        %v1554 = vpop.f32.mrb[0].mxu0
        %v1555 = vadd.f32 0.0, %v1554
        %v1556 = vpop.f32.mrb[0].mxu0
        %1557 = vdwg.mxu0
        %1558 = vmatprep.subr.mxu0 0.0
        %1559 = vmatpush1.msra.mxu0 %v989
        %1560 = vmatprep.subr.mxu0 0.0
        %1561 = vmatpush1.msra.mxu0 %v990
        %1562 = vmatprep.subr.mxu0 0.0
        %1563 = vmatpush1.msra.mxu0 %v991
        %1564 = vmatprep.subr.mxu0 0.0
        %1565 = vmatpush1.msra.mxu0 %v992
        %1566 = vmatprep.subr.mxu0 0.0
        %1567 = vmatpush1.msra.mxu0 0.0
        %1568 = vmatprep.subr.mxu0 0.0
        %1569 = vmatpush1.msra.mxu0 0.0
        %1570 = vmatprep.subr.mxu0 0.0
        %1571 = vmatpush1.msra.mxu0 0.0
        %1572 = vmatprep.subr.mxu0 0.0
        %1573 = vmatpush1.msra.mxu0 0.0
        %1574 = vmatprep.subr.mxu0 0.0
        %1575 = vmatpush1.msra.mxu0 0.0
        %1576 = vmatprep.subr.mxu0 0.0
        %1577 = vmatpush1.msra.mxu0 0.0
        %1578 = vmatprep.subr.mxu0 0.0
        %1579 = vmatpush1.msra.mxu0 0.0
        %1580 = vmatprep.subr.mxu0 0.0
        %1581 = vmatpush1.msra.mxu0 0.0
        %1582 = vmatprep.subr.mxu0 0.0
        %1583 = vmatpush1.msra.mxu0 0.0
        %1584 = vmatprep.subr.mxu0 0.0
        %1585 = vmatpush1.msra.mxu0 0.0
        %1586 = vmatprep.subr.mxu0 0.0
        %1587 = vmatpush1.msra.mxu0 0.0
        %1588 = vmatprep.subr.mxu0 0.0
        %1589 = vmatpush1.msra.mxu0 0.0
        %1590 = vmatprep.subr.mxu0 0.0
        %1591 = vmatpush1.msra.mxu0 0.0
        %1592 = vmatprep.subr.mxu0 0.0
        %1593 = vmatpush1.msra.mxu0 0.0
        %1594 = vmatprep.subr.mxu0 0.0
        %1595 = vmatpush1.msra.mxu0 0.0
        %1596 = vmatprep.subr.mxu0 0.0
        %1597 = vmatpush1.msra.mxu0 0.0
        %1598 = vmatprep.subr.mxu0 0.0
        %1599 = vmatpush1.msra.mxu0 0.0
        %1600 = vmatprep.subr.mxu0 0.0
        %1601 = vmatpush1.msra.mxu0 0.0
        %1602 = vmatprep.subr.mxu0 0.0
        %1603 = vmatpush1.msra.mxu0 0.0
        %1604 = vmatprep.subr.mxu0 0.0
        %1605 = vmatpush1.msra.mxu0 0.0
        %1606 = vmatprep.subr.mxu0 0.0
        %1607 = vmatpush1.msra.mxu0 0.0
        %1608 = vmatprep.subr.mxu0 0.0
        %1609 = vmatpush1.msra.mxu0 0.0
        %1610 = vmatprep.subr.mxu0 0.0
        %1611 = vmatpush1.msra.mxu0 0.0
        %1612 = vmatprep.subr.mxu0 0.0
        %1613 = vmatpush1.msra.mxu0 0.0
        %1614 = vmatprep.subr.mxu0 0.0
        %1615 = vmatpush1.msra.mxu0 0.0
        %1616 = vmatprep.subr.mxu0 0.0
        %1617 = vmatpush1.msra.mxu0 0.0
        %1618 = vmatprep.subr.mxu0 0.0
        %1619 = vmatpush1.msra.mxu0 0.0
        %1620 = vmatprep.subr.mxu0 0.0
        %1621 = vmatpush1.msra.mxu0 0.0
        %1622 = vmatprep.mubr.f32.mxu0 0.0
        %1623 = vmatmul.mubr.f32.gmra.mrb[0].mxu0 %v1486
        %v1624 = vpop.f32.mrb[0].mxu0
        %v1625 = vadd.f32 0.0, %v1624
        %v1626 = vpop.f32.mrb[0].mxu0
        %1627 = vdwg.mxu0
        %1628 = vmatprep.subr.mxu0 0.0
        %1629 = vmatpush1.msra.mxu0 %v993
        %1630 = vmatprep.subr.mxu0 0.0
        %1631 = vmatpush1.msra.mxu0 %v994
        %1632 = vmatprep.subr.mxu0 0.0
        %1633 = vmatpush1.msra.mxu0 %v995
        %1634 = vmatprep.subr.mxu0 0.0
        %1635 = vmatpush1.msra.mxu0 %v996
        %1636 = vmatprep.subr.mxu0 0.0
        %1637 = vmatpush1.msra.mxu0 0.0
        %1638 = vmatprep.subr.mxu0 0.0
        %1639 = vmatpush1.msra.mxu0 0.0
        %1640 = vmatprep.subr.mxu0 0.0
        %1641 = vmatpush1.msra.mxu0 0.0
        %1642 = vmatprep.subr.mxu0 0.0
        %1643 = vmatpush1.msra.mxu0 0.0
        %1644 = vmatprep.subr.mxu0 0.0
        %1645 = vmatpush1.msra.mxu0 0.0
        %1646 = vmatprep.subr.mxu0 0.0
        %1647 = vmatpush1.msra.mxu0 0.0
        %1648 = vmatprep.subr.mxu0 0.0
        %1649 = vmatpush1.msra.mxu0 0.0
        %1650 = vmatprep.subr.mxu0 0.0
        %1651 = vmatpush1.msra.mxu0 0.0
        %1652 = vmatprep.subr.mxu0 0.0
        %1653 = vmatpush1.msra.mxu0 0.0
        %1654 = vmatprep.subr.mxu0 0.0
        %1655 = vmatpush1.msra.mxu0 0.0
        %1656 = vmatprep.subr.mxu0 0.0
        %1657 = vmatpush1.msra.mxu0 0.0
        %1658 = vmatprep.subr.mxu0 0.0
        %1659 = vmatpush1.msra.mxu0 0.0
        %1660 = vmatprep.subr.mxu0 0.0
        %1661 = vmatpush1.msra.mxu0 0.0
        %1662 = vmatprep.subr.mxu0 0.0
        %1663 = vmatpush1.msra.mxu0 0.0
        %1664 = vmatprep.subr.mxu0 0.0
        %1665 = vmatpush1.msra.mxu0 0.0
        %1666 = vmatprep.subr.mxu0 0.0
        %1667 = vmatpush1.msra.mxu0 0.0
        %1668 = vmatprep.subr.mxu0 0.0
        %1669 = vmatpush1.msra.mxu0 0.0
        %1670 = vmatprep.subr.mxu0 0.0
        %1671 = vmatpush1.msra.mxu0 0.0
        %1672 = vmatprep.subr.mxu0 0.0
        %1673 = vmatpush1.msra.mxu0 0.0
        %1674 = vmatprep.subr.mxu0 0.0
        %1675 = vmatpush1.msra.mxu0 0.0
        %1676 = vmatprep.subr.mxu0 0.0
        %1677 = vmatpush1.msra.mxu0 0.0
        %1678 = vmatprep.subr.mxu0 0.0
        %1679 = vmatpush1.msra.mxu0 0.0
        %1680 = vmatprep.subr.mxu0 0.0
        %1681 = vmatpush1.msra.mxu0 0.0
        %1682 = vmatprep.subr.mxu0 0.0
        %1683 = vmatpush1.msra.mxu0 0.0
        %1684 = vmatprep.subr.mxu0 0.0
        %1685 = vmatpush1.msra.mxu0 0.0
        %1686 = vmatprep.subr.mxu0 0.0
        %1687 = vmatpush1.msra.mxu0 0.0
        %1688 = vmatprep.subr.mxu0 0.0
        %1689 = vmatpush1.msra.mxu0 0.0
        %1690 = vmatprep.subr.mxu0 0.0
        %1691 = vmatpush1.msra.mxu0 0.0
        %1692 = vmatprep.mubr.f32.mxu0 0.0
        %1693 = vmatmul.mubr.f32.gmra.mrb[0].mxu0 %v1486
        %v1694 = vpop.f32.mrb[0].mxu0
        %v1695 = vadd.f32 %v1002, %v1694
        %v1696 = vpop.f32.mrb[0].mxu0
        %1697 = vdwg.mxu0
        %s1698 = scalar_lea.vmem [#allocation2], 16
        %v1699 = vld [vmem:[%s1698] sm:$0xff]
        %v1700 = vadd.f32 %v1699, %v1555
        %v1701 = vxor.u32 %v1700, 2147483648
        %v1702 = vmul.f32 %v1701, 1.442695
        %v1703 = vpow.pop %v1702
        %v1704 = vadd.f32 %v1703, 1.0
        %v1705 = vrcp.pop %v1704
        %v1706 = vmul.f32 1.0, %v1705
        %s1707 = scalar_lea.vmem [#allocation3], 16
        %v1708 = vld [vmem:[%s1707] sm:$0xff]
        %v1709 = vadd.f32 %v1708, %v1625
        %v1710 = vxor.u32 %v1709, 2147483648
        %v1711 = vmul.f32 %v1710, 1.442695
        %v1712 = vpow.pop %v1711
        %v1713 = vadd.f32 %v1712, 1.0
        %v1714 = vrcp.pop %v1713
        %v1715 = vmul.f32 1.0, %v1714
        %s1716 = scalar_lea.vmem [#allocation4], 16
        %v1717 = vld [vmem:[%s1716] sm:$0xff]
        %v1718 = vmul.f32 %v1706, %v1695
        %v1719 = vadd.f32 %v1717, %v1718
        %v1720 = vtanh.pop %v1719
        %v1721 = vsub.f32 1.0, %v1715
        %v1722 = vmul.f32 %v1721, %v1720
        %v1723 = vmul.f32 %v1715, %v1482
        %v1724 = vadd.f32 %v1722, %v1723
        %vm1725 = vcmp.eq.s32.totalorder %v984, 2
        %v1726 = vsel %vm1725, %v1724, %v1484
        %v1728 = vsel %vm529, %v1724, 0
        %1730 = vmatprep.subr.mxu0 0.0
        %1731 = vmatpush1.msra.mxu0 %v985
        %1732 = vmatprep.subr.mxu0 0.0
        %1733 = vmatpush1.msra.mxu0 %v986
        %1734 = vmatprep.subr.mxu0 0.0
        %1735 = vmatpush1.msra.mxu0 %v987
        %1736 = vmatprep.subr.mxu0 0.0
        %1737 = vmatpush1.msra.mxu0 %v988
        %1738 = vmatprep.subr.mxu0 0.0
        %1739 = vmatpush1.msra.mxu0 0.0
        %1740 = vmatprep.subr.mxu0 0.0
        %1741 = vmatpush1.msra.mxu0 0.0
        %1742 = vmatprep.subr.mxu0 0.0
        %1743 = vmatpush1.msra.mxu0 0.0
        %1744 = vmatprep.subr.mxu0 0.0
        %1745 = vmatpush1.msra.mxu0 0.0
        %1746 = vmatprep.subr.mxu0 0.0
        %1747 = vmatpush1.msra.mxu0 0.0
        %1748 = vmatprep.subr.mxu0 0.0
        %1749 = vmatpush1.msra.mxu0 0.0
        %1750 = vmatprep.subr.mxu0 0.0
        %1751 = vmatpush1.msra.mxu0 0.0
        %1752 = vmatprep.subr.mxu0 0.0
        %1753 = vmatpush1.msra.mxu0 0.0
        %1754 = vmatprep.subr.mxu0 0.0
        %1755 = vmatpush1.msra.mxu0 0.0
        %1756 = vmatprep.subr.mxu0 0.0
        %1757 = vmatpush1.msra.mxu0 0.0
        %1758 = vmatprep.subr.mxu0 0.0
        %1759 = vmatpush1.msra.mxu0 0.0
        %1760 = vmatprep.subr.mxu0 0.0
        %1761 = vmatpush1.msra.mxu0 0.0
        %1762 = vmatprep.subr.mxu0 0.0
        %1763 = vmatpush1.msra.mxu0 0.0
        %1764 = vmatprep.subr.mxu0 0.0
        %1765 = vmatpush1.msra.mxu0 0.0
        %1766 = vmatprep.subr.mxu0 0.0
        %1767 = vmatpush1.msra.mxu0 0.0
        %1768 = vmatprep.subr.mxu0 0.0
        %1769 = vmatpush1.msra.mxu0 0.0
        %1770 = vmatprep.subr.mxu0 0.0
        %1771 = vmatpush1.msra.mxu0 0.0
        %1772 = vmatprep.subr.mxu0 0.0
        %1773 = vmatpush1.msra.mxu0 0.0
        %1774 = vmatprep.subr.mxu0 0.0
        %1775 = vmatpush1.msra.mxu0 0.0
        %1776 = vmatprep.subr.mxu0 0.0
        %1777 = vmatpush1.msra.mxu0 0.0
        %1778 = vmatprep.subr.mxu0 0.0
        %1779 = vmatpush1.msra.mxu0 0.0
        %1780 = vmatprep.subr.mxu0 0.0
        %1781 = vmatpush1.msra.mxu0 0.0
        %1782 = vmatprep.subr.mxu0 0.0
        %1783 = vmatpush1.msra.mxu0 0.0
        %1784 = vmatprep.subr.mxu0 0.0
        %1785 = vmatpush1.msra.mxu0 0.0
        %1786 = vmatprep.subr.mxu0 0.0
        %1787 = vmatpush1.msra.mxu0 0.0
        %1788 = vmatprep.subr.mxu0 0.0
        %1789 = vmatpush1.msra.mxu0 0.0
        %1790 = vmatprep.subr.mxu0 0.0
        %1791 = vmatpush1.msra.mxu0 0.0
        %1792 = vmatprep.subr.mxu0 0.0
        %1793 = vmatpush1.msra.mxu0 0.0
        %1794 = vmatprep.mubr.f32.mxu0 0.0
        %1795 = vmatmul.mubr.f32.gmra.mrb[0].mxu0 %v1728
        %v1796 = vpop.f32.mrb[0].mxu0
        %v1797 = vadd.f32 0.0, %v1796
        %v1798 = vpop.f32.mrb[0].mxu0
        %1799 = vdwg.mxu0
        %1800 = vmatprep.subr.mxu0 0.0
        %1801 = vmatpush1.msra.mxu0 %v989
        %1802 = vmatprep.subr.mxu0 0.0
        %1803 = vmatpush1.msra.mxu0 %v990
        %1804 = vmatprep.subr.mxu0 0.0
        %1805 = vmatpush1.msra.mxu0 %v991
        %1806 = vmatprep.subr.mxu0 0.0
        %1807 = vmatpush1.msra.mxu0 %v992
        %1808 = vmatprep.subr.mxu0 0.0
        %1809 = vmatpush1.msra.mxu0 0.0
        %1810 = vmatprep.subr.mxu0 0.0
        %1811 = vmatpush1.msra.mxu0 0.0
        %1812 = vmatprep.subr.mxu0 0.0
        %1813 = vmatpush1.msra.mxu0 0.0
        %1814 = vmatprep.subr.mxu0 0.0
        %1815 = vmatpush1.msra.mxu0 0.0
        %1816 = vmatprep.subr.mxu0 0.0
        %1817 = vmatpush1.msra.mxu0 0.0
        %1818 = vmatprep.subr.mxu0 0.0
        %1819 = vmatpush1.msra.mxu0 0.0
        %1820 = vmatprep.subr.mxu0 0.0
        %1821 = vmatpush1.msra.mxu0 0.0
        %1822 = vmatprep.subr.mxu0 0.0
        %1823 = vmatpush1.msra.mxu0 0.0
        %1824 = vmatprep.subr.mxu0 0.0
        %1825 = vmatpush1.msra.mxu0 0.0
        %1826 = vmatprep.subr.mxu0 0.0
        %1827 = vmatpush1.msra.mxu0 0.0
        %1828 = vmatprep.subr.mxu0 0.0
        %1829 = vmatpush1.msra.mxu0 0.0
        %1830 = vmatprep.subr.mxu0 0.0
        %1831 = vmatpush1.msra.mxu0 0.0
        %1832 = vmatprep.subr.mxu0 0.0
        %1833 = vmatpush1.msra.mxu0 0.0
        %1834 = vmatprep.subr.mxu0 0.0
        %1835 = vmatpush1.msra.mxu0 0.0
        %1836 = vmatprep.subr.mxu0 0.0
        %1837 = vmatpush1.msra.mxu0 0.0
        %1838 = vmatprep.subr.mxu0 0.0
        %1839 = vmatpush1.msra.mxu0 0.0
        %1840 = vmatprep.subr.mxu0 0.0
        %1841 = vmatpush1.msra.mxu0 0.0
        %1842 = vmatprep.subr.mxu0 0.0
        %1843 = vmatpush1.msra.mxu0 0.0
        %1844 = vmatprep.subr.mxu0 0.0
        %1845 = vmatpush1.msra.mxu0 0.0
        %1846 = vmatprep.subr.mxu0 0.0
        %1847 = vmatpush1.msra.mxu0 0.0
        %1848 = vmatprep.subr.mxu0 0.0
        %1849 = vmatpush1.msra.mxu0 0.0
        %1850 = vmatprep.subr.mxu0 0.0
        %1851 = vmatpush1.msra.mxu0 0.0
        %1852 = vmatprep.subr.mxu0 0.0
        %1853 = vmatpush1.msra.mxu0 0.0
        %1854 = vmatprep.subr.mxu0 0.0
        %1855 = vmatpush1.msra.mxu0 0.0
        %1856 = vmatprep.subr.mxu0 0.0
        %1857 = vmatpush1.msra.mxu0 0.0
        %1858 = vmatprep.subr.mxu0 0.0
        %1859 = vmatpush1.msra.mxu0 0.0
        %1860 = vmatprep.subr.mxu0 0.0
        %1861 = vmatpush1.msra.mxu0 0.0
        %1862 = vmatprep.subr.mxu0 0.0
        %1863 = vmatpush1.msra.mxu0 0.0
        %1864 = vmatprep.mubr.f32.mxu0 0.0
        %1865 = vmatmul.mubr.f32.gmra.mrb[0].mxu0 %v1728
        %v1866 = vpop.f32.mrb[0].mxu0
        %v1867 = vadd.f32 0.0, %v1866
        %v1868 = vpop.f32.mrb[0].mxu0
        %1869 = vdwg.mxu0
        %1870 = vmatprep.subr.mxu0 0.0
        %1871 = vmatpush1.msra.mxu0 %v993
        %1872 = vmatprep.subr.mxu0 0.0
        %1873 = vmatpush1.msra.mxu0 %v994
        %1874 = vmatprep.subr.mxu0 0.0
        %1875 = vmatpush1.msra.mxu0 %v995
        %1876 = vmatprep.subr.mxu0 0.0
        %1877 = vmatpush1.msra.mxu0 %v996
        %1878 = vmatprep.subr.mxu0 0.0
        %1879 = vmatpush1.msra.mxu0 0.0
        %1880 = vmatprep.subr.mxu0 0.0
        %1881 = vmatpush1.msra.mxu0 0.0
        %1882 = vmatprep.subr.mxu0 0.0
        %1883 = vmatpush1.msra.mxu0 0.0
        %1884 = vmatprep.subr.mxu0 0.0
        %1885 = vmatpush1.msra.mxu0 0.0
        %1886 = vmatprep.subr.mxu0 0.0
        %1887 = vmatpush1.msra.mxu0 0.0
        %1888 = vmatprep.subr.mxu0 0.0
        %1889 = vmatpush1.msra.mxu0 0.0
        %1890 = vmatprep.subr.mxu0 0.0
        %1891 = vmatpush1.msra.mxu0 0.0
        %1892 = vmatprep.subr.mxu0 0.0
        %1893 = vmatpush1.msra.mxu0 0.0
        %1894 = vmatprep.subr.mxu0 0.0
        %1895 = vmatpush1.msra.mxu0 0.0
        %1896 = vmatprep.subr.mxu0 0.0
        %1897 = vmatpush1.msra.mxu0 0.0
        %1898 = vmatprep.subr.mxu0 0.0
        %1899 = vmatpush1.msra.mxu0 0.0
        %1900 = vmatprep.subr.mxu0 0.0
        %1901 = vmatpush1.msra.mxu0 0.0
        %1902 = vmatprep.subr.mxu0 0.0
        %1903 = vmatpush1.msra.mxu0 0.0
        %1904 = vmatprep.subr.mxu0 0.0
        %1905 = vmatpush1.msra.mxu0 0.0
        %1906 = vmatprep.subr.mxu0 0.0
        %1907 = vmatpush1.msra.mxu0 0.0
        %1908 = vmatprep.subr.mxu0 0.0
        %1909 = vmatpush1.msra.mxu0 0.0
        %1910 = vmatprep.subr.mxu0 0.0
        %1911 = vmatpush1.msra.mxu0 0.0
        %1912 = vmatprep.subr.mxu0 0.0
        %1913 = vmatpush1.msra.mxu0 0.0
        %1914 = vmatprep.subr.mxu0 0.0
        %1915 = vmatpush1.msra.mxu0 0.0
        %1916 = vmatprep.subr.mxu0 0.0
        %1917 = vmatpush1.msra.mxu0 0.0
        %1918 = vmatprep.subr.mxu0 0.0
        %1919 = vmatpush1.msra.mxu0 0.0
        %1920 = vmatprep.subr.mxu0 0.0
        %1921 = vmatpush1.msra.mxu0 0.0
        %1922 = vmatprep.subr.mxu0 0.0
        %1923 = vmatpush1.msra.mxu0 0.0
        %1924 = vmatprep.subr.mxu0 0.0
        %1925 = vmatpush1.msra.mxu0 0.0
        %1926 = vmatprep.subr.mxu0 0.0
        %1927 = vmatpush1.msra.mxu0 0.0
        %1928 = vmatprep.subr.mxu0 0.0
        %1929 = vmatpush1.msra.mxu0 0.0
        %1930 = vmatprep.subr.mxu0 0.0
        %1931 = vmatpush1.msra.mxu0 0.0
        %1932 = vmatprep.subr.mxu0 0.0
        %1933 = vmatpush1.msra.mxu0 0.0
        %1934 = vmatprep.mubr.f32.mxu0 0.0
        %1935 = vmatmul.mubr.f32.gmra.mrb[0].mxu0 %v1728
        %v1936 = vpop.f32.mrb[0].mxu0
        %v1937 = vadd.f32 %v1002, %v1936
        %v1938 = vpop.f32.mrb[0].mxu0
        %1939 = vdwg.mxu0
        %s1940 = scalar_lea.vmem [#allocation2], 24
        %v1941 = vld [vmem:[%s1940] sm:$0xff]
        %v1942 = vadd.f32 %v1941, %v1797
        %v1943 = vxor.u32 %v1942, 2147483648
        %v1944 = vmul.f32 %v1943, 1.442695
        %v1945 = vpow.pop %v1944
        %v1946 = vadd.f32 %v1945, 1.0
        %v1947 = vrcp.pop %v1946
        %v1948 = vmul.f32 1.0, %v1947
        %s1949 = scalar_lea.vmem [#allocation3], 24
        %v1950 = vld [vmem:[%s1949] sm:$0xff]
        %v1951 = vadd.f32 %v1950, %v1867
        %v1952 = vxor.u32 %v1951, 2147483648
        %v1953 = vmul.f32 %v1952, 1.442695
        %v1954 = vpow.pop %v1953
        %v1955 = vadd.f32 %v1954, 1.0
        %v1956 = vrcp.pop %v1955
        %v1957 = vmul.f32 1.0, %v1956
        %s1958 = scalar_lea.vmem [#allocation4], 24
        %v1959 = vld [vmem:[%s1958] sm:$0xff]
        %v1960 = vmul.f32 %v1948, %v1937
        %v1961 = vadd.f32 %v1959, %v1960
        %v1962 = vtanh.pop %v1961
        %v1963 = vsub.f32 1.0, %v1957
        %v1964 = vmul.f32 %v1963, %v1962
        %v1965 = vmul.f32 %v1957, %v1724
        %v1966 = vadd.f32 %v1964, %v1965
        %vm1967 = vcmp.eq.s32.totalorder %v984, 3
        %v1968 = vsel %vm1967, %v1966, %v1726
        %v1970 = vsel %vm529, %v1966, 0
        %1972 = vmatprep.subr.mxu0 0.0
        %1973 = vmatpush1.msra.mxu0 %v985
        %1974 = vmatprep.subr.mxu0 0.0
        %1975 = vmatpush1.msra.mxu0 %v986
        %1976 = vmatprep.subr.mxu0 0.0
        %1977 = vmatpush1.msra.mxu0 %v987
        %1978 = vmatprep.subr.mxu0 0.0
        %1979 = vmatpush1.msra.mxu0 %v988
        %1980 = vmatprep.subr.mxu0 0.0
        %1981 = vmatpush1.msra.mxu0 0.0
        %1982 = vmatprep.subr.mxu0 0.0
        %1983 = vmatpush1.msra.mxu0 0.0
        %1984 = vmatprep.subr.mxu0 0.0
        %1985 = vmatpush1.msra.mxu0 0.0
        %1986 = vmatprep.subr.mxu0 0.0
        %1987 = vmatpush1.msra.mxu0 0.0
        %1988 = vmatprep.subr.mxu0 0.0
        %1989 = vmatpush1.msra.mxu0 0.0
        %1990 = vmatprep.subr.mxu0 0.0
        %1991 = vmatpush1.msra.mxu0 0.0
        %1992 = vmatprep.subr.mxu0 0.0
        %1993 = vmatpush1.msra.mxu0 0.0
        %1994 = vmatprep.subr.mxu0 0.0
        %1995 = vmatpush1.msra.mxu0 0.0
        %1996 = vmatprep.subr.mxu0 0.0
        %1997 = vmatpush1.msra.mxu0 0.0
        %1998 = vmatprep.subr.mxu0 0.0
        %1999 = vmatpush1.msra.mxu0 0.0
        %2000 = vmatprep.subr.mxu0 0.0
        %2001 = vmatpush1.msra.mxu0 0.0
        %2002 = vmatprep.subr.mxu0 0.0
        %2003 = vmatpush1.msra.mxu0 0.0
        %2004 = vmatprep.subr.mxu0 0.0
        %2005 = vmatpush1.msra.mxu0 0.0
        %2006 = vmatprep.subr.mxu0 0.0
        %2007 = vmatpush1.msra.mxu0 0.0
        %2008 = vmatprep.subr.mxu0 0.0
        %2009 = vmatpush1.msra.mxu0 0.0
        %2010 = vmatprep.subr.mxu0 0.0
        %2011 = vmatpush1.msra.mxu0 0.0
        %2012 = vmatprep.subr.mxu0 0.0
        %2013 = vmatpush1.msra.mxu0 0.0
        %2014 = vmatprep.subr.mxu0 0.0
        %2015 = vmatpush1.msra.mxu0 0.0
        %2016 = vmatprep.subr.mxu0 0.0
        %2017 = vmatpush1.msra.mxu0 0.0
        %2018 = vmatprep.subr.mxu0 0.0
        %2019 = vmatpush1.msra.mxu0 0.0
        %2020 = vmatprep.subr.mxu0 0.0
        %2021 = vmatpush1.msra.mxu0 0.0
        %2022 = vmatprep.subr.mxu0 0.0
        %2023 = vmatpush1.msra.mxu0 0.0
        %2024 = vmatprep.subr.mxu0 0.0
        %2025 = vmatpush1.msra.mxu0 0.0
        %2026 = vmatprep.subr.mxu0 0.0
        %2027 = vmatpush1.msra.mxu0 0.0
        %2028 = vmatprep.subr.mxu0 0.0
        %2029 = vmatpush1.msra.mxu0 0.0
        %2030 = vmatprep.subr.mxu0 0.0
        %2031 = vmatpush1.msra.mxu0 0.0
        %2032 = vmatprep.subr.mxu0 0.0
        %2033 = vmatpush1.msra.mxu0 0.0
        %2034 = vmatprep.subr.mxu0 0.0
        %2035 = vmatpush1.msra.mxu0 0.0
        %2036 = vmatprep.mubr.f32.mxu0 0.0
        %2037 = vmatmul.mubr.f32.gmra.mrb[0].mxu0 %v1970
        %v2038 = vpop.f32.mrb[0].mxu0
        %v2039 = vadd.f32 0.0, %v2038
        %v2040 = vpop.f32.mrb[0].mxu0
        %2041 = vdwg.mxu0
        %2042 = vmatprep.subr.mxu0 0.0
        %2043 = vmatpush1.msra.mxu0 %v989
        %2044 = vmatprep.subr.mxu0 0.0
        %2045 = vmatpush1.msra.mxu0 %v990
        %2046 = vmatprep.subr.mxu0 0.0
        %2047 = vmatpush1.msra.mxu0 %v991
        %2048 = vmatprep.subr.mxu0 0.0
        %2049 = vmatpush1.msra.mxu0 %v992
        %2050 = vmatprep.subr.mxu0 0.0
        %2051 = vmatpush1.msra.mxu0 0.0
        %2052 = vmatprep.subr.mxu0 0.0
        %2053 = vmatpush1.msra.mxu0 0.0
        %2054 = vmatprep.subr.mxu0 0.0
        %2055 = vmatpush1.msra.mxu0 0.0
        %2056 = vmatprep.subr.mxu0 0.0
        %2057 = vmatpush1.msra.mxu0 0.0
        %2058 = vmatprep.subr.mxu0 0.0
        %2059 = vmatpush1.msra.mxu0 0.0
        %2060 = vmatprep.subr.mxu0 0.0
        %2061 = vmatpush1.msra.mxu0 0.0
        %2062 = vmatprep.subr.mxu0 0.0
        %2063 = vmatpush1.msra.mxu0 0.0
        %2064 = vmatprep.subr.mxu0 0.0
        %2065 = vmatpush1.msra.mxu0 0.0
        %2066 = vmatprep.subr.mxu0 0.0
        %2067 = vmatpush1.msra.mxu0 0.0
        %2068 = vmatprep.subr.mxu0 0.0
        %2069 = vmatpush1.msra.mxu0 0.0
        %2070 = vmatprep.subr.mxu0 0.0
        %2071 = vmatpush1.msra.mxu0 0.0
        %2072 = vmatprep.subr.mxu0 0.0
        %2073 = vmatpush1.msra.mxu0 0.0
        %2074 = vmatprep.subr.mxu0 0.0
        %2075 = vmatpush1.msra.mxu0 0.0
        %2076 = vmatprep.subr.mxu0 0.0
        %2077 = vmatpush1.msra.mxu0 0.0
        %2078 = vmatprep.subr.mxu0 0.0
        %2079 = vmatpush1.msra.mxu0 0.0
        %2080 = vmatprep.subr.mxu0 0.0
        %2081 = vmatpush1.msra.mxu0 0.0
        %2082 = vmatprep.subr.mxu0 0.0
        %2083 = vmatpush1.msra.mxu0 0.0
        %2084 = vmatprep.subr.mxu0 0.0
        %2085 = vmatpush1.msra.mxu0 0.0
        %2086 = vmatprep.subr.mxu0 0.0
        %2087 = vmatpush1.msra.mxu0 0.0
        %2088 = vmatprep.subr.mxu0 0.0
        %2089 = vmatpush1.msra.mxu0 0.0
        %2090 = vmatprep.subr.mxu0 0.0
        %2091 = vmatpush1.msra.mxu0 0.0
        %2092 = vmatprep.subr.mxu0 0.0
        %2093 = vmatpush1.msra.mxu0 0.0
        %2094 = vmatprep.subr.mxu0 0.0
        %2095 = vmatpush1.msra.mxu0 0.0
        %2096 = vmatprep.subr.mxu0 0.0
        %2097 = vmatpush1.msra.mxu0 0.0
        %2098 = vmatprep.subr.mxu0 0.0
        %2099 = vmatpush1.msra.mxu0 0.0
        %2100 = vmatprep.subr.mxu0 0.0
        %2101 = vmatpush1.msra.mxu0 0.0
        %2102 = vmatprep.subr.mxu0 0.0
        %2103 = vmatpush1.msra.mxu0 0.0
        %2104 = vmatprep.subr.mxu0 0.0
        %2105 = vmatpush1.msra.mxu0 0.0
        %2106 = vmatprep.mubr.f32.mxu0 0.0
        %2107 = vmatmul.mubr.f32.gmra.mrb[0].mxu0 %v1970
        %v2108 = vpop.f32.mrb[0].mxu0
        %v2109 = vadd.f32 0.0, %v2108
        %v2110 = vpop.f32.mrb[0].mxu0
        %2111 = vdwg.mxu0
        %2112 = vmatprep.subr.mxu0 0.0
        %2113 = vmatpush1.msra.mxu0 %v993
        %2114 = vmatprep.subr.mxu0 0.0
        %2115 = vmatpush1.msra.mxu0 %v994
        %2116 = vmatprep.subr.mxu0 0.0
        %2117 = vmatpush1.msra.mxu0 %v995
        %2118 = vmatprep.subr.mxu0 0.0
        %2119 = vmatpush1.msra.mxu0 %v996
        %2120 = vmatprep.subr.mxu0 0.0
        %2121 = vmatpush1.msra.mxu0 0.0
        %2122 = vmatprep.subr.mxu0 0.0
        %2123 = vmatpush1.msra.mxu0 0.0
        %2124 = vmatprep.subr.mxu0 0.0
        %2125 = vmatpush1.msra.mxu0 0.0
        %2126 = vmatprep.subr.mxu0 0.0
        %2127 = vmatpush1.msra.mxu0 0.0
        %2128 = vmatprep.subr.mxu0 0.0
        %2129 = vmatpush1.msra.mxu0 0.0
        %2130 = vmatprep.subr.mxu0 0.0
        %2131 = vmatpush1.msra.mxu0 0.0
        %2132 = vmatprep.subr.mxu0 0.0
        %2133 = vmatpush1.msra.mxu0 0.0
        %2134 = vmatprep.subr.mxu0 0.0
        %2135 = vmatpush1.msra.mxu0 0.0
        %2136 = vmatprep.subr.mxu0 0.0
        %2137 = vmatpush1.msra.mxu0 0.0
        %2138 = vmatprep.subr.mxu0 0.0
        %2139 = vmatpush1.msra.mxu0 0.0
        %2140 = vmatprep.subr.mxu0 0.0
        %2141 = vmatpush1.msra.mxu0 0.0
        %2142 = vmatprep.subr.mxu0 0.0
        %2143 = vmatpush1.msra.mxu0 0.0
        %2144 = vmatprep.subr.mxu0 0.0
        %2145 = vmatpush1.msra.mxu0 0.0
        %2146 = vmatprep.subr.mxu0 0.0
        %2147 = vmatpush1.msra.mxu0 0.0
        %2148 = vmatprep.subr.mxu0 0.0
        %2149 = vmatpush1.msra.mxu0 0.0
        %2150 = vmatprep.subr.mxu0 0.0
        %2151 = vmatpush1.msra.mxu0 0.0
        %2152 = vmatprep.subr.mxu0 0.0
        %2153 = vmatpush1.msra.mxu0 0.0
        %2154 = vmatprep.subr.mxu0 0.0
        %2155 = vmatpush1.msra.mxu0 0.0
        %2156 = vmatprep.subr.mxu0 0.0
        %2157 = vmatpush1.msra.mxu0 0.0
        %2158 = vmatprep.subr.mxu0 0.0
        %2159 = vmatpush1.msra.mxu0 0.0
        %2160 = vmatprep.subr.mxu0 0.0
        %2161 = vmatpush1.msra.mxu0 0.0
        %2162 = vmatprep.subr.mxu0 0.0
        %2163 = vmatpush1.msra.mxu0 0.0
        %2164 = vmatprep.subr.mxu0 0.0
        %2165 = vmatpush1.msra.mxu0 0.0
        %2166 = vmatprep.subr.mxu0 0.0
        %2167 = vmatpush1.msra.mxu0 0.0
        %2168 = vmatprep.subr.mxu0 0.0
        %2169 = vmatpush1.msra.mxu0 0.0
        %2170 = vmatprep.subr.mxu0 0.0
        %2171 = vmatpush1.msra.mxu0 0.0
        %2172 = vmatprep.subr.mxu0 0.0
        %2173 = vmatpush1.msra.mxu0 0.0
        %2174 = vmatprep.subr.mxu0 0.0
        %2175 = vmatpush1.msra.mxu0 0.0
        %2176 = vmatprep.mubr.f32.mxu0 0.0
        %2177 = vmatmul.mubr.f32.gmra.mrb[0].mxu0 %v1970
        %v2178 = vpop.f32.mrb[0].mxu0
        %v2179 = vadd.f32 %v1002, %v2178
        %v2180 = vpop.f32.mrb[0].mxu0
        %2181 = vdwg.mxu0
        %s2182 = scalar_lea.vmem [#allocation2], 32
        %v2183 = vld [vmem:[%s2182] sm:$0xff]
        %v2184 = vadd.f32 %v2183, %v2039
        %v2185 = vxor.u32 %v2184, 2147483648
        %v2186 = vmul.f32 %v2185, 1.442695
        %v2187 = vpow.pop %v2186
        %v2188 = vadd.f32 %v2187, 1.0
        %v2189 = vrcp.pop %v2188
        %v2190 = vmul.f32 1.0, %v2189
        %s2191 = scalar_lea.vmem [#allocation3], 32
        %v2192 = vld [vmem:[%s2191] sm:$0xff]
        %v2193 = vadd.f32 %v2192, %v2109
        %v2194 = vxor.u32 %v2193, 2147483648
        %v2195 = vmul.f32 %v2194, 1.442695
        %v2196 = vpow.pop %v2195
        %v2197 = vadd.f32 %v2196, 1.0
        %v2198 = vrcp.pop %v2197
        %v2199 = vmul.f32 1.0, %v2198
        %s2200 = scalar_lea.vmem [#allocation4], 32
        %v2201 = vld [vmem:[%s2200] sm:$0xff]
        %v2202 = vmul.f32 %v2190, %v2179
        %v2203 = vadd.f32 %v2201, %v2202
        %v2204 = vtanh.pop %v2203
        %v2205 = vsub.f32 1.0, %v2199
        %v2206 = vmul.f32 %v2205, %v2204
        %v2207 = vmul.f32 %v2199, %v1966
        %v2208 = vadd.f32 %v2206, %v2207
        %vm2209 = vcmp.eq.s32.totalorder %v984, 4
        %v2210 = vsel %vm2209, %v2208, %v1968
        %v2212 = vsel %vm529, %v2208, 0
        %2214 = vmatprep.subr.mxu0 0.0
        %2215 = vmatpush1.msra.mxu0 %v985
        %2216 = vmatprep.subr.mxu0 0.0
        %2217 = vmatpush1.msra.mxu0 %v986
        %2218 = vmatprep.subr.mxu0 0.0
        %2219 = vmatpush1.msra.mxu0 %v987
        %2220 = vmatprep.subr.mxu0 0.0
        %2221 = vmatpush1.msra.mxu0 %v988
        %2222 = vmatprep.subr.mxu0 0.0
        %2223 = vmatpush1.msra.mxu0 0.0
        %2224 = vmatprep.subr.mxu0 0.0
        %2225 = vmatpush1.msra.mxu0 0.0
        %2226 = vmatprep.subr.mxu0 0.0
        %2227 = vmatpush1.msra.mxu0 0.0
        %2228 = vmatprep.subr.mxu0 0.0
        %2229 = vmatpush1.msra.mxu0 0.0
        %2230 = vmatprep.subr.mxu0 0.0
        %2231 = vmatpush1.msra.mxu0 0.0
        %2232 = vmatprep.subr.mxu0 0.0
        %2233 = vmatpush1.msra.mxu0 0.0
        %2234 = vmatprep.subr.mxu0 0.0
        %2235 = vmatpush1.msra.mxu0 0.0
        %2236 = vmatprep.subr.mxu0 0.0
        %2237 = vmatpush1.msra.mxu0 0.0
        %2238 = vmatprep.subr.mxu0 0.0
        %2239 = vmatpush1.msra.mxu0 0.0
        %2240 = vmatprep.subr.mxu0 0.0
        %2241 = vmatpush1.msra.mxu0 0.0
        %2242 = vmatprep.subr.mxu0 0.0
        %2243 = vmatpush1.msra.mxu0 0.0
        %2244 = vmatprep.subr.mxu0 0.0
        %2245 = vmatpush1.msra.mxu0 0.0
        %2246 = vmatprep.subr.mxu0 0.0
        %2247 = vmatpush1.msra.mxu0 0.0
        %2248 = vmatprep.subr.mxu0 0.0
        %2249 = vmatpush1.msra.mxu0 0.0
        %2250 = vmatprep.subr.mxu0 0.0
        %2251 = vmatpush1.msra.mxu0 0.0
        %2252 = vmatprep.subr.mxu0 0.0
        %2253 = vmatpush1.msra.mxu0 0.0
        %2254 = vmatprep.subr.mxu0 0.0
        %2255 = vmatpush1.msra.mxu0 0.0
        %2256 = vmatprep.subr.mxu0 0.0
        %2257 = vmatpush1.msra.mxu0 0.0
        %2258 = vmatprep.subr.mxu0 0.0
        %2259 = vmatpush1.msra.mxu0 0.0
        %2260 = vmatprep.subr.mxu0 0.0
        %2261 = vmatpush1.msra.mxu0 0.0
        %2262 = vmatprep.subr.mxu0 0.0
        %2263 = vmatpush1.msra.mxu0 0.0
        %2264 = vmatprep.subr.mxu0 0.0
        %2265 = vmatpush1.msra.mxu0 0.0
        %2266 = vmatprep.subr.mxu0 0.0
        %2267 = vmatpush1.msra.mxu0 0.0
        %2268 = vmatprep.subr.mxu0 0.0
        %2269 = vmatpush1.msra.mxu0 0.0
        %2270 = vmatprep.subr.mxu0 0.0
        %2271 = vmatpush1.msra.mxu0 0.0
        %2272 = vmatprep.subr.mxu0 0.0
        %2273 = vmatpush1.msra.mxu0 0.0
        %2274 = vmatprep.subr.mxu0 0.0
        %2275 = vmatpush1.msra.mxu0 0.0
        %2276 = vmatprep.subr.mxu0 0.0
        %2277 = vmatpush1.msra.mxu0 0.0
        %2278 = vmatprep.mubr.f32.mxu0 0.0
        %2279 = vmatmul.mubr.f32.gmra.mrb[0].mxu0 %v2212
        %v2280 = vpop.f32.mrb[0].mxu0
        %v2281 = vadd.f32 0.0, %v2280
        %v2282 = vpop.f32.mrb[0].mxu0
        %2283 = vdwg.mxu0
        %2284 = vmatprep.subr.mxu0 0.0
        %2285 = vmatpush1.msra.mxu0 %v989
        %2286 = vmatprep.subr.mxu0 0.0
        %2287 = vmatpush1.msra.mxu0 %v990
        %2288 = vmatprep.subr.mxu0 0.0
        %2289 = vmatpush1.msra.mxu0 %v991
        %2290 = vmatprep.subr.mxu0 0.0
        %2291 = vmatpush1.msra.mxu0 %v992
        %2292 = vmatprep.subr.mxu0 0.0
        %2293 = vmatpush1.msra.mxu0 0.0
        %2294 = vmatprep.subr.mxu0 0.0
        %2295 = vmatpush1.msra.mxu0 0.0
        %2296 = vmatprep.subr.mxu0 0.0
        %2297 = vmatpush1.msra.mxu0 0.0
        %2298 = vmatprep.subr.mxu0 0.0
        %2299 = vmatpush1.msra.mxu0 0.0
        %2300 = vmatprep.subr.mxu0 0.0
        %2301 = vmatpush1.msra.mxu0 0.0
        %2302 = vmatprep.subr.mxu0 0.0
        %2303 = vmatpush1.msra.mxu0 0.0
        %2304 = vmatprep.subr.mxu0 0.0
        %2305 = vmatpush1.msra.mxu0 0.0
        %2306 = vmatprep.subr.mxu0 0.0
        %2307 = vmatpush1.msra.mxu0 0.0
        %2308 = vmatprep.subr.mxu0 0.0
        %2309 = vmatpush1.msra.mxu0 0.0
        %2310 = vmatprep.subr.mxu0 0.0
        %2311 = vmatpush1.msra.mxu0 0.0
        %2312 = vmatprep.subr.mxu0 0.0
        %2313 = vmatpush1.msra.mxu0 0.0
        %2314 = vmatprep.subr.mxu0 0.0
        %2315 = vmatpush1.msra.mxu0 0.0
        %2316 = vmatprep.subr.mxu0 0.0
        %2317 = vmatpush1.msra.mxu0 0.0
        %2318 = vmatprep.subr.mxu0 0.0
        %2319 = vmatpush1.msra.mxu0 0.0
        %2320 = vmatprep.subr.mxu0 0.0
        %2321 = vmatpush1.msra.mxu0 0.0
        %2322 = vmatprep.subr.mxu0 0.0
        %2323 = vmatpush1.msra.mxu0 0.0
        %2324 = vmatprep.subr.mxu0 0.0
        %2325 = vmatpush1.msra.mxu0 0.0
        %2326 = vmatprep.subr.mxu0 0.0
        %2327 = vmatpush1.msra.mxu0 0.0
        %2328 = vmatprep.subr.mxu0 0.0
        %2329 = vmatpush1.msra.mxu0 0.0
        %2330 = vmatprep.subr.mxu0 0.0
        %2331 = vmatpush1.msra.mxu0 0.0
        %2332 = vmatprep.subr.mxu0 0.0
        %2333 = vmatpush1.msra.mxu0 0.0
        %2334 = vmatprep.subr.mxu0 0.0
        %2335 = vmatpush1.msra.mxu0 0.0
        %2336 = vmatprep.subr.mxu0 0.0
        %2337 = vmatpush1.msra.mxu0 0.0
        %2338 = vmatprep.subr.mxu0 0.0
        %2339 = vmatpush1.msra.mxu0 0.0
        %2340 = vmatprep.subr.mxu0 0.0
        %2341 = vmatpush1.msra.mxu0 0.0
        %2342 = vmatprep.subr.mxu0 0.0
        %2343 = vmatpush1.msra.mxu0 0.0
        %2344 = vmatprep.subr.mxu0 0.0
        %2345 = vmatpush1.msra.mxu0 0.0
        %2346 = vmatprep.subr.mxu0 0.0
        %2347 = vmatpush1.msra.mxu0 0.0
        %2348 = vmatprep.mubr.f32.mxu0 0.0
        %2349 = vmatmul.mubr.f32.gmra.mrb[0].mxu0 %v2212
        %v2350 = vpop.f32.mrb[0].mxu0
        %v2351 = vadd.f32 0.0, %v2350
        %v2352 = vpop.f32.mrb[0].mxu0
        %2353 = vdwg.mxu0
        %2354 = vmatprep.subr.mxu0 0.0
        %2355 = vmatpush1.msra.mxu0 %v993
        %2356 = vmatprep.subr.mxu0 0.0
        %2357 = vmatpush1.msra.mxu0 %v994
        %2358 = vmatprep.subr.mxu0 0.0
        %2359 = vmatpush1.msra.mxu0 %v995
        %2360 = vmatprep.subr.mxu0 0.0
        %2361 = vmatpush1.msra.mxu0 %v996
        %2362 = vmatprep.subr.mxu0 0.0
        %2363 = vmatpush1.msra.mxu0 0.0
        %2364 = vmatprep.subr.mxu0 0.0
        %2365 = vmatpush1.msra.mxu0 0.0
        %2366 = vmatprep.subr.mxu0 0.0
        %2367 = vmatpush1.msra.mxu0 0.0
        %2368 = vmatprep.subr.mxu0 0.0
        %2369 = vmatpush1.msra.mxu0 0.0
        %2370 = vmatprep.subr.mxu0 0.0
        %2371 = vmatpush1.msra.mxu0 0.0
        %2372 = vmatprep.subr.mxu0 0.0
        %2373 = vmatpush1.msra.mxu0 0.0
        %2374 = vmatprep.subr.mxu0 0.0
        %2375 = vmatpush1.msra.mxu0 0.0
        %2376 = vmatprep.subr.mxu0 0.0
        %2377 = vmatpush1.msra.mxu0 0.0
        %2378 = vmatprep.subr.mxu0 0.0
        %2379 = vmatpush1.msra.mxu0 0.0
        %2380 = vmatprep.subr.mxu0 0.0
        %2381 = vmatpush1.msra.mxu0 0.0
        %2382 = vmatprep.subr.mxu0 0.0
        %2383 = vmatpush1.msra.mxu0 0.0
        %2384 = vmatprep.subr.mxu0 0.0
        %2385 = vmatpush1.msra.mxu0 0.0
        %2386 = vmatprep.subr.mxu0 0.0
        %2387 = vmatpush1.msra.mxu0 0.0
        %2388 = vmatprep.subr.mxu0 0.0
        %2389 = vmatpush1.msra.mxu0 0.0
        %2390 = vmatprep.subr.mxu0 0.0
        %2391 = vmatpush1.msra.mxu0 0.0
        %2392 = vmatprep.subr.mxu0 0.0
        %2393 = vmatpush1.msra.mxu0 0.0
        %2394 = vmatprep.subr.mxu0 0.0
        %2395 = vmatpush1.msra.mxu0 0.0
        %2396 = vmatprep.subr.mxu0 0.0
        %2397 = vmatpush1.msra.mxu0 0.0
        %2398 = vmatprep.subr.mxu0 0.0
        %2399 = vmatpush1.msra.mxu0 0.0
        %2400 = vmatprep.subr.mxu0 0.0
        %2401 = vmatpush1.msra.mxu0 0.0
        %2402 = vmatprep.subr.mxu0 0.0
        %2403 = vmatpush1.msra.mxu0 0.0
        %2404 = vmatprep.subr.mxu0 0.0
        %2405 = vmatpush1.msra.mxu0 0.0
        %2406 = vmatprep.subr.mxu0 0.0
        %2407 = vmatpush1.msra.mxu0 0.0
        %2408 = vmatprep.subr.mxu0 0.0
        %2409 = vmatpush1.msra.mxu0 0.0
        %2410 = vmatprep.subr.mxu0 0.0
        %2411 = vmatpush1.msra.mxu0 0.0
        %2412 = vmatprep.subr.mxu0 0.0
        %2413 = vmatpush1.msra.mxu0 0.0
        %2414 = vmatprep.subr.mxu0 0.0
        %2415 = vmatpush1.msra.mxu0 0.0
        %2416 = vmatprep.subr.mxu0 0.0
        %2417 = vmatpush1.msra.mxu0 0.0
        %2418 = vmatprep.mubr.f32.mxu0 0.0
        %2419 = vmatmul.mubr.f32.gmra.mrb[0].mxu0 %v2212
        %v2420 = vpop.f32.mrb[0].mxu0
        %v2421 = vadd.f32 %v1002, %v2420
        %v2422 = vpop.f32.mrb[0].mxu0
        %2423 = vdwg.mxu0
        %s2424 = scalar_lea.vmem [#allocation2], 40
        %v2425 = vld [vmem:[%s2424] sm:$0xff]
        %v2426 = vadd.f32 %v2425, %v2281
        %v2427 = vxor.u32 %v2426, 2147483648
        %v2428 = vmul.f32 %v2427, 1.442695
        %v2429 = vpow.pop %v2428
        %v2430 = vadd.f32 %v2429, 1.0
        %v2431 = vrcp.pop %v2430
        %v2432 = vmul.f32 1.0, %v2431
        %s2433 = scalar_lea.vmem [#allocation3], 40
        %v2434 = vld [vmem:[%s2433] sm:$0xff]
        %v2435 = vadd.f32 %v2434, %v2351
        %v2436 = vxor.u32 %v2435, 2147483648
        %v2437 = vmul.f32 %v2436, 1.442695
        %v2438 = vpow.pop %v2437
        %v2439 = vadd.f32 %v2438, 1.0
        %v2440 = vrcp.pop %v2439
        %v2441 = vmul.f32 1.0, %v2440
        %s2442 = scalar_lea.vmem [#allocation4], 40
        %v2443 = vld [vmem:[%s2442] sm:$0xff]
        %v2444 = vmul.f32 %v2432, %v2421
        %v2445 = vadd.f32 %v2443, %v2444
        %v2446 = vtanh.pop %v2445
        %v2447 = vsub.f32 1.0, %v2441
        %v2448 = vmul.f32 %v2447, %v2446
        %v2449 = vmul.f32 %v2441, %v2208
        %v2450 = vadd.f32 %v2448, %v2449
        %vm2451 = vcmp.eq.s32.totalorder %v984, 5
        %v2452 = vsel %vm2451, %v2450, %v2210
        %v2454 = vsel %vm529, %v2450, 0
        %2456 = vmatprep.subr.mxu0 0.0
        %2457 = vmatpush1.msra.mxu0 %v985
        %2458 = vmatprep.subr.mxu0 0.0
        %2459 = vmatpush1.msra.mxu0 %v986
        %2460 = vmatprep.subr.mxu0 0.0
        %2461 = vmatpush1.msra.mxu0 %v987
        %2462 = vmatprep.subr.mxu0 0.0
        %2463 = vmatpush1.msra.mxu0 %v988
        %2464 = vmatprep.subr.mxu0 0.0
        %2465 = vmatpush1.msra.mxu0 0.0
        %2466 = vmatprep.subr.mxu0 0.0
        %2467 = vmatpush1.msra.mxu0 0.0
        %2468 = vmatprep.subr.mxu0 0.0
        %2469 = vmatpush1.msra.mxu0 0.0
        %2470 = vmatprep.subr.mxu0 0.0
        %2471 = vmatpush1.msra.mxu0 0.0
        %2472 = vmatprep.subr.mxu0 0.0
        %2473 = vmatpush1.msra.mxu0 0.0
        %2474 = vmatprep.subr.mxu0 0.0
        %2475 = vmatpush1.msra.mxu0 0.0
        %2476 = vmatprep.subr.mxu0 0.0
        %2477 = vmatpush1.msra.mxu0 0.0
        %2478 = vmatprep.subr.mxu0 0.0
        %2479 = vmatpush1.msra.mxu0 0.0
        %2480 = vmatprep.subr.mxu0 0.0
        %2481 = vmatpush1.msra.mxu0 0.0
        %2482 = vmatprep.subr.mxu0 0.0
        %2483 = vmatpush1.msra.mxu0 0.0
        %2484 = vmatprep.subr.mxu0 0.0
        %2485 = vmatpush1.msra.mxu0 0.0
        %2486 = vmatprep.subr.mxu0 0.0
        %2487 = vmatpush1.msra.mxu0 0.0
        %2488 = vmatprep.subr.mxu0 0.0
        %2489 = vmatpush1.msra.mxu0 0.0
        %2490 = vmatprep.subr.mxu0 0.0
        %2491 = vmatpush1.msra.mxu0 0.0
        %2492 = vmatprep.subr.mxu0 0.0
        %2493 = vmatpush1.msra.mxu0 0.0
        %2494 = vmatprep.subr.mxu0 0.0
        %2495 = vmatpush1.msra.mxu0 0.0
        %2496 = vmatprep.subr.mxu0 0.0
        %2497 = vmatpush1.msra.mxu0 0.0
        %2498 = vmatprep.subr.mxu0 0.0
        %2499 = vmatpush1.msra.mxu0 0.0
        %2500 = vmatprep.subr.mxu0 0.0
        %2501 = vmatpush1.msra.mxu0 0.0
        %2502 = vmatprep.subr.mxu0 0.0
        %2503 = vmatpush1.msra.mxu0 0.0
        %2504 = vmatprep.subr.mxu0 0.0
        %2505 = vmatpush1.msra.mxu0 0.0
        %2506 = vmatprep.subr.mxu0 0.0
        %2507 = vmatpush1.msra.mxu0 0.0
        %2508 = vmatprep.subr.mxu0 0.0
        %2509 = vmatpush1.msra.mxu0 0.0
        %2510 = vmatprep.subr.mxu0 0.0
        %2511 = vmatpush1.msra.mxu0 0.0
        %2512 = vmatprep.subr.mxu0 0.0
        %2513 = vmatpush1.msra.mxu0 0.0
        %2514 = vmatprep.subr.mxu0 0.0
        %2515 = vmatpush1.msra.mxu0 0.0
        %2516 = vmatprep.subr.mxu0 0.0
        %2517 = vmatpush1.msra.mxu0 0.0
        %2518 = vmatprep.subr.mxu0 0.0
        %2519 = vmatpush1.msra.mxu0 0.0
        %2520 = vmatprep.mubr.f32.mxu0 0.0
        %2521 = vmatmul.mubr.f32.gmra.mrb[0].mxu0 %v2454
        %v2522 = vpop.f32.mrb[0].mxu0
        %v2523 = vadd.f32 0.0, %v2522
        %v2524 = vpop.f32.mrb[0].mxu0
        %2525 = vdwg.mxu0
        %2526 = vmatprep.subr.mxu0 0.0
        %2527 = vmatpush1.msra.mxu0 %v989
        %2528 = vmatprep.subr.mxu0 0.0
        %2529 = vmatpush1.msra.mxu0 %v990
        %2530 = vmatprep.subr.mxu0 0.0
        %2531 = vmatpush1.msra.mxu0 %v991
        %2532 = vmatprep.subr.mxu0 0.0
        %2533 = vmatpush1.msra.mxu0 %v992
        %2534 = vmatprep.subr.mxu0 0.0
        %2535 = vmatpush1.msra.mxu0 0.0
        %2536 = vmatprep.subr.mxu0 0.0
        %2537 = vmatpush1.msra.mxu0 0.0
        %2538 = vmatprep.subr.mxu0 0.0
        %2539 = vmatpush1.msra.mxu0 0.0
        %2540 = vmatprep.subr.mxu0 0.0
        %2541 = vmatpush1.msra.mxu0 0.0
        %2542 = vmatprep.subr.mxu0 0.0
        %2543 = vmatpush1.msra.mxu0 0.0
        %2544 = vmatprep.subr.mxu0 0.0
        %2545 = vmatpush1.msra.mxu0 0.0
        %2546 = vmatprep.subr.mxu0 0.0
        %2547 = vmatpush1.msra.mxu0 0.0
        %2548 = vmatprep.subr.mxu0 0.0
        %2549 = vmatpush1.msra.mxu0 0.0
        %2550 = vmatprep.subr.mxu0 0.0
        %2551 = vmatpush1.msra.mxu0 0.0
        %2552 = vmatprep.subr.mxu0 0.0
        %2553 = vmatpush1.msra.mxu0 0.0
        %2554 = vmatprep.subr.mxu0 0.0
        %2555 = vmatpush1.msra.mxu0 0.0
        %2556 = vmatprep.subr.mxu0 0.0
        %2557 = vmatpush1.msra.mxu0 0.0
        %2558 = vmatprep.subr.mxu0 0.0
        %2559 = vmatpush1.msra.mxu0 0.0
        %2560 = vmatprep.subr.mxu0 0.0
        %2561 = vmatpush1.msra.mxu0 0.0
        %2562 = vmatprep.subr.mxu0 0.0
        %2563 = vmatpush1.msra.mxu0 0.0
        %2564 = vmatprep.subr.mxu0 0.0
        %2565 = vmatpush1.msra.mxu0 0.0
        %2566 = vmatprep.subr.mxu0 0.0
        %2567 = vmatpush1.msra.mxu0 0.0
        %2568 = vmatprep.subr.mxu0 0.0
        %2569 = vmatpush1.msra.mxu0 0.0
        %2570 = vmatprep.subr.mxu0 0.0
        %2571 = vmatpush1.msra.mxu0 0.0
        %2572 = vmatprep.subr.mxu0 0.0
        %2573 = vmatpush1.msra.mxu0 0.0
        %2574 = vmatprep.subr.mxu0 0.0
        %2575 = vmatpush1.msra.mxu0 0.0
        %2576 = vmatprep.subr.mxu0 0.0
        %2577 = vmatpush1.msra.mxu0 0.0
        %2578 = vmatprep.subr.mxu0 0.0
        %2579 = vmatpush1.msra.mxu0 0.0
        %2580 = vmatprep.subr.mxu0 0.0
        %2581 = vmatpush1.msra.mxu0 0.0
        %2582 = vmatprep.subr.mxu0 0.0
        %2583 = vmatpush1.msra.mxu0 0.0
        %2584 = vmatprep.subr.mxu0 0.0
        %2585 = vmatpush1.msra.mxu0 0.0
        %2586 = vmatprep.subr.mxu0 0.0
        %2587 = vmatpush1.msra.mxu0 0.0
        %2588 = vmatprep.subr.mxu0 0.0
        %2589 = vmatpush1.msra.mxu0 0.0
        %2590 = vmatprep.mubr.f32.mxu0 0.0
        %2591 = vmatmul.mubr.f32.gmra.mrb[0].mxu0 %v2454
        %v2592 = vpop.f32.mrb[0].mxu0
        %v2593 = vadd.f32 0.0, %v2592
        %v2594 = vpop.f32.mrb[0].mxu0
        %2595 = vdwg.mxu0
        %2596 = vmatprep.subr.mxu0 0.0
        %2597 = vmatpush1.msra.mxu0 %v993
        %2598 = vmatprep.subr.mxu0 0.0
        %2599 = vmatpush1.msra.mxu0 %v994
        %2600 = vmatprep.subr.mxu0 0.0
        %2601 = vmatpush1.msra.mxu0 %v995
        %2602 = vmatprep.subr.mxu0 0.0
        %2603 = vmatpush1.msra.mxu0 %v996
        %2604 = vmatprep.subr.mxu0 0.0
        %2605 = vmatpush1.msra.mxu0 0.0
        %2606 = vmatprep.subr.mxu0 0.0
        %2607 = vmatpush1.msra.mxu0 0.0
        %2608 = vmatprep.subr.mxu0 0.0
        %2609 = vmatpush1.msra.mxu0 0.0
        %2610 = vmatprep.subr.mxu0 0.0
        %2611 = vmatpush1.msra.mxu0 0.0
        %2612 = vmatprep.subr.mxu0 0.0
        %2613 = vmatpush1.msra.mxu0 0.0
        %2614 = vmatprep.subr.mxu0 0.0
        %2615 = vmatpush1.msra.mxu0 0.0
        %2616 = vmatprep.subr.mxu0 0.0
        %2617 = vmatpush1.msra.mxu0 0.0
        %2618 = vmatprep.subr.mxu0 0.0
        %2619 = vmatpush1.msra.mxu0 0.0
        %2620 = vmatprep.subr.mxu0 0.0
        %2621 = vmatpush1.msra.mxu0 0.0
        %2622 = vmatprep.subr.mxu0 0.0
        %2623 = vmatpush1.msra.mxu0 0.0
        %2624 = vmatprep.subr.mxu0 0.0
        %2625 = vmatpush1.msra.mxu0 0.0
        %2626 = vmatprep.subr.mxu0 0.0
        %2627 = vmatpush1.msra.mxu0 0.0
        %2628 = vmatprep.subr.mxu0 0.0
        %2629 = vmatpush1.msra.mxu0 0.0
        %2630 = vmatprep.subr.mxu0 0.0
        %2631 = vmatpush1.msra.mxu0 0.0
        %2632 = vmatprep.subr.mxu0 0.0
        %2633 = vmatpush1.msra.mxu0 0.0
        %2634 = vmatprep.subr.mxu0 0.0
        %2635 = vmatpush1.msra.mxu0 0.0
        %2636 = vmatprep.subr.mxu0 0.0
        %2637 = vmatpush1.msra.mxu0 0.0
        %2638 = vmatprep.subr.mxu0 0.0
        %2639 = vmatpush1.msra.mxu0 0.0
        %2640 = vmatprep.subr.mxu0 0.0
        %2641 = vmatpush1.msra.mxu0 0.0
        %2642 = vmatprep.subr.mxu0 0.0
        %2643 = vmatpush1.msra.mxu0 0.0
        %2644 = vmatprep.subr.mxu0 0.0
        %2645 = vmatpush1.msra.mxu0 0.0
        %2646 = vmatprep.subr.mxu0 0.0
        %2647 = vmatpush1.msra.mxu0 0.0
        %2648 = vmatprep.subr.mxu0 0.0
        %2649 = vmatpush1.msra.mxu0 0.0
        %2650 = vmatprep.subr.mxu0 0.0
        %2651 = vmatpush1.msra.mxu0 0.0
        %2652 = vmatprep.subr.mxu0 0.0
        %2653 = vmatpush1.msra.mxu0 0.0
        %2654 = vmatprep.subr.mxu0 0.0
        %2655 = vmatpush1.msra.mxu0 0.0
        %2656 = vmatprep.subr.mxu0 0.0
        %2657 = vmatpush1.msra.mxu0 0.0
        %2658 = vmatprep.subr.mxu0 0.0
        %2659 = vmatpush1.msra.mxu0 0.0
        %2660 = vmatprep.mubr.f32.mxu0 0.0
        %2661 = vmatmul.mubr.f32.gmra.mrb[0].mxu0 %v2454
        %v2662 = vpop.f32.mrb[0].mxu0
        %v2663 = vadd.f32 %v1002, %v2662
        %v2664 = vpop.f32.mrb[0].mxu0
        %2665 = vdwg.mxu0
        %s2666 = scalar_lea.vmem [#allocation2], 48
        %v2667 = vld [vmem:[%s2666] sm:$0xff]
        %v2668 = vadd.f32 %v2667, %v2523
        %v2669 = vxor.u32 %v2668, 2147483648
        %v2670 = vmul.f32 %v2669, 1.442695
        %v2671 = vpow.pop %v2670
        %v2672 = vadd.f32 %v2671, 1.0
        %v2673 = vrcp.pop %v2672
        %v2674 = vmul.f32 1.0, %v2673
        %s2675 = scalar_lea.vmem [#allocation3], 48
        %v2676 = vld [vmem:[%s2675] sm:$0xff]
        %v2677 = vadd.f32 %v2676, %v2593
        %v2678 = vxor.u32 %v2677, 2147483648
        %v2679 = vmul.f32 %v2678, 1.442695
        %v2680 = vpow.pop %v2679
        %v2681 = vadd.f32 %v2680, 1.0
        %v2682 = vrcp.pop %v2681
        %v2683 = vmul.f32 1.0, %v2682
        %s2684 = scalar_lea.vmem [#allocation4], 48
        %v2685 = vld [vmem:[%s2684] sm:$0xff]
        %v2686 = vmul.f32 %v2674, %v2663
        %v2687 = vadd.f32 %v2685, %v2686
        %v2688 = vtanh.pop %v2687
        %v2689 = vsub.f32 1.0, %v2683
        %v2690 = vmul.f32 %v2689, %v2688
        %v2691 = vmul.f32 %v2683, %v2450
        %v2692 = vadd.f32 %v2690, %v2691
        %vm2693 = vcmp.eq.s32.totalorder %v984, 6
        %v2694 = vsel %vm2693, %v2692, %v2452
        %v2696 = vsel %vm529, %v2692, 0
        %2698 = vmatprep.subr.mxu0 0.0
        %2699 = vmatpush1.msra.mxu0 %v985
        %2700 = vmatprep.subr.mxu0 0.0
        %2701 = vmatpush1.msra.mxu0 %v986
        %2702 = vmatprep.subr.mxu0 0.0
        %2703 = vmatpush1.msra.mxu0 %v987
        %2704 = vmatprep.subr.mxu0 0.0
        %2705 = vmatpush1.msra.mxu0 %v988
        %2706 = vmatprep.subr.mxu0 0.0
        %2707 = vmatpush1.msra.mxu0 0.0
        %2708 = vmatprep.subr.mxu0 0.0
        %2709 = vmatpush1.msra.mxu0 0.0
        %2710 = vmatprep.subr.mxu0 0.0
        %2711 = vmatpush1.msra.mxu0 0.0
        %2712 = vmatprep.subr.mxu0 0.0
        %2713 = vmatpush1.msra.mxu0 0.0
        %2714 = vmatprep.subr.mxu0 0.0
        %2715 = vmatpush1.msra.mxu0 0.0
        %2716 = vmatprep.subr.mxu0 0.0
        %2717 = vmatpush1.msra.mxu0 0.0
        %2718 = vmatprep.subr.mxu0 0.0
        %2719 = vmatpush1.msra.mxu0 0.0
        %2720 = vmatprep.subr.mxu0 0.0
        %2721 = vmatpush1.msra.mxu0 0.0
        %2722 = vmatprep.subr.mxu0 0.0
        %2723 = vmatpush1.msra.mxu0 0.0
        %2724 = vmatprep.subr.mxu0 0.0
        %2725 = vmatpush1.msra.mxu0 0.0
        %2726 = vmatprep.subr.mxu0 0.0
        %2727 = vmatpush1.msra.mxu0 0.0
        %2728 = vmatprep.subr.mxu0 0.0
        %2729 = vmatpush1.msra.mxu0 0.0
        %2730 = vmatprep.subr.mxu0 0.0
        %2731 = vmatpush1.msra.mxu0 0.0
        %2732 = vmatprep.subr.mxu0 0.0
        %2733 = vmatpush1.msra.mxu0 0.0
        %2734 = vmatprep.subr.mxu0 0.0
        %2735 = vmatpush1.msra.mxu0 0.0
        %2736 = vmatprep.subr.mxu0 0.0
        %2737 = vmatpush1.msra.mxu0 0.0
        %2738 = vmatprep.subr.mxu0 0.0
        %2739 = vmatpush1.msra.mxu0 0.0
        %2740 = vmatprep.subr.mxu0 0.0
        %2741 = vmatpush1.msra.mxu0 0.0
        %2742 = vmatprep.subr.mxu0 0.0
        %2743 = vmatpush1.msra.mxu0 0.0
        %2744 = vmatprep.subr.mxu0 0.0
        %2745 = vmatpush1.msra.mxu0 0.0
        %2746 = vmatprep.subr.mxu0 0.0
        %2747 = vmatpush1.msra.mxu0 0.0
        %2748 = vmatprep.subr.mxu0 0.0
        %2749 = vmatpush1.msra.mxu0 0.0
        %2750 = vmatprep.subr.mxu0 0.0
        %2751 = vmatpush1.msra.mxu0 0.0
        %2752 = vmatprep.subr.mxu0 0.0
        %2753 = vmatpush1.msra.mxu0 0.0
        %2754 = vmatprep.subr.mxu0 0.0
        %2755 = vmatpush1.msra.mxu0 0.0
        %2756 = vmatprep.subr.mxu0 0.0
        %2757 = vmatpush1.msra.mxu0 0.0
        %2758 = vmatprep.subr.mxu0 0.0
        %2759 = vmatpush1.msra.mxu0 0.0
        %2760 = vmatprep.subr.mxu0 0.0
        %2761 = vmatpush1.msra.mxu0 0.0
        %2762 = vmatprep.mubr.f32.mxu0 0.0
        %2763 = vmatmul.mubr.f32.gmra.mrb[0].mxu0 %v2696
        %v2764 = vpop.f32.mrb[0].mxu0
        %v2765 = vadd.f32 0.0, %v2764
        %v2766 = vpop.f32.mrb[0].mxu0
        %2767 = vdwg.mxu0
        %2768 = vmatprep.subr.mxu0 0.0
        %2769 = vmatpush1.msra.mxu0 %v989
        %2770 = vmatprep.subr.mxu0 0.0
        %2771 = vmatpush1.msra.mxu0 %v990
        %2772 = vmatprep.subr.mxu0 0.0
        %2773 = vmatpush1.msra.mxu0 %v991
        %2774 = vmatprep.subr.mxu0 0.0
        %2775 = vmatpush1.msra.mxu0 %v992
        %2776 = vmatprep.subr.mxu0 0.0
        %2777 = vmatpush1.msra.mxu0 0.0
        %2778 = vmatprep.subr.mxu0 0.0
        %2779 = vmatpush1.msra.mxu0 0.0
        %2780 = vmatprep.subr.mxu0 0.0
        %2781 = vmatpush1.msra.mxu0 0.0
        %2782 = vmatprep.subr.mxu0 0.0
        %2783 = vmatpush1.msra.mxu0 0.0
        %2784 = vmatprep.subr.mxu0 0.0
        %2785 = vmatpush1.msra.mxu0 0.0
        %2786 = vmatprep.subr.mxu0 0.0
        %2787 = vmatpush1.msra.mxu0 0.0
        %2788 = vmatprep.subr.mxu0 0.0
        %2789 = vmatpush1.msra.mxu0 0.0
        %2790 = vmatprep.subr.mxu0 0.0
        %2791 = vmatpush1.msra.mxu0 0.0
        %2792 = vmatprep.subr.mxu0 0.0
        %2793 = vmatpush1.msra.mxu0 0.0
        %2794 = vmatprep.subr.mxu0 0.0
        %2795 = vmatpush1.msra.mxu0 0.0
        %2796 = vmatprep.subr.mxu0 0.0
        %2797 = vmatpush1.msra.mxu0 0.0
        %2798 = vmatprep.subr.mxu0 0.0
        %2799 = vmatpush1.msra.mxu0 0.0
        %2800 = vmatprep.subr.mxu0 0.0
        %2801 = vmatpush1.msra.mxu0 0.0
        %2802 = vmatprep.subr.mxu0 0.0
        %2803 = vmatpush1.msra.mxu0 0.0
        %2804 = vmatprep.subr.mxu0 0.0
        %2805 = vmatpush1.msra.mxu0 0.0
        %2806 = vmatprep.subr.mxu0 0.0
        %2807 = vmatpush1.msra.mxu0 0.0
        %2808 = vmatprep.subr.mxu0 0.0
        %2809 = vmatpush1.msra.mxu0 0.0
        %2810 = vmatprep.subr.mxu0 0.0
        %2811 = vmatpush1.msra.mxu0 0.0
        %2812 = vmatprep.subr.mxu0 0.0
        %2813 = vmatpush1.msra.mxu0 0.0
        %2814 = vmatprep.subr.mxu0 0.0
        %2815 = vmatpush1.msra.mxu0 0.0
        %2816 = vmatprep.subr.mxu0 0.0
        %2817 = vmatpush1.msra.mxu0 0.0
        %2818 = vmatprep.subr.mxu0 0.0
        %2819 = vmatpush1.msra.mxu0 0.0
        %2820 = vmatprep.subr.mxu0 0.0
        %2821 = vmatpush1.msra.mxu0 0.0
        %2822 = vmatprep.subr.mxu0 0.0
        %2823 = vmatpush1.msra.mxu0 0.0
        %2824 = vmatprep.subr.mxu0 0.0
        %2825 = vmatpush1.msra.mxu0 0.0
        %2826 = vmatprep.subr.mxu0 0.0
        %2827 = vmatpush1.msra.mxu0 0.0
        %2828 = vmatprep.subr.mxu0 0.0
        %2829 = vmatpush1.msra.mxu0 0.0
        %2830 = vmatprep.subr.mxu0 0.0
        %2831 = vmatpush1.msra.mxu0 0.0
        %2832 = vmatprep.mubr.f32.mxu0 0.0
        %2833 = vmatmul.mubr.f32.gmra.mrb[0].mxu0 %v2696
        %v2834 = vpop.f32.mrb[0].mxu0
        %v2835 = vadd.f32 0.0, %v2834
        %v2836 = vpop.f32.mrb[0].mxu0
        %2837 = vdwg.mxu0
        %2838 = vmatprep.subr.mxu0 0.0
        %2839 = vmatpush1.msra.mxu0 %v993
        %2840 = vmatprep.subr.mxu0 0.0
        %2841 = vmatpush1.msra.mxu0 %v994
        %2842 = vmatprep.subr.mxu0 0.0
        %2843 = vmatpush1.msra.mxu0 %v995
        %2844 = vmatprep.subr.mxu0 0.0
        %2845 = vmatpush1.msra.mxu0 %v996
        %2846 = vmatprep.subr.mxu0 0.0
        %2847 = vmatpush1.msra.mxu0 0.0
        %2848 = vmatprep.subr.mxu0 0.0
        %2849 = vmatpush1.msra.mxu0 0.0
        %2850 = vmatprep.subr.mxu0 0.0
        %2851 = vmatpush1.msra.mxu0 0.0
        %2852 = vmatprep.subr.mxu0 0.0
        %2853 = vmatpush1.msra.mxu0 0.0
        %2854 = vmatprep.subr.mxu0 0.0
        %2855 = vmatpush1.msra.mxu0 0.0
        %2856 = vmatprep.subr.mxu0 0.0
        %2857 = vmatpush1.msra.mxu0 0.0
        %2858 = vmatprep.subr.mxu0 0.0
        %2859 = vmatpush1.msra.mxu0 0.0
        %2860 = vmatprep.subr.mxu0 0.0
        %2861 = vmatpush1.msra.mxu0 0.0
        %2862 = vmatprep.subr.mxu0 0.0
        %2863 = vmatpush1.msra.mxu0 0.0
        %2864 = vmatprep.subr.mxu0 0.0
        %2865 = vmatpush1.msra.mxu0 0.0
        %2866 = vmatprep.subr.mxu0 0.0
        %2867 = vmatpush1.msra.mxu0 0.0
        %2868 = vmatprep.subr.mxu0 0.0
        %2869 = vmatpush1.msra.mxu0 0.0
        %2870 = vmatprep.subr.mxu0 0.0
        %2871 = vmatpush1.msra.mxu0 0.0
        %2872 = vmatprep.subr.mxu0 0.0
        %2873 = vmatpush1.msra.mxu0 0.0
        %2874 = vmatprep.subr.mxu0 0.0
        %2875 = vmatpush1.msra.mxu0 0.0
        %2876 = vmatprep.subr.mxu0 0.0
        %2877 = vmatpush1.msra.mxu0 0.0
        %2878 = vmatprep.subr.mxu0 0.0
        %2879 = vmatpush1.msra.mxu0 0.0
        %2880 = vmatprep.subr.mxu0 0.0
        %2881 = vmatpush1.msra.mxu0 0.0
        %2882 = vmatprep.subr.mxu0 0.0
        %2883 = vmatpush1.msra.mxu0 0.0
        %2884 = vmatprep.subr.mxu0 0.0
        %2885 = vmatpush1.msra.mxu0 0.0
        %2886 = vmatprep.subr.mxu0 0.0
        %2887 = vmatpush1.msra.mxu0 0.0
        %2888 = vmatprep.subr.mxu0 0.0
        %2889 = vmatpush1.msra.mxu0 0.0
        %2890 = vmatprep.subr.mxu0 0.0
        %2891 = vmatpush1.msra.mxu0 0.0
        %2892 = vmatprep.subr.mxu0 0.0
        %2893 = vmatpush1.msra.mxu0 0.0
        %2894 = vmatprep.subr.mxu0 0.0
        %2895 = vmatpush1.msra.mxu0 0.0
        %2896 = vmatprep.subr.mxu0 0.0
        %2897 = vmatpush1.msra.mxu0 0.0
        %2898 = vmatprep.subr.mxu0 0.0
        %2899 = vmatpush1.msra.mxu0 0.0
        %2900 = vmatprep.subr.mxu0 0.0
        %2901 = vmatpush1.msra.mxu0 0.0
        %2902 = vmatprep.mubr.f32.mxu0 0.0
        %2903 = vmatmul.mubr.f32.gmra.mrb[0].mxu0 %v2696
        %v2904 = vpop.f32.mrb[0].mxu0
        %v2905 = vadd.f32 %v1002, %v2904
        %v2906 = vpop.f32.mrb[0].mxu0
        %2907 = vdwg.mxu0
        %s2908 = scalar_lea.vmem [#allocation2], 56
        %v2909 = vld [vmem:[%s2908] sm:$0xff]
        %v2910 = vadd.f32 %v2909, %v2765
        %v2911 = vxor.u32 %v2910, 2147483648
        %v2912 = vmul.f32 %v2911, 1.442695
        %v2913 = vpow.pop %v2912
        %v2914 = vadd.f32 %v2913, 1.0
        %v2915 = vrcp.pop %v2914
        %v2916 = vmul.f32 1.0, %v2915
        %s2917 = scalar_lea.vmem [#allocation3], 56
        %v2918 = vld [vmem:[%s2917] sm:$0xff]
        %v2919 = vadd.f32 %v2918, %v2835
        %v2920 = vxor.u32 %v2919, 2147483648
        %v2921 = vmul.f32 %v2920, 1.442695
        %v2922 = vpow.pop %v2921
        %v2923 = vadd.f32 %v2922, 1.0
        %v2924 = vrcp.pop %v2923
        %v2925 = vmul.f32 1.0, %v2924
        %s2926 = scalar_lea.vmem [#allocation4], 56
        %v2927 = vld [vmem:[%s2926] sm:$0xff]
        %v2928 = vmul.f32 %v2916, %v2905
        %v2929 = vadd.f32 %v2927, %v2928
        %v2930 = vtanh.pop %v2929
        %v2931 = vsub.f32 1.0, %v2925
        %v2932 = vmul.f32 %v2931, %v2930
        %v2933 = vmul.f32 %v2925, %v2692
        %v2934 = vadd.f32 %v2932, %v2933
        %vm2935 = vcmp.eq.s32.totalorder %v984, 7
        %v2936 = vsel %vm2935, %v2934, %v2694
        %2937 = vst.msk [vmem:[%s415] sm:$0xff] %vm529, %v2936
        %s2938 = sand.u32 %s216, 1
        %s2939 = scalar_lea.sflag [#allocation7], %s2938
        %s2940 = sand.u32 %s216, 1
        %s2941 = smul.addr %s2940, 8
        %s2942 = scalar_lea.vmem [#allocation16], %s2941
        // Predicated region
        $region77: #{tpu_custom_call.1} parent=51 // pred_check
          %p2943 = pneg %p226
        $region78: #{tpu_custom_call.1} parent=51 // pred_check_branch
          %2945 = sbr.rel (%p2943) target = $region80
        $region79: #{tpu_custom_call.1} parent=51 // pred_region
          %s2947 = ssub.s32 128, 128
          %2948 = vsyncadd %s2939, %s2947
          %s2949 = smul.addr %s30, 128
          %s2950 = scalar_lea.hbm %s8, %s2949
          %s2952 = sshll.u32 %s2942, 4
          %s2953 = int_to_ptr.vmem [resolvable:$true] %s2952
          %2955 = dma.vmem_to_hbm [thread:$0]  %s2953, 128, %s2950, %s2939
        $region80: #{tpu_custom_call.1} parent=51 // pred_fallthru
          _
      $region52: #{tpu_custom_call.1} parent=5 // pred_fallthru
        _
      %p2956 = scmp.le.s32.totalorder 2, %s25
      // Predicated region
      $region81: #{tpu_custom_call.1} parent=5 // pred_check
        %p2957 = pneg %p2956
      $region82: #{tpu_custom_call.1} parent=5 // pred_check_branch
        %2959 = sbr.rel (%p2957) target = $region84
      $region83: #{tpu_custom_call.1} parent=5 // pred_region
        %s2960 = ssub.s32 %s25, 2
        // Predicated region
        $region85: #{tpu_custom_call.1} parent=83 // pred_check
          %p2961 = pneg %p232
        $region86: #{tpu_custom_call.1} parent=83 // pred_check_branch
          %2963 = sbr.rel (%p2961) target = $region88
        $region87: #{tpu_custom_call.1} parent=83 // pred_region
          %s2964 = sand.u32 %s217, 1
          %s2965 = scalar_lea.sflag [#allocation7], %s2964
          %s2966 = sand.u32 %s217, 1
          %s2967 = smul.addr %s2966, 8
          %s2968 = scalar_lea.vmem [#allocation16], %s2967
          %2969 = dma.done %s2965, 128
        $region88: #{tpu_custom_call.1} parent=83 // pred_fallthru
          _
      $region84: #{tpu_custom_call.1} parent=5 // pred_fallthru
        _
    $region6: #{tpu_custom_call.1} parent=1 // loop_footer
      %s29 = sadd.s32 1, %s25
    $region7: #{tpu_custom_call.1} parent=1 // loop_footer_branch
      %24 = sbr.rel target = $region3
    $region8: #{tpu_custom_call.1} parent=1 // loop_exit
      _
    %2970 = vsyncpa [#allocation6], 1
    %s2971 = scalar_lea.sflag [#allocation6], 1
    %2972 = vsyncpa %s2971, 1
    %2973 = vsyncpa [#allocation9], 1
    %s2974 = scalar_lea.sflag [#allocation9], 1
    %2975 = vsyncpa %s2974, 1
    %2976 = vsyncpa [#allocation12], 1
    %2977 = vsyncpa [#allocation15], 1
    %2978 = vsyncpa [#allocation7], 1
    %s2979 = scalar_lea.sflag [#allocation7], 1
    %2980 = vsyncpa %s2979, 1

</llo_original>
